<compile_context>
chip_gen: v7x
topology: tpu7x:2x2x1
jax: 0.10.0
libtpu: 0.0.40
codegen_flags: <defaults>
</compile_context>

<pallas_src>
import functools

import jax
import jax.numpy as jnp
from jax import lax
from jax.experimental import pallas as pl
from jax.experimental.pallas import tpu as pltpu


# ---------------------------------------------------------------------------
# Per-generation VMEM budget (review item: one constant can't serve v5e/v6e
# (128 MiB) and v7x (64 MiB)).  Falls back to a safe 32 MiB.
# ---------------------------------------------------------------------------
_VMEM_BUDGET_CACHE = None


def _vmem_budget_bytes():
    global _VMEM_BUDGET_CACHE
    if _VMEM_BUDGET_CACHE is None:
        budget = 32 * 1024 * 1024
        try:
            cap = int(pltpu.get_tpu_info().vmem_capacity_bytes)
            if cap > 0:
                # ~2/3 of physical, capped at 100 MiB: ~85 MiB on v5e/v6e,
                # ~42 MiB on v7x.
                budget = max(32 * 1024 * 1024, min((cap * 2) // 3, 100 * 1024 * 1024))
        except Exception:
            pass
        _VMEM_BUDGET_CACHE = budget
    return _VMEM_BUDGET_CACHE


# ---------------------------------------------------------------------------
# Parameter setup (glue, plain JAX): spectral normalization of 1x1 conv weights
# ---------------------------------------------------------------------------
def _l2normalize(v, eps=1e-12):
    return v / (jnp.linalg.norm(v) + eps)


def spectral_normed_weight(w, u, num_iters=1):
    # Mirrors the PyTorch helper: view as (-1, last_dim), 1-step power iteration.
    w_shape = w.shape
    w_mat = w.reshape(-1, w_shape[-1])
    u_ = u
    for _ in range(num_iters):
        v_ = _l2normalize(jnp.matmul(u_, w_mat.T))
        u_ = _l2normalize(jnp.matmul(v_, w_mat))
    sigma = jnp.squeeze(jnp.matmul(jnp.matmul(v_, w_mat), u_.T))
    return (w_mat / sigma).reshape(w_shape)


def init_params(key, in_channels, sn=True):
    C = in_channels
    C8 = C // 8 or 4
    Cg = C // 2 or 16
    keys = jax.random.split(key, 12)

    def make_conv(kw, kb, ku, cin, cout):
        w = jax.random.normal(kw, (cout, cin, 1, 1, 1), jnp.float32) * 0.1
        b = jax.random.normal(kb, (cout,), jnp.float32) * 0.01
        if sn:
            u = jax.random.normal(ku, (1, w.shape[-1]), jnp.float32)
            w = spectral_normed_weight(w, u, num_iters=1)
        return w, b

    tw, tb = make_conv(keys[0], keys[1], keys[2], C, C8)
    pw, pb = make_conv(keys[3], keys[4], keys[5], C, C8)
    gw, gb = make_conv(keys[6], keys[7], keys[8], C, Cg)
    cw, cb = make_conv(keys[9], keys[10], keys[11], Cg, C)
    return dict(theta_w=tw, theta_b=tb, phi_w=pw, phi_b=pb,
                g_w=gw, g_b=gb, conv_w=cw, conv_b=cb)


# ---------------------------------------------------------------------------
# Tile-size helpers
# ---------------------------------------------------------------------------
def _pick_l_tile(L, B, per_tl_bytes, budget):
    """Largest lane-dense L tile that fits ~1/3 of the VMEM budget."""
    divisors = [c for c in (16384, 8192, 4096, 2048, 1024, 512, 256, 128)
                if c <= L and L % c == 0]
    if not divisors:
        return L                                     # full dim (non-divisible L)
    fitting = [c for c in divisors if c * per_tl_bytes <= budget // 3]
    cands = fitting or [divisors[-1]]
    if B < 2:
        # keep >=2 grid steps for megacore when B alone doesn't provide them
        for c in cands:
            if L // c >= 2:
                return c
    return cands[0]


def _attn_tiles(B, L, Lp, C8, Cg, itemsize, budget):
    """Pick (TLq, TLk) so score/prob tiles + blocks fit half the VMEM budget."""
    def cands(n, cs):
        out = [c for c in cs if c <= n and n % c == 0]
        return out if out else [n]

    q_cands = cands(L, (1024, 512, 256, 128))
    k_cands = cands(Lp, (4096, 2048, 1024, 512, 256, 128))

    def cost(tq, tk):
        # double-buffered blocks (theta/out lane-padded to 128; phi/g lane-dense)
        blocks = 2 * itemsize * (2 * tq * 128 + (max(C8, 8) + max(Cg, 8)) * tk)
        tiles = 3 * 4 * tq * tk            # s, p and one f32 temp
        scratch = 3 * 4 * tq * 128         # m, l, acc accumulators (lane-padded)
        return blocks + tiles + scratch

    for tq in q_cands:
        if B * (L // tq) < 2 and tq != q_cands[-1]:
            continue                       # keep both v7x TensorCores fed
        for tk in k_cands:
            if cost(tq, tk) <= budget // 2:
                return tq, tk
    return q_cands[-1], k_cands[-1]


# ---------------------------------------------------------------------------
# Pallas kernel 1: fused theta/phi/g projections, channels-first, lane-dense.
#   One matmul per tile:  y (Ctot, TL) = Wcat (Ctot, C) @ x (C, TL) + bcat
# ---------------------------------------------------------------------------
def _proj3_kernel(x_ref, w_ref, b_ref, th_ref, ph_ref, gg_ref, *, c8, cg):
    y = (jnp.dot(w_ref[...], x_ref[...], preferred_element_type=jnp.float32)
         + b_ref[...])
    th_ref[...] = y[:c8].astype(th_ref.dtype)
    ph_ref[...] = y[c8:2 * c8].astype(ph_ref.dtype)
    gg_ref[...] = y[2 * c8:2 * c8 + cg].astype(gg_ref.dtype)


def project_theta_phi_g(x_cf, params):
    # x_cf: (B, Cin, L) channels-first (free reshape of the NCDHW input).
    B, C, L = x_cf.shape
    C8 = params["theta_w"].shape[0]
    Cg = params["g_w"].shape[0]
    Ctot = 2 * C8 + Cg
    budget = _vmem_budget_bytes()
    itemsize = jnp.dtype(x_cf.dtype).itemsize
    per_tl = itemsize * 2 * C + 4 * (3 * Ctot)
    TL = _pick_l_tile(L, B, per_tl, budget)

    wcat = jnp.concatenate([params["theta_w"].reshape(C8, C),
                            params["phi_w"].reshape(C8, C),
                            params["g_w"].reshape(Cg, C)], axis=0)
    bcat = jnp.concatenate([params["theta_b"], params["phi_b"],
                            params["g_b"]]).reshape(Ctot, 1)

    kernel = functools.partial(_proj3_kernel, c8=C8, cg=Cg)
    return pl.pallas_call(
        kernel,
        out_shape=(jax.ShapeDtypeStruct((B, C8, L), x_cf.dtype),
                   jax.ShapeDtypeStruct((B, C8, L), x_cf.dtype),
                   jax.ShapeDtypeStruct((B, Cg, L), x_cf.dtype)),
        grid=(B, L // TL),
        in_specs=[
            pl.BlockSpec((None, C, TL), lambda b, l: (b, 0, l)),
            pl.BlockSpec((Ctot, C), lambda b, l: (0, 0)),
            pl.BlockSpec((Ctot, 1), lambda b, l: (0, 0)),
        ],
        out_specs=(
            pl.BlockSpec((None, C8, TL), lambda b, l: (b, 0, l)),
            pl.BlockSpec((None, C8, TL), lambda b, l: (b, 0, l)),
            pl.BlockSpec((None, Cg, TL), lambda b, l: (b, 0, l)),
        ),
        compiler_params=pltpu.CompilerParams(
            dimension_semantics=("parallel", "parallel"),
            vmem_limit_bytes=budget),
    )(x_cf, wcat, bcat)


# ---------------------------------------------------------------------------
# Pallas kernel 2: channels-first 1x1 conv (final Cg -> C conv), lane-dense.
# ---------------------------------------------------------------------------
def _conv_cf_kernel(x_ref, w_ref, b_ref, o_ref):
    o_ref[...] = (jnp.dot(w_ref[...], x_ref[...], preferred_element_type=jnp.float32)
                  + b_ref[...]).astype(o_ref.dtype)


def conv1x1_cf(x_cf, w2, b):
    # x_cf: (B, Cin, L); w2: (Cout, Cin); b: (Cout,).  Output (B, Cout, L).
    B, Cin, L = x_cf.shape
    Cout = w2.shape[0]
    budget = _vmem_budget_bytes()
    itemsize = jnp.dtype(x_cf.dtype).itemsize
    per_tl = itemsize * 2 * (Cin + Cout) + 4 * Cout
    TL = _pick_l_tile(L, B, per_tl, budget)
    return pl.pallas_call(
        _conv_cf_kernel,
        out_shape=jax.ShapeDtypeStruct((B, Cout, L), x_cf.dtype),
        grid=(B, L // TL),
        in_specs=[
            pl.BlockSpec((None, Cin, TL), lambda b, l: (b, 0, l)),
            pl.BlockSpec((Cout, Cin), lambda b, l: (0, 0)),
            pl.BlockSpec((Cout, 1), lambda b, l: (0, 0)),
        ],
        out_specs=pl.BlockSpec((None, Cout, TL), lambda b, l: (b, 0, l)),
        compiler_params=pltpu.CompilerParams(
            dimension_semantics=("parallel", "parallel"),
            vmem_limit_bytes=budget),
    )(x_cf, w2, b.reshape(Cout, 1))


# ---------------------------------------------------------------------------
# Pallas kernel 3: flash-style attention  softmax(theta @ phi^T) @ g
#   Grid (batch, q-tile, k-tile); phi/g arrive channels-first (lane-dense),
#   online-softmax accumulators live in VMEM scratch -> VMEM bounded by tiles.
# ---------------------------------------------------------------------------
def _attn_kernel(th_ref, ph_ref, g_ref, o_ref, m_sc, l_sc, acc_sc):
    kv = pl.program_id(2)

    @pl.when(kv == 0)
    def _():
        m_sc[...] = jnp.full_like(m_sc[...], -jnp.inf)
        l_sc[...] = jnp.zeros_like(l_sc[...])
        acc_sc[...] = jnp.zeros_like(acc_sc[...])

    # th: (TLq, C8), ph: (C8, TLk) -> scores (TLq, TLk), lane-dense key axis.
    s = jnp.dot(th_ref[...], ph_ref[...], preferred_element_type=jnp.float32)

    m_prev = m_sc[...]
    m_new = jnp.maximum(m_prev, jnp.max(s, axis=-1, keepdims=True))
    alpha = jnp.exp(m_prev - m_new)
    p = jnp.exp(s - m_new)
    l_sc[...] = alpha * l_sc[...] + jnp.sum(p, axis=-1, keepdims=True)

    g_blk = g_ref[...]                                   # (Cg, TLk), lane-dense
    # Cast probs to g's dtype (bf16 MXU path when inputs are bf16; exact f32
    # otherwise), accumulate in f32.
    pv = lax.dot_general(p.astype(g_blk.dtype), g_blk,
                         (((1,), (1,)), ((), ())),
                         preferred_element_type=jnp.float32)   # (TLq, Cg)
    acc_sc[...] = alpha * acc_sc[...] + pv
    m_sc[...] = m_new

    @pl.when(kv == pl.num_programs(2) - 1)
    def _():
        denom = l_sc[...]
        inv = pl.reciprocal(denom, approx=True)          # EUP slot
        inv = inv * (2.0 - denom * inv)                  # one Newton step
        # NOTE: the (TLq, Cg) store is lane-sparse (Cg < 128) but is tiny
        # relative to the per-tile exp/matmul work; keeping this orientation
        # preserves the torch .view byte order for the following conv without
        # an extra HBM transpose pass.
        o_ref[...] = (acc_sc[...] * inv).astype(o_ref.dtype)


def attention_pallas(theta_v, phi_t, g_t):
    # theta_v: (B, L, C8)  (torch-.view orientation, per-q-tile blocks are small)
    # phi_t:   (B, C8, Lp) channels-first (lane-dense key blocks)
    # g_t:     (B, Cg, Lp) channels-first (lane-dense value blocks)
    B, L, C8 = theta_v.shape
    Cg, Lp = g_t.shape[1], g_t.shape[2]
    budget = _vmem_budget_bytes()
    itemsize = jnp.dtype(theta_v.dtype).itemsize
    TLq, TLk = _attn_tiles(B, L, Lp, C8, Cg, itemsize, budget)

    return pl.pallas_call(
        _attn_kernel,
        out_shape=jax.ShapeDtypeStruct((B, L, Cg), theta_v.dtype),
        grid=(B, L // TLq, Lp // TLk),
        in_specs=[
            pl.BlockSpec((None, TLq, C8), lambda b, q, k: (b, q, 0)),
            pl.BlockSpec((None, C8, TLk), lambda b, q, k: (b, 0, k)),
            pl.BlockSpec((None, Cg, TLk), lambda b, q, k: (b, 0, k)),
        ],
        out_specs=pl.BlockSpec((None, TLq, Cg), lambda b, q, k: (b, q, 0)),
        scratch_shapes=[
            pltpu.VMEM((TLq, 1), jnp.float32),     # running max
            pltpu.VMEM((TLq, 1), jnp.float32),     # running denom
            pltpu.VMEM((TLq, Cg), jnp.float32),    # output accumulator
        ],
        compiler_params=pltpu.CompilerParams(
            dimension_semantics=("parallel", "parallel", "arbitrary"),
            vmem_limit_bytes=budget),
    )(theta_v, phi_t, g_t)


# ---------------------------------------------------------------------------
# Max pool (plain JAX glue on channels-first tensors)
# ---------------------------------------------------------------------------
def max_pool3d_2(x_cf5):
    # F.max_pool3d(kernel_size=(2,2,2), stride=2) on even-sized spatial dims.
    B, Cc, H, W, D = x_cf5.shape
    x = x_cf5.reshape(B, Cc, H // 2, 2, W // 2, 2, D // 2, 2)
    return x.max(axis=(3, 5, 7))


# ---------------------------------------------------------------------------
# Forward pass (matches sn_attention.forward with final_layer=False)
# ---------------------------------------------------------------------------
def sn_attention_forward(x, params, final_layer=False, return_pre_residual=False):
    B, C, H, W, D = x.shape
    L = H * W * D
    C8 = params["theta_w"].shape[0]
    Cg = params["g_w"].shape[0]
    if final_layer:
        # TODO(synk): final_layer path (kernel=2, stride=64 pool) gives
        # downsampled = L // 64**3 == 0 for realistic shapes; not implemented.
        raise NotImplementedError("final_layer=True path is not implemented")
    Lp = L // 8

    # Channels-first flatten of x: free row-major reshape, no transpose.
    x_cf = x.reshape(B, C, L)
    theta_cf, phi_cf, g_cf = project_theta_phi_g(x_cf, params)

    # torch .view semantics: raw (free) reshapes of channels-first buffers.
    theta_v = theta_cf.reshape(B, L, C8)
    phi_v = max_pool3d_2(phi_cf.reshape(B, C8, H, W, D)).reshape(B, Lp, C8)
    g_v = max_pool3d_2(g_cf.reshape(B, Cg, H, W, D)).reshape(B, Lp, Cg)
    # TODO(synk): the 2x2x2 max-pool of phi/g could be fused into the projection
    # kernel (pick TL as a multiple of 2*W*D and pool in-kernel) to save one HBM
    # round trip per tensor; kept in XLA for robustness.

    # Small layout-plumbing transposes (Lp*C8 / Lp*Cg elements only) so the
    # attention kernel sees lane-dense (C8, TLk)/(Cg, TLk) key/value blocks
    # instead of 8-32x lane-padded (TLk, 4)/(TLk, 16) ones.
    phi_t = jnp.swapaxes(phi_v, 1, 2)          # (B, C8, Lp)
    g_t = jnp.swapaxes(g_v, 1, 2)              # (B, Cg, Lp)

    attn_g = attention_pallas(theta_v, phi_t, g_t)       # (B, L, Cg)

    # torch .view(B, Cg, H, W, D) of the row-major (B, L, Cg) buffer == free reshape.
    attn_g_cf = attn_g.reshape(B, Cg, L)
    attn_out = conv1x1_cf(attn_g_cf, params["conv_w"].reshape(C, Cg),
                          params["conv_b"])              # (B, C, L)
    attn_out = attn_out.reshape(B, C, H, W, D)

    sigma = jnp.zeros((), dtype=x.dtype)   # fresh zero parameter, as in the PyTorch forward
    out = (x + sigma * attn_out) / (1 + sigma)
    if return_pre_residual:
        return out, attn_out
    return out


# ---------------------------------------------------------------------------
# Pure-JAX reference (no Pallas) for correctness check — mimics torch .view.
# ---------------------------------------------------------------------------
def _conv1x1_ref(x, w, b):
    w2 = w.reshape(w.shape[0], w.shape[1])
    return jnp.einsum("bchwd,oc->bohwd", x, w2) + b[None, :, None, None, None]


def reference_forward(x, params):
    B, C, H, W, D = x.shape
    L = H * W * D
    C8 = params["theta_w"].shape[0]
    Cg = params["g_w"].shape[0]
    Lp = L // 8
    theta = _conv1x1_ref(x, params["theta_w"], params["theta_b"]).reshape(B, L, C8)
    phi = max_pool3d_2(_conv1x1_ref(x, params["phi_w"], params["phi_b"])).reshape(B, Lp, C8)
    g = max_pool3d_2(_conv1x1_ref(x, params["g_w"], params["g_b"])).reshape(B, Lp, Cg)
    attn = jax.nn.softmax(jnp.einsum("blc,bmc->blm", theta, phi), axis=2)
    attn_g = jnp.einsum("blm,bmc->blc", attn, g).reshape(B, Cg, H, W, D)
    attn_g = _conv1x1_ref(attn_g, params["conv_w"], params["conv_b"])
    sigma = jnp.zeros((), x.dtype)
    return (x + sigma * attn_g) / (1 + sigma), attn_g


if __name__ == "__main__":
    key = jax.random.PRNGKey(0)
    kx, kp = jax.random.split(key)
    B, C, H, W, D = 2, 32, 8, 8, 8
    x = jax.random.normal(kx, (B, C, H, W, D), jnp.float32)
    params = init_params(kp, C, sn=True)

    fwd = jax.jit(lambda xx: sn_attention_forward(xx, params, return_pre_residual=True))
    out, attn_g = fwd(x)
    out = jax.block_until_ready(out)
    attn_g = jax.block_until_ready(attn_g)

    ref_out, ref_attn_g = reference_forward(x, params)
    assert out.shape == (B, C, H, W, D)
    # Validate the Pallas path numerically via the pre-residual attn_g (the
    # final output equals x exactly since sigma == 0 in the PyTorch forward).
    max_diff = float(jnp.max(jnp.abs(attn_g - ref_attn_g)))
    assert jnp.allclose(attn_g, ref_attn_g, atol=5e-3, rtol=5e-3), (
        f"attn_g mismatch vs reference (max abs diff {max_diff})")
    assert jnp.allclose(out, ref_out, atol=5e-3, rtol=5e-3), "output mismatch vs reference"
    assert jnp.allclose(out, x, atol=1e-6, rtol=1e-6), "sigma=0 residual identity violated"
    print("KERNEL_OK")
</pallas_src>

<mosaic_0001>
module attributes {stable_mosaic.version = 11 : i64} {
  func.func @_proj3_kernel(%arg0: i32, %arg1: i32, %arg2: memref<1x32x512xf32, #tpu.memory_space<vmem>>, %arg3: memref<24x32xf32, #tpu.memory_space<vmem>>, %arg4: memref<24x1xf32, #tpu.memory_space<vmem>>, %arg5: memref<1x4x512xf32, #tpu.memory_space<vmem>>, %arg6: memref<1x4x512xf32, #tpu.memory_space<vmem>>, %arg7: memref<1x16x512xf32, #tpu.memory_space<vmem>>) attributes {dimension_semantics = [#tpu.dimension_semantics<parallel>, #tpu.dimension_semantics<parallel>], iteration_bounds = array<i64: 2, 1>, scalar_prefetch = 0 : i64, scratch_operands = 0 : i64, tpu.core_type = #tpu.core_type<tc>, window_params = [{transform_indices = @transform_0, window_bounds = array<i64: 1, 32, 512>}, {pipeline_mode = #tpu.pipeline_mode<synchronous>, transform_indices = @transform_1, window_bounds = array<i64: 24, 32>}, {pipeline_mode = #tpu.pipeline_mode<synchronous>, transform_indices = @transform_2, window_bounds = array<i64: 24, 1>}, {transform_indices = @transform_3, window_bounds = array<i64: 1, 4, 512>}, {transform_indices = @transform_4, window_bounds = array<i64: 1, 4, 512>}, {transform_indices = @transform_5, window_bounds = array<i64: 1, 16, 512>}]} {
    %c0 = arith.constant 0 : index
    %c0_0 = arith.constant 0 : index
    %0 = vector.load %arg3[%c0, %c0_0] : memref<24x32xf32, #tpu.memory_space<vmem>>, vector<24x32xf32>
    %c0_1 = arith.constant 0 : index
    %c0_2 = arith.constant 0 : index
    %c0_3 = arith.constant 0 : index
    %1 = vector.load %arg2[%c0_1, %c0_2, %c0_3] : memref<1x32x512xf32, #tpu.memory_space<vmem>>, vector<1x32x512xf32>
    %2 = vector.shape_cast %1 : vector<1x32x512xf32> to vector<32x512xf32>
    %cst = arith.constant dense<0.000000e+00> : vector<24x512xf32>
    %3 = tpu.matmul %0, %2, %cst {dimension_numbers = #tpu.dot_dimension_numbers<[1], [0], [0], [1], [0, 0, 1, 1], [], []>} : vector<24x32xf32>, vector<32x512xf32>, vector<24x512xf32> -> vector<24x512xf32>
    %c0_4 = arith.constant 0 : index
    %c0_5 = arith.constant 0 : index
    %4 = vector.load %arg4[%c0_4, %c0_5] : memref<24x1xf32, #tpu.memory_space<vmem>>, vector<24x1xf32>
    %5 = vector.broadcast %4 : vector<24x1xf32> to vector<24x512xf32>
    %6 = arith.addf %3, %5 : vector<24x512xf32>
    %7 = vector.extract_strided_slice %6 {offsets = [0, 0], sizes = [4, 512], strides = [1, 1]} : vector<24x512xf32> to vector<4x512xf32>
    %c0_6 = arith.constant 0 : index
    %c0_7 = arith.constant 0 : index
    %c0_8 = arith.constant 0 : index
    %8 = vector.load %arg5[%c0_6, %c0_7, %c0_8] : memref<1x4x512xf32, #tpu.memory_space<vmem>>, vector<1x4x512xf32>
    %9 = vector.shape_cast %8 : vector<1x4x512xf32> to vector<4x512xf32>
    %10 = vector.shape_cast %7 : vector<4x512xf32> to vector<1x4x512xf32>
    tpu.vector_store %arg5[%c0_6, %c0_7, %c0_8], %10 {strides = array<i32>} : memref<1x4x512xf32, #tpu.memory_space<vmem>>, vector<1x4x512xf32>,
    %11 = vector.extract_strided_slice %6 {offsets = [4, 0], sizes = [4, 512], strides = [1, 1]} : vector<24x512xf32> to vector<4x512xf32>
    %c0_9 = arith.constant 0 : index
    %c0_10 = arith.constant 0 : index
    %c0_11 = arith.constant 0 : index
    %12 = vector.load %arg6[%c0_9, %c0_10, %c0_11] : memref<1x4x512xf32, #tpu.memory_space<vmem>>, vector<1x4x512xf32>
    %13 = vector.shape_cast %12 : vector<1x4x512xf32> to vector<4x512xf32>
    %14 = vector.shape_cast %11 : vector<4x512xf32> to vector<1x4x512xf32>
    tpu.vector_store %arg6[%c0_9, %c0_10, %c0_11], %14 {strides = array<i32>} : memref<1x4x512xf32, #tpu.memory_space<vmem>>, vector<1x4x512xf32>,
    %15 = vector.extract_strided_slice %6 {offsets = [8, 0], sizes = [16, 512], strides = [1, 1]} : vector<24x512xf32> to vector<16x512xf32>
    %c0_12 = arith.constant 0 : index
    %c0_13 = arith.constant 0 : index
    %c0_14 = arith.constant 0 : index
    %16 = vector.load %arg7[%c0_12, %c0_13, %c0_14] : memref<1x16x512xf32, #tpu.memory_space<vmem>>, vector<1x16x512xf32>
    %17 = vector.shape_cast %16 : vector<1x16x512xf32> to vector<16x512xf32>
    %18 = vector.shape_cast %15 : vector<16x512xf32> to vector<1x16x512xf32>
    tpu.vector_store %arg7[%c0_12, %c0_13, %c0_14], %18 {strides = array<i32>} : memref<1x16x512xf32, #tpu.memory_space<vmem>>, vector<1x16x512xf32>,
    return
  }
  func.func @transform_0(%arg0: i32, %arg1: i32) -> (i32, i32, i32) {
    %c0_i32 = arith.constant 0 : i32
    %c0_i32_0 = arith.constant 0 : i32
    return %arg0, %c0_i32, %arg1 : i32, i32, i32
  }
  func.func @transform_1(%arg0: i32, %arg1: i32) -> (i32, i32) {
    %c0_i32 = arith.constant 0 : i32
    %c0_i32_0 = arith.constant 0 : i32
    %c0_i32_1 = arith.constant 0 : i32
    return %c0_i32, %c0_i32_0 : i32, i32
  }
  func.func @transform_2(%arg0: i32, %arg1: i32) -> (i32, i32) {
    %c0_i32 = arith.constant 0 : i32
    %c0_i32_0 = arith.constant 0 : i32
    %c0_i32_1 = arith.constant 0 : i32
    return %c0_i32, %c0_i32_0 : i32, i32
  }
  func.func @transform_3(%arg0: i32, %arg1: i32) -> (i32, i32, i32) {
    %c0_i32 = arith.constant 0 : i32
    %c0_i32_0 = arith.constant 0 : i32
    return %arg0, %c0_i32, %arg1 : i32, i32, i32
  }
  func.func @transform_4(%arg0: i32, %arg1: i32) -> (i32, i32, i32) {
    %c0_i32 = arith.constant 0 : i32
    %c0_i32_0 = arith.constant 0 : i32
    return %arg0, %c0_i32, %arg1 : i32, i32, i32
  }
  func.func @transform_5(%arg0: i32, %arg1: i32) -> (i32, i32, i32) {
    %c0_i32 = arith.constant 0 : i32
    %c0_i32_0 = arith.constant 0 : i32
    return %arg0, %c0_i32, %arg1 : i32, i32, i32
  }
}

module attributes {stable_mosaic.version = 11 : i64} {
  func.func @_attn_kernel(%arg0: i32, %arg1: i32, %arg2: i32, %arg3: memref<1x512x4xf32, #tpu.memory_space<vmem>>, %arg4: memref<1x4x64xf32, #tpu.memory_space<vmem>>, %arg5: memref<1x16x64xf32, #tpu.memory_space<vmem>>, %arg6: memref<1x512x16xf32, #tpu.memory_space<vmem>>, %arg7: memref<512x1xf32, #tpu.memory_space<vmem>>, %arg8: memref<512x1xf32, #tpu.memory_space<vmem>>, %arg9: memref<512x16xf32, #tpu.memory_space<vmem>>) attributes {dimension_semantics = [#tpu.dimension_semantics<parallel>, #tpu.dimension_semantics<parallel>, #tpu.dimension_semantics<arbitrary>], iteration_bounds = array<i64: 2, 1, 1>, scalar_prefetch = 0 : i64, scratch_operands = 3 : i64, tpu.core_type = #tpu.core_type<tc>, window_params = [{transform_indices = @transform_0, window_bounds = array<i64: 1, 512, 4>}, {transform_indices = @transform_1, window_bounds = array<i64: 1, 4, 64>}, {transform_indices = @transform_2, window_bounds = array<i64: 1, 16, 64>}, {transform_indices = @transform_3, window_bounds = array<i64: 1, 512, 16>}]} {
    %c0_i32 = arith.constant 0 : i32
    %0 = arith.cmpi eq, %arg2, %c0_i32 : i32
    %1 = arith.extui %0 : i1 to i32
    %c0_i32_0 = arith.constant 0 : i32
    %2 = arith.cmpi ne, %1, %c0_i32_0 : i32
    scf.if %2 {
      %cst_26 = arith.constant 0xFF800000 : f32
      %35 = vector.broadcast %cst_26 : f32 to vector<512x1xf32>
      %c0_27 = arith.constant 0 : index
      %c0_28 = arith.constant 0 : index
      %36 = vector.load %arg7[%c0_27, %c0_28] : memref<512x1xf32, #tpu.memory_space<vmem>>, vector<512x1xf32>
      tpu.vector_store %arg7[%c0_27, %c0_28], %35 {strides = array<i32>} : memref<512x1xf32, #tpu.memory_space<vmem>>, vector<512x1xf32>,
      %cst_29 = arith.constant 0.000000e+00 : f32
      %37 = vector.broadcast %cst_29 : f32 to vector<512x1xf32>
      %c0_30 = arith.constant 0 : index
      %c0_31 = arith.constant 0 : index
      %38 = vector.load %arg8[%c0_30, %c0_31] : memref<512x1xf32, #tpu.memory_space<vmem>>, vector<512x1xf32>
      tpu.vector_store %arg8[%c0_30, %c0_31], %37 {strides = array<i32>} : memref<512x1xf32, #tpu.memory_space<vmem>>, vector<512x1xf32>,
      %cst_32 = arith.constant 0.000000e+00 : f32
      %39 = vector.broadcast %cst_32 : f32 to vector<512x16xf32>
      %c0_33 = arith.constant 0 : index
      %c0_34 = arith.constant 0 : index
      %40 = vector.load %arg9[%c0_33, %c0_34] : memref<512x16xf32, #tpu.memory_space<vmem>>, vector<512x16xf32>
      tpu.vector_store %arg9[%c0_33, %c0_34], %39 {strides = array<i32>} : memref<512x16xf32, #tpu.memory_space<vmem>>, vector<512x16xf32>,
    } else {
    }
    %c0 = arith.constant 0 : index
    %c0_1 = arith.constant 0 : index
    %c0_2 = arith.constant 0 : index
    %3 = vector.load %arg3[%c0, %c0_1, %c0_2] : memref<1x512x4xf32, #tpu.memory_space<vmem>>, vector<1x512x4xf32>
    %4 = vector.shape_cast %3 : vector<1x512x4xf32> to vector<512x4xf32>
    %c0_3 = arith.constant 0 : index
    %c0_4 = arith.constant 0 : index
    %c0_5 = arith.constant 0 : index
    %5 = vector.load %arg4[%c0_3, %c0_4, %c0_5] : memref<1x4x64xf32, #tpu.memory_space<vmem>>, vector<1x4x64xf32>
    %6 = vector.shape_cast %5 : vector<1x4x64xf32> to vector<4x64xf32>
    %cst = arith.constant dense<0.000000e+00> : vector<512x64xf32>
    %7 = tpu.matmul %4, %6, %cst {dimension_numbers = #tpu.dot_dimension_numbers<[1], [0], [0], [1], [0, 0, 1, 1], [], []>} : vector<512x4xf32>, vector<4x64xf32>, vector<512x64xf32> -> vector<512x64xf32>
    %c0_6 = arith.constant 0 : index
    %c0_7 = arith.constant 0 : index
    %8 = vector.load %arg7[%c0_6, %c0_7] : memref<512x1xf32, #tpu.memory_space<vmem>>, vector<512x1xf32>
    %cst_8 = arith.constant dense<0xFF800000> : vector<512xf32>
    %9 = vector.multi_reduction <maximumf>, %7, %cst_8 [1] : vector<512x64xf32> to vector<512xf32>
    %10 = vector.shape_cast %9 : vector<512xf32> to vector<512x1xf32>
    %11 = arith.maximumf %8, %10 : vector<512x1xf32>
    %12 = arith.subf %8, %11 : vector<512x1xf32>
    %13 = math.exp %12 : vector<512x1xf32>
    %14 = vector.broadcast %11 : vector<512x1xf32> to vector<512x64xf32>
    %15 = arith.subf %7, %14 : vector<512x64xf32>
    %16 = math.exp %15 : vector<512x64xf32>
    %c0_9 = arith.constant 0 : index
    %c0_10 = arith.constant 0 : index
    %17 = vector.load %arg8[%c0_9, %c0_10] : memref<512x1xf32, #tpu.memory_space<vmem>>, vector<512x1xf32>
    %18 = arith.mulf %13, %17 : vector<512x1xf32>
    %cst_11 = arith.constant dense<0.000000e+00> : vector<512xf32>
    %19 = vector.multi_reduction <add>, %16, %cst_11 [1] : vector<512x64xf32> to vector<512xf32>
    %20 = vector.shape_cast %19 : vector<512xf32> to vector<512x1xf32>
    %21 = arith.addf %18, %20 : vector<512x1xf32>
    %c0_12 = arith.constant 0 : index
    %c0_13 = arith.constant 0 : index
    %22 = vector.load %arg8[%c0_12, %c0_13] : memref<512x1xf32, #tpu.memory_space<vmem>>, vector<512x1xf32>
    tpu.vector_store %arg8[%c0_12, %c0_13], %21 {strides = array<i32>} : memref<512x1xf32, #tpu.memory_space<vmem>>, vector<512x1xf32>,
    %c0_14 = arith.constant 0 : index
    %c0_15 = arith.constant 0 : index
    %c0_16 = arith.constant 0 : index
    %23 = vector.load %arg5[%c0_14, %c0_15, %c0_16] : memref<1x16x64xf32, #tpu.memory_space<vmem>>, vector<1x16x64xf32>
    %24 = vector.shape_cast %23 : vector<1x16x64xf32> to vector<16x64xf32>
    %cst_17 = arith.constant dense<0.000000e+00> : vector<512x16xf32>
    %25 = tpu.matmul %16, %24, %cst_17 {dimension_numbers = #tpu.dot_dimension_numbers<[1], [1], [0], [0], [0, 0, 1, 0], [], []>} : vector<512x64xf32>, vector<16x64xf32>, vector<512x16xf32> -> vector<512x16xf32>
    %c0_18 = arith.constant 0 : index
    %c0_19 = arith.constant 0 : index
    %26 = vector.load %arg9[%c0_18, %c0_19] : memref<512x16xf32, #tpu.memory_space<vmem>>, vector<512x16xf32>
    %27 = vector.broadcast %13 : vector<512x1xf32> to vector<512x16xf32>
    %28 = arith.mulf %27, %26 : vector<512x16xf32>
    %29 = arith.addf %28, %25 : vector<512x16xf32>
    %c0_20 = arith.constant 0 : index
    %c0_21 = arith.constant 0 : index
    %30 = vector.load %arg9[%c0_20, %c0_21] : memref<512x16xf32, #tpu.memory_space<vmem>>, vector<512x16xf32>
    tpu.vector_store %arg9[%c0_20, %c0_21], %29 {strides = array<i32>} : memref<512x16xf32, #tpu.memory_space<vmem>>, vector<512x16xf32>,
    %c0_22 = arith.constant 0 : index
    %c0_23 = arith.constant 0 : index
    %31 = vector.load %arg7[%c0_22, %c0_23] : memref<512x1xf32, #tpu.memory_space<vmem>>, vector<512x1xf32>
    tpu.vector_store %arg7[%c0_22, %c0_23], %11 {strides = array<i32>} : memref<512x1xf32, #tpu.memory_space<vmem>>, vector<512x1xf32>,
    %c0_i32_24 = arith.constant 0 : i32
    %32 = arith.cmpi eq, %arg2, %c0_i32_24 : i32
    %33 = arith.extui %32 : i1 to i32
    %c0_i32_25 = arith.constant 0 : i32
    %34 = arith.cmpi ne, %33, %c0_i32_25 : i32
    scf.if %34 {
      %c0_26 = arith.constant 0 : index
      %c0_27 = arith.constant 0 : index
      %35 = vector.load %arg8[%c0_26, %c0_27] : memref<512x1xf32, #tpu.memory_space<vmem>>, vector<512x1xf32>
      %36 = tpu.reciprocal %35 {approx = true} : vector<512x1xf32> -> vector<512x1xf32>
      %37 = arith.mulf %35, %36 : vector<512x1xf32>
      %cst_28 = arith.constant 2.000000e+00 : f32
      %38 = vector.broadcast %cst_28 : f32 to vector<512x1xf32>
      %39 = arith.subf %38, %37 : vector<512x1xf32>
      %40 = arith.mulf %36, %39 : vector<512x1xf32>
      %c0_29 = arith.constant 0 : index
      %c0_30 = arith.constant 0 : index
      %41 = vector.load %arg9[%c0_29, %c0_30] : memref<512x16xf32, #tpu.memory_space<vmem>>, vector<512x16xf32>
      %42 = vector.broadcast %40 : vector<512x1xf32> to vector<512x16xf32>
      %43 = arith.mulf %41, %42 : vector<512x16xf32>
      %c0_31 = arith.constant 0 : index
      %c0_32 = arith.constant 0 : index
      %c0_33 = arith.constant 0 : index
      %44 = vector.load %arg6[%c0_31, %c0_32, %c0_33] : memref<1x512x16xf32, #tpu.memory_space<vmem>>, vector<1x512x16xf32>
      %45 = vector.shape_cast %44 : vector<1x512x16xf32> to vector<512x16xf32>
      %46 = vector.shape_cast %43 : vector<512x16xf32> to vector<1x512x16xf32>
      tpu.vector_store %arg6[%c0_31, %c0_32, %c0_33], %46 {strides = array<i32>} : memref<1x512x16xf32, #tpu.memory_space<vmem>>, vector<1x512x16xf32>,
    } else {
    }
    return
  }
  func.func @transform_0(%arg0: i32, %arg1: i32, %arg2: i32) -> (i32, i32, i32) {
    %c0_i32 = arith.constant 0 : i32
    %c0_i32_0 = arith.constant 0 : i32
    return %arg0, %arg1, %c0_i32 : i32, i32, i32
  }
  func.func @transform_1(%arg0: i32, %arg1: i32, %arg2: i32) -> (i32, i32, i32) {
    %c0_i32 = arith.constant 0 : i32
    %c0_i32_0 = arith.constant 0 : i32
    return %arg0, %c0_i32, %arg2 : i32, i32, i32
  }
  func.func @transform_2(%arg0: i32, %arg1: i32, %arg2: i32) -> (i32, i32, i32) {
    %c0_i32 = arith.constant 0 : i32
    %c0_i32_0 = arith.constant 0 : i32
    return %arg0, %c0_i32, %arg2 : i32, i32, i32
  }
  func.func @transform_3(%arg0: i32, %arg1: i32, %arg2: i32) -> (i32, i32, i32) {
    %c0_i32 = arith.constant 0 : i32
    %c0_i32_0 = arith.constant 0 : i32
    return %arg0, %arg1, %c0_i32 : i32, i32, i32
  }
}

module attributes {stable_mosaic.version = 11 : i64} {
  func.func @_conv_cf_kernel(%arg0: i32, %arg1: i32, %arg2: memref<1x16x512xf32, #tpu.memory_space<vmem>>, %arg3: memref<32x16xf32, #tpu.memory_space<vmem>>, %arg4: memref<32x1xf32, #tpu.memory_space<vmem>>, %arg5: memref<1x32x512xf32, #tpu.memory_space<vmem>>) attributes {dimension_semantics = [#tpu.dimension_semantics<parallel>, #tpu.dimension_semantics<parallel>], iteration_bounds = array<i64: 2, 1>, scalar_prefetch = 0 : i64, scratch_operands = 0 : i64, tpu.core_type = #tpu.core_type<tc>, window_params = [{transform_indices = @transform_0, window_bounds = array<i64: 1, 16, 512>}, {pipeline_mode = #tpu.pipeline_mode<synchronous>, transform_indices = @transform_1, window_bounds = array<i64: 32, 16>}, {pipeline_mode = #tpu.pipeline_mode<synchronous>, transform_indices = @transform_2, window_bounds = array<i64: 32, 1>}, {transform_indices = @transform_3, window_bounds = array<i64: 1, 32, 512>}]} {
    %c0 = arith.constant 0 : index
    %c0_0 = arith.constant 0 : index
    %0 = vector.load %arg3[%c0, %c0_0] : memref<32x16xf32, #tpu.memory_space<vmem>>, vector<32x16xf32>
    %c0_1 = arith.constant 0 : index
    %c0_2 = arith.constant 0 : index
    %c0_3 = arith.constant 0 : index
    %1 = vector.load %arg2[%c0_1, %c0_2, %c0_3] : memref<1x16x512xf32, #tpu.memory_space<vmem>>, vector<1x16x512xf32>
    %2 = vector.shape_cast %1 : vector<1x16x512xf32> to vector<16x512xf32>
    %cst = arith.constant dense<0.000000e+00> : vector<32x512xf32>
    %3 = tpu.matmul %0, %2, %cst {dimension_numbers = #tpu.dot_dimension_numbers<[1], [0], [0], [1], [0, 0, 1, 1], [], []>} : vector<32x16xf32>, vector<16x512xf32>, vector<32x512xf32> -> vector<32x512xf32>
    %c0_4 = arith.constant 0 : index
    %c0_5 = arith.constant 0 : index
    %4 = vector.load %arg4[%c0_4, %c0_5] : memref<32x1xf32, #tpu.memory_space<vmem>>, vector<32x1xf32>
    %5 = vector.broadcast %4 : vector<32x1xf32> to vector<32x512xf32>
    %6 = arith.addf %3, %5 : vector<32x512xf32>
    %c0_6 = arith.constant 0 : index
    %c0_7 = arith.constant 0 : index
    %c0_8 = arith.constant 0 : index
    %7 = vector.load %arg5[%c0_6, %c0_7, %c0_8] : memref<1x32x512xf32, #tpu.memory_space<vmem>>, vector<1x32x512xf32>
    %8 = vector.shape_cast %7 : vector<1x32x512xf32> to vector<32x512xf32>
    %9 = vector.shape_cast %6 : vector<32x512xf32> to vector<1x32x512xf32>
    tpu.vector_store %arg5[%c0_6, %c0_7, %c0_8], %9 {strides = array<i32>} : memref<1x32x512xf32, #tpu.memory_space<vmem>>, vector<1x32x512xf32>,
    return
  }
  func.func @transform_0(%arg0: i32, %arg1: i32) -> (i32, i32, i32) {
    %c0_i32 = arith.constant 0 : i32
    %c0_i32_0 = arith.constant 0 : i32
    return %arg0, %c0_i32, %arg1 : i32, i32, i32
  }
  func.func @transform_1(%arg0: i32, %arg1: i32) -> (i32, i32) {
    %c0_i32 = arith.constant 0 : i32
    %c0_i32_0 = arith.constant 0 : i32
    %c0_i32_1 = arith.constant 0 : i32
    return %c0_i32, %c0_i32_0 : i32, i32
  }
  func.func @transform_2(%arg0: i32, %arg1: i32) -> (i32, i32) {
    %c0_i32 = arith.constant 0 : i32
    %c0_i32_0 = arith.constant 0 : i32
    %c0_i32_1 = arith.constant 0 : i32
    return %c0_i32, %c0_i32_0 : i32, i32
  }
  func.func @transform_3(%arg0: i32, %arg1: i32) -> (i32, i32, i32) {
    %c0_i32 = arith.constant 0 : i32
    %c0_i32_0 = arith.constant 0 : i32
    return %arg0, %c0_i32, %arg1 : i32, i32, i32
  }
}

</mosaic_0001>

<llo_original>
// kernel: _lambda_.3
$region0: #{_lambda_.3}
  #allocation0 [shape = 'u32[]', space=smem, size = 0x4, offset = 0x4, fixed_abs, tag = 'smem constant byte address 0x4 - core index']
  #allocation1 [shape = 'u32[144,128]{1,0:T(1,128)}', space=vmem, size = 0x12000, scoped, tag = 'internal scratch']
  %s0 = inlined_call_operand.vmem [shape: f32[2,32,512], index: 0, kind: input, shape index: {}]
  %s1 = inlined_call_operand.vmem [shape: f32[24,32], index: 1, kind: input, shape index: {}]
  %s2 = inlined_call_operand.vmem [shape: f32[24,1], index: 2, kind: input, shape index: {}]
  %s3 = inlined_call_operand.vmem [shape: f32[2,4,512], index: 3, kind: output, shape index: {0}]
  %s4 = inlined_call_operand.vmem [shape: f32[2,4,512], index: 4, kind: output, shape index: {1}]
  %s5 = inlined_call_operand.vmem [shape: f32[2,16,512], index: 5, kind: output, shape index: {2}]
  %6 = xla_tuple %s3, %s4, %s5
  %s7 = sld [smem:[#allocation0]]
  $region61: #{_lambda_.3} parent=0
    _
  %s9 = ssub.s32 1, %s7
  %s10 = scalar_select 0, %s9, %s7
  loop: start=0, step=1, limit=4
  $region2: #{_lambda_.3} parent=0 // loop_pre_header
    _
  $region3: #{_lambda_.3} parent=0 // loop_header
    %s12 = sphi 0, %s16
    %p13 = scmp.ge.s32.totalorder %s12, 4
    %s19 = sphi 0, %s31
    %s20 = sphi 0, %s27
    %s21 = sphi 0, %s19
    %s22 = sphi 0, %s20
    %s23 = sphi 0, %s21
    %s24 = sphi 0, %s22
    %s36 = sphi 0, %s38
    %s39 = sphi 0, %s36
    %s40 = sphi 0, %s39
    %s56 = sphi 0, %s40
    %s60 = sphi 0, %s60
    %s62 = sphi 0, %s60
    %s63 = sphi 0, %s62
    %s77 = sphi 0, %s63
    %s81 = sphi 0, %s81
    %s83 = sphi 0, %s81
    %s84 = sphi 0, %s83
    %s98 = sphi 0, %s84
    %s106 = sphi 0, %s108
    %s109 = sphi 0, %s106
    %s110 = sphi 0, %s109
    %s126 = sphi 0, %s110
    %s134 = sphi 0, %s136
    %s137 = sphi 0, %s134
    %s138 = sphi 0, %s137
    %s154 = sphi 0, %s138
    %s162 = sphi 0, %s164
    %s165 = sphi 0, %s162
    %s166 = sphi 0, %s165
    %s182 = sphi 0, %s166
  $region4: #{_lambda_.3} parent=0 // loop_header_branch
    %15 = sbr.rel (%p13) target = $region8
  $region5: #{_lambda_.3} parent=0 // loop_body
    %s17 = ssub.s32 %s12, 1
    %s18 = ssub.s32 %s12, 2
    %s25 = sadd.s32 1, %s20
    %p26 = scmp.ge.s32.totalorder %s25, 1
    %s27 = scalar_select %p26, 0, %s25
    %s28 = sadd.s32 1, %s19
    %s29 = scalar_select %p26, %s28, %s19
    %p30 = scmp.ge.s32.totalorder %s29, 2
    %s31 = scalar_select %p30, 0, %s29
    %s32 = ssub.s32 %s19, %s31
    %s33 = ssub.s32 %s20, %s27
    %s34 = sor.u32 %s32, %s33
    %p35 = scmp.eq.s32.totalorder %s34, 0
    %s37 = sadd.s32 %s36, 1
    %s38 = scalar_select %p35, %s36, %s37
    %p41 = pneg %p35
    %p42 = scmp.eq.s32.totalorder %s12, 1
    %p43 = por %p41, %p42
    %p44 = scmp.ne.s32.totalorder %s36, %s39
    %p45 = scmp.eq.s32.totalorder %s12, 0
    %p46 = por %p44, %p45
    %p47 = scmp.ne.s32.totalorder %s36, %s39
    %p48 = scmp.eq.s32.totalorder %s17, 1
    %p49 = por %p47, %p48
    %p50 = scmp.ne.s32.totalorder %s39, %s40
    %p51 = scmp.eq.s32.totalorder %s17, 0
    %p52 = por %p50, %p51
    %p53 = scmp.ne.s32.totalorder %s39, %s40
    %p54 = scmp.eq.s32.totalorder %s18, 1
    %p55 = por %p53, %p54
    %p57 = scmp.ne.s32.totalorder %s40, %s56
    %p58 = scmp.eq.s32.totalorder %s18, 0
    %p59 = por %p57, %p58
    %s61 = sadd.s32 %s60, 1
    %p64 = scmp.eq.s32.totalorder %s12, 1
    %p65 = scmp.ne.s32.totalorder %s60, %s62
    %p66 = scmp.eq.s32.totalorder %s12, 0
    %p67 = por %p65, %p66
    %p68 = scmp.ne.s32.totalorder %s60, %s62
    %p69 = scmp.eq.s32.totalorder %s17, 1
    %p70 = por %p68, %p69
    %p71 = scmp.ne.s32.totalorder %s62, %s63
    %p72 = scmp.eq.s32.totalorder %s17, 0
    %p73 = por %p71, %p72
    %p74 = scmp.ne.s32.totalorder %s62, %s63
    %p75 = scmp.eq.s32.totalorder %s18, 1
    %p76 = por %p74, %p75
    %p78 = scmp.ne.s32.totalorder %s63, %s77
    %p79 = scmp.eq.s32.totalorder %s18, 0
    %p80 = por %p78, %p79
    %s82 = sadd.s32 %s81, 1
    %p85 = scmp.eq.s32.totalorder %s12, 1
    %p86 = scmp.ne.s32.totalorder %s81, %s83
    %p87 = scmp.eq.s32.totalorder %s12, 0
    %p88 = por %p86, %p87
    %p89 = scmp.ne.s32.totalorder %s81, %s83
    %p90 = scmp.eq.s32.totalorder %s17, 1
    %p91 = por %p89, %p90
    %p92 = scmp.ne.s32.totalorder %s83, %s84
    %p93 = scmp.eq.s32.totalorder %s17, 0
    %p94 = por %p92, %p93
    %p95 = scmp.ne.s32.totalorder %s83, %s84
    %p96 = scmp.eq.s32.totalorder %s18, 1
    %p97 = por %p95, %p96
    %p99 = scmp.ne.s32.totalorder %s84, %s98
    %p100 = scmp.eq.s32.totalorder %s18, 0
    %p101 = por %p99, %p100
    %s102 = ssub.s32 %s19, %s31
    %s103 = ssub.s32 %s20, %s27
    %s104 = sor.u32 %s102, %s103
    %p105 = scmp.eq.s32.totalorder %s104, 0
    %s107 = sadd.s32 %s106, 1
    %s108 = scalar_select %p105, %s106, %s107
    %p111 = pneg %p105
    %p112 = scmp.eq.s32.totalorder %s12, 1
    %p113 = por %p111, %p112
    %p114 = scmp.ne.s32.totalorder %s106, %s109
    %p115 = scmp.eq.s32.totalorder %s12, 0
    %p116 = por %p114, %p115
    %p117 = scmp.ne.s32.totalorder %s106, %s109
    %p118 = scmp.eq.s32.totalorder %s17, 1
    %p119 = por %p117, %p118
    %p120 = scmp.ne.s32.totalorder %s109, %s110
    %p121 = scmp.eq.s32.totalorder %s17, 0
    %p122 = por %p120, %p121
    %p123 = scmp.ne.s32.totalorder %s109, %s110
    %p124 = scmp.eq.s32.totalorder %s18, 1
    %p125 = por %p123, %p124
    %p127 = scmp.ne.s32.totalorder %s110, %s126
    %p128 = scmp.eq.s32.totalorder %s18, 0
    %p129 = por %p127, %p128
    %s130 = ssub.s32 %s19, %s31
    %s131 = ssub.s32 %s20, %s27
    %s132 = sor.u32 %s130, %s131
    %p133 = scmp.eq.s32.totalorder %s132, 0
    %s135 = sadd.s32 %s134, 1
    %s136 = scalar_select %p133, %s134, %s135
    %p139 = pneg %p133
    %p140 = scmp.eq.s32.totalorder %s12, 1
    %p141 = por %p139, %p140
    %p142 = scmp.ne.s32.totalorder %s134, %s137
    %p143 = scmp.eq.s32.totalorder %s12, 0
    %p144 = por %p142, %p143
    %p145 = scmp.ne.s32.totalorder %s134, %s137
    %p146 = scmp.eq.s32.totalorder %s17, 1
    %p147 = por %p145, %p146
    %p148 = scmp.ne.s32.totalorder %s137, %s138
    %p149 = scmp.eq.s32.totalorder %s17, 0
    %p150 = por %p148, %p149
    %p151 = scmp.ne.s32.totalorder %s137, %s138
    %p152 = scmp.eq.s32.totalorder %s18, 1
    %p153 = por %p151, %p152
    %p155 = scmp.ne.s32.totalorder %s138, %s154
    %p156 = scmp.eq.s32.totalorder %s18, 0
    %p157 = por %p155, %p156
    %s158 = ssub.s32 %s19, %s31
    %s159 = ssub.s32 %s20, %s27
    %s160 = sor.u32 %s158, %s159
    %p161 = scmp.eq.s32.totalorder %s160, 0
    %s163 = sadd.s32 %s162, 1
    %s164 = scalar_select %p161, %s162, %s163
    %p167 = pneg %p161
    %p168 = scmp.eq.s32.totalorder %s12, 1
    %p169 = por %p167, %p168
    %p170 = scmp.ne.s32.totalorder %s162, %s165
    %p171 = scmp.eq.s32.totalorder %s12, 0
    %p172 = por %p170, %p171
    %p173 = scmp.ne.s32.totalorder %s162, %s165
    %p174 = scmp.eq.s32.totalorder %s17, 1
    %p175 = por %p173, %p174
    %p176 = scmp.ne.s32.totalorder %s165, %s166
    %p177 = scmp.eq.s32.totalorder %s17, 0
    %p178 = por %p176, %p177
    %p179 = scmp.ne.s32.totalorder %s165, %s166
    %p180 = scmp.eq.s32.totalorder %s18, 1
    %p181 = por %p179, %p180
    %p183 = scmp.ne.s32.totalorder %s166, %s182
    %p184 = scmp.eq.s32.totalorder %s18, 0
    %p185 = por %p183, %p184
    %p186 = scmp.le.s32.totalorder 1, %s12
    %p187 = scmp.lt.s32.totalorder %s12, 3
    %p188 = pnand %p186, %p187
    %p189 = pneg %p188
    // Predicated region
    $region9: #{_lambda_.3} parent=5 // pred_check
      _
    $region10: #{_lambda_.3} parent=5 // pred_check_branch
      %191 = sbr.rel (%p188) target = $region12
    $region11: #{_lambda_.3} parent=5 // pred_region
      %s192 = ssub.s32 %s12, 1
      // Predicated region
      $region13: #{_lambda_.3} parent=11 // pred_check
        %p193 = pneg %p73
      $region14: #{_lambda_.3} parent=11 // pred_check_branch
        %195 = sbr.rel (%p193) target = $region16
      $region15: #{_lambda_.3} parent=11 // pred_region
        _
      $region16: #{_lambda_.3} parent=11 // pred_fallthru
        _
      // Predicated region
      $region17: #{_lambda_.3} parent=11 // pred_check
        %p196 = pneg %p94
      $region18: #{_lambda_.3} parent=11 // pred_check_branch
        %198 = sbr.rel (%p196) target = $region20
      $region19: #{_lambda_.3} parent=11 // pred_region
        _
      $region20: #{_lambda_.3} parent=11 // pred_fallthru
        _
    $region12: #{_lambda_.3} parent=5 // pred_fallthru
      _
    %p199 = scmp.lt.s32.totalorder %s12, 2
    // Predicated region
    $region21: #{_lambda_.3} parent=5 // pred_check
      %p200 = pneg %p199
    $region22: #{_lambda_.3} parent=5 // pred_check_branch
      %202 = sbr.rel (%p200) target = $region24
    $region23: #{_lambda_.3} parent=5 // pred_region
      // Predicated region
      $region25: #{_lambda_.3} parent=23 // pred_check
        %p203 = pneg %p46
      $region26: #{_lambda_.3} parent=23 // pred_check_branch
        %205 = sbr.rel (%p203) target = $region28
      $region27: #{_lambda_.3} parent=23 // pred_region
        %s206 = smul.u32 4, %s20
        %p207 = scmp.lt.s32.totalorder %s19, 1
        %s208 = scalar_select %p207, %s19, 1
        %p209 = scmp.lt.s32.totalorder %s206, 3
        %s210 = scalar_select %p209, %s206, 3
        %s211 = smul.addr %s208, 16
        %s212 = sadd.s32 %s210, %s211
        %s213 = smul.addr %s212, 8
        %s214 = scalar_lea.vmem %s0, %s213
        %s215 = smul.u32 4, %s20
      $region28: #{_lambda_.3} parent=23 // pred_fallthru
        _
    $region24: #{_lambda_.3} parent=5 // pred_fallthru
      _
    %p216 = scmp.le.s32.totalorder 1, %s12
    %p217 = scmp.lt.s32.totalorder %s12, 3
    %p218 = pnand %p216, %p217
    %p219 = pneg %p218
    // Predicated region
    $region29: #{_lambda_.3} parent=5 // pred_check
      _
    $region30: #{_lambda_.3} parent=5 // pred_check_branch
      %221 = sbr.rel (%p218) target = $region32
    $region31: #{_lambda_.3} parent=5 // pred_region
      %s222 = ssub.s32 %s12, 1
      %s223 = smul.u32 4, %s22
      %p224 = scmp.lt.s32.totalorder %s21, 1
      %s225 = scalar_select %p224, %s21, 1
      %p226 = scmp.lt.s32.totalorder %s223, 3
      %s227 = scalar_select %p226, %s223, 3
      %s228 = smul.addr %s225, 16
      %s229 = sadd.s32 %s227, %s228
      %s230 = smul.addr %s229, 8
      %s231 = scalar_lea.vmem %s0, %s230
      %p232 = pneg %p52
      %p233 = pneg %p49
      %p234 = pneg %p73
      %p235 = pneg %p70
      %p236 = pneg %p94
      %p237 = pneg %p91
      %p238 = pneg %p122
      %p239 = pneg %p119
      %s240 = smul.u32 4, %s22
      %p241 = scmp.lt.s32.totalorder %s21, 1
      %s242 = scalar_select %p241, %s21, 1
      %p243 = scmp.lt.s32.totalorder %s240, 3
      %s244 = scalar_select %p243, %s240, 3
      %s245 = smul.addr %s242, 4
      %s246 = sadd.s32 %s244, %s245
      %s247 = smul.addr %s246, 4
      %s248 = scalar_lea.vmem %s3, %s247
      %p249 = pneg %p150
      %p250 = pneg %p147
      %s251 = smul.u32 4, %s22
      %p252 = scmp.lt.s32.totalorder %s21, 1
      %s253 = scalar_select %p252, %s21, 1
      %p254 = scmp.lt.s32.totalorder %s251, 3
      %s255 = scalar_select %p254, %s251, 3
      %s256 = smul.addr %s253, 4
      %s257 = sadd.s32 %s255, %s256
      %s258 = smul.addr %s257, 4
      %s259 = scalar_lea.vmem %s4, %s258
      %p260 = pneg %p178
      %p261 = pneg %p175
      %s262 = smul.u32 4, %s22
      %p263 = scmp.lt.s32.totalorder %s21, 1
      %s264 = scalar_select %p263, %s21, 1
      %p265 = scmp.lt.s32.totalorder %s262, 3
      %s266 = scalar_select %p265, %s262, 3
      %s267 = smul.addr %s264, 8
      %s268 = sadd.s32 %s266, %s267
      %s269 = smul.addr %s268, 8
      %s270 = scalar_lea.vmem %s5, %s269
      %s271 = smul.u32 4, %s22
      %p272 = scmp.lt.s32.totalorder %s21, 1
      %s273 = scalar_select %p272, %s21, 1
      %p274 = scmp.lt.s32.totalorder %s271, 3
      %s275 = scalar_select %p274, %s271, 3
      %s276 = smul.addr %s273, 16
      %s277 = sadd.s32 %s275, %s276
      %s278 = smul.addr %s277, 8
      %s279 = scalar_lea.vmem %s0, %s278
      %s280 = smul.u32 4, %s22
      %s281 = smul.u32 4, %s22
      %p282 = scmp.lt.s32.totalorder %s21, 1
      %s283 = scalar_select %p282, %s21, 1
      %p284 = scmp.lt.s32.totalorder %s281, 3
      %s285 = scalar_select %p284, %s281, 3
      %s286 = smul.addr %s283, 4
      %s287 = sadd.s32 %s285, %s286
      %s288 = smul.addr %s287, 4
      %s289 = scalar_lea.vmem %s3, %s288
      %s290 = smul.u32 4, %s22
      %s291 = smul.u32 4, %s22
      %p292 = scmp.lt.s32.totalorder %s21, 1
      %s293 = scalar_select %p292, %s21, 1
      %p294 = scmp.lt.s32.totalorder %s291, 3
      %s295 = scalar_select %p294, %s291, 3
      %s296 = smul.addr %s293, 4
      %s297 = sadd.s32 %s295, %s296
      %s298 = smul.addr %s297, 4
      %s299 = scalar_lea.vmem %s4, %s298
      %s300 = smul.u32 4, %s22
      %s301 = smul.u32 4, %s22
      %p302 = scmp.lt.s32.totalorder %s21, 1
      %s303 = scalar_select %p302, %s21, 1
      %p304 = scmp.lt.s32.totalorder %s301, 3
      %s305 = scalar_select %p304, %s301, 3
      %s306 = smul.addr %s303, 8
      %s307 = sadd.s32 %s305, %s306
      %s308 = smul.addr %s307, 8
      %s309 = scalar_lea.vmem %s5, %s308
      %s310 = smul.u32 4, %s22
      %v311 = vld [vmem:[%s1] sm:$0xff]
      %v312 = vld [vmem:[%s1 + $0x8] sm:$0xff]
      %v313 = vld [vmem:[%s1 + $0x10] sm:$0xff]
      %v314 = vld [vmem:[%s279] sm:$0xff]
      %v315 = vld [vmem:[%s279 + $0x8] sm:$0xff]
      %v316 = vld [vmem:[%s279 + $0x10] sm:$0xff]
      %v317 = vld [vmem:[%s279 + $0x18] sm:$0xff]
      %v318 = vld [vmem:[%s279 + $0x20] sm:$0xff]
      %v319 = vld [vmem:[%s279 + $0x28] sm:$0xff]
      %v320 = vld [vmem:[%s279 + $0x30] sm:$0xff]
      %v321 = vld [vmem:[%s279 + $0x38] sm:$0xff]
      %v322 = vld [vmem:[%s279 + $0x40] sm:$0xff]
      %v323 = vld [vmem:[%s279 + $0x48] sm:$0xff]
      %v324 = vld [vmem:[%s279 + $0x50] sm:$0xff]
      %v325 = vld [vmem:[%s279 + $0x58] sm:$0xff]
      %v326 = vld [vmem:[%s279 + $0x60] sm:$0xff]
      %v327 = vld [vmem:[%s279 + $0x68] sm:$0xff]
      %v328 = vld [vmem:[%s279 + $0x70] sm:$0xff]
      %v329 = vld [vmem:[%s279 + $0x78] sm:$0xff]
      %v330 = vld [vmem:[%s2] sm:$0xff]
      %v331 = vld [vmem:[%s2 + $0x8] sm:$0xff]
      %v332 = vld [vmem:[%s2 + $0x10] sm:$0xff]
      %334 = vset.pattern.permute.xlu0 0
      %335 = vperm.xlu0 %334, %v330
      %v336 = vpop.permute.xlu0 %335
      %339 = vset.pattern.permute.xlu0 0
      %340 = vperm.xlu0 %339, %v331
      %v341 = vpop.permute.xlu0 %340
      %344 = vset.pattern.permute.xlu0 0
      %345 = vperm.xlu0 %344, %v332
      %v346 = vpop.permute.xlu0 %345
      %vm348 = vcmask 261120
      %v350 = vsel %vm348, %v311, 0
      %v353 = vsel %vm348, %v312, 0
      %v356 = vsel %vm348, %v313, 0
      %358 = vmatprep.subr.mxu0 %v315
      %359 = vmatpush1.msra.mxu0 %v314
      %360 = vmatprep.subr.mxu0 %v319
      %361 = vmatpush1.msra.mxu0 %v318
      %362 = vmatprep.subr.mxu0 %v323
      %363 = vmatpush1.msra.mxu0 %v322
      %364 = vmatprep.subr.mxu0 %v327
      %365 = vmatpush1.msra.mxu0 %v326
      %366 = vmatprep.subr.mxu0 0.0
      %367 = vmatpush1.msra.mxu0 0.0
      %368 = vmatprep.subr.mxu0 0.0
      %369 = vmatpush1.msra.mxu0 0.0
      %370 = vmatprep.subr.mxu0 0.0
      %371 = vmatpush1.msra.mxu0 0.0
      %372 = vmatprep.subr.mxu0 0.0
      %373 = vmatpush1.msra.mxu0 0.0
      %374 = vmatprep.subr.mxu0 0.0
      %375 = vmatpush1.msra.mxu0 0.0
      %376 = vmatprep.subr.mxu0 0.0
      %377 = vmatpush1.msra.mxu0 0.0
      %378 = vmatprep.subr.mxu0 0.0
      %379 = vmatpush1.msra.mxu0 0.0
      %380 = vmatprep.subr.mxu0 0.0
      %381 = vmatpush1.msra.mxu0 0.0
      %382 = vmatprep.subr.mxu0 0.0
      %383 = vmatpush1.msra.mxu0 0.0
      %384 = vmatprep.subr.mxu0 0.0
      %385 = vmatpush1.msra.mxu0 0.0
      %386 = vmatprep.subr.mxu0 0.0
      %387 = vmatpush1.msra.mxu0 0.0
      %388 = vmatprep.subr.mxu0 0.0
      %389 = vmatpush1.msra.mxu0 0.0
      %390 = vmatprep.subr.mxu0 0.0
      %391 = vmatpush1.msra.mxu0 0.0
      %392 = vmatprep.subr.mxu0 0.0
      %393 = vmatpush1.msra.mxu0 0.0
      %394 = vmatprep.subr.mxu0 0.0
      %395 = vmatpush1.msra.mxu0 0.0
      %396 = vmatprep.subr.mxu0 0.0
      %397 = vmatpush1.msra.mxu0 0.0
      %398 = vmatprep.subr.mxu0 0.0
      %399 = vmatpush1.msra.mxu0 0.0
      %400 = vmatprep.subr.mxu0 0.0
      %401 = vmatpush1.msra.mxu0 0.0
      %402 = vmatprep.subr.mxu0 0.0
      %403 = vmatpush1.msra.mxu0 0.0
      %404 = vmatprep.subr.mxu0 0.0
      %405 = vmatpush1.msra.mxu0 0.0
      %406 = vmatprep.subr.mxu0 0.0
      %407 = vmatpush1.msra.mxu0 0.0
      %408 = vmatprep.subr.mxu0 0.0
      %409 = vmatpush1.msra.mxu0 0.0
      %410 = vmatprep.subr.mxu0 0.0
      %411 = vmatpush1.msra.mxu0 0.0
      %412 = vmatprep.subr.mxu0 0.0
      %413 = vmatpush1.msra.mxu0 0.0
      %414 = vmatprep.subr.mxu0 0.0
      %415 = vmatpush1.msra.mxu0 0.0
      %416 = vmatprep.subr.mxu0 0.0
      %417 = vmatpush1.msra.mxu0 0.0
      %418 = vmatprep.subr.mxu0 0.0
      %419 = vmatpush1.msra.mxu0 0.0
      %420 = vmatprep.subr.mxu0 0.0
      %421 = vmatpush1.msra.mxu0 0.0
      %422 = vmatprep.mubr.f32.mxu0 0.0
      %423 = vmatmul.mubr.f32.gmra.mrb[0].mxu0 %v350
      %v424 = vpop.f32.mrb[0].mxu0
      %v425 = vadd.f32 %v336, %v424
      %v426 = vpop.f32.mrb[0].mxu0
      %v427 = vadd.f32 %v336, %v426
      %428 = vmatprep.mubr.f32.mxu0 0.0
      %429 = vmatmul.mubr.f32.gmra.mrb[0].mxu0 %v353
      %v430 = vpop.f32.mrb[0].mxu0
      %v431 = vadd.f32 %v341, %v430
      %v432 = vpop.f32.mrb[0].mxu0
      %v433 = vadd.f32 %v341, %v432
      %434 = vmatprep.mubr.f32.mxu0 0.0
      %435 = vmatmul.mubr.f32.gmra.mrb[0].mxu0 %v356
      %v436 = vpop.f32.mrb[0].mxu0
      %v437 = vadd.f32 %v346, %v436
      %v438 = vpop.f32.mrb[0].mxu0
      %v439 = vadd.f32 %v346, %v438
      %440 = vdwg.mxu0
      %441 = vmatprep.subr.mxu0 %v317
      %442 = vmatpush1.msra.mxu0 %v316
      %443 = vmatprep.subr.mxu0 %v321
      %444 = vmatpush1.msra.mxu0 %v320
      %445 = vmatprep.subr.mxu0 %v325
      %446 = vmatpush1.msra.mxu0 %v324
      %447 = vmatprep.subr.mxu0 %v329
      %448 = vmatpush1.msra.mxu0 %v328
      %449 = vmatprep.subr.mxu0 0.0
      %450 = vmatpush1.msra.mxu0 0.0
      %451 = vmatprep.subr.mxu0 0.0
      %452 = vmatpush1.msra.mxu0 0.0
      %453 = vmatprep.subr.mxu0 0.0
      %454 = vmatpush1.msra.mxu0 0.0
      %455 = vmatprep.subr.mxu0 0.0
      %456 = vmatpush1.msra.mxu0 0.0
      %457 = vmatprep.subr.mxu0 0.0
      %458 = vmatpush1.msra.mxu0 0.0
      %459 = vmatprep.subr.mxu0 0.0
      %460 = vmatpush1.msra.mxu0 0.0
      %461 = vmatprep.subr.mxu0 0.0
      %462 = vmatpush1.msra.mxu0 0.0
      %463 = vmatprep.subr.mxu0 0.0
      %464 = vmatpush1.msra.mxu0 0.0
      %465 = vmatprep.subr.mxu0 0.0
      %466 = vmatpush1.msra.mxu0 0.0
      %467 = vmatprep.subr.mxu0 0.0
      %468 = vmatpush1.msra.mxu0 0.0
      %469 = vmatprep.subr.mxu0 0.0
      %470 = vmatpush1.msra.mxu0 0.0
      %471 = vmatprep.subr.mxu0 0.0
      %472 = vmatpush1.msra.mxu0 0.0
      %473 = vmatprep.subr.mxu0 0.0
      %474 = vmatpush1.msra.mxu0 0.0
      %475 = vmatprep.subr.mxu0 0.0
      %476 = vmatpush1.msra.mxu0 0.0
      %477 = vmatprep.subr.mxu0 0.0
      %478 = vmatpush1.msra.mxu0 0.0
      %479 = vmatprep.subr.mxu0 0.0
      %480 = vmatpush1.msra.mxu0 0.0
      %481 = vmatprep.subr.mxu0 0.0
      %482 = vmatpush1.msra.mxu0 0.0
      %483 = vmatprep.subr.mxu0 0.0
      %484 = vmatpush1.msra.mxu0 0.0
      %485 = vmatprep.subr.mxu0 0.0
      %486 = vmatpush1.msra.mxu0 0.0
      %487 = vmatprep.subr.mxu0 0.0
      %488 = vmatpush1.msra.mxu0 0.0
      %489 = vmatprep.subr.mxu0 0.0
      %490 = vmatpush1.msra.mxu0 0.0
      %491 = vmatprep.subr.mxu0 0.0
      %492 = vmatpush1.msra.mxu0 0.0
      %493 = vmatprep.subr.mxu0 0.0
      %494 = vmatpush1.msra.mxu0 0.0
      %495 = vmatprep.subr.mxu0 0.0
      %496 = vmatpush1.msra.mxu0 0.0
      %497 = vmatprep.subr.mxu0 0.0
      %498 = vmatpush1.msra.mxu0 0.0
      %499 = vmatprep.subr.mxu0 0.0
      %500 = vmatpush1.msra.mxu0 0.0
      %501 = vmatprep.subr.mxu0 0.0
      %502 = vmatpush1.msra.mxu0 0.0
      %503 = vmatprep.subr.mxu0 0.0
      %504 = vmatpush1.msra.mxu0 0.0
      %505 = vmatprep.mubr.f32.mxu0 0.0
      %506 = vmatmul.mubr.f32.gmra.mrb[0].mxu0 %v350
      %v507 = vpop.f32.mrb[0].mxu0
      %v508 = vadd.f32 %v336, %v507
      %v509 = vpop.f32.mrb[0].mxu0
      %v510 = vadd.f32 %v336, %v509
      %511 = vmatprep.mubr.f32.mxu0 0.0
      %512 = vmatmul.mubr.f32.gmra.mrb[0].mxu0 %v353
      %v513 = vpop.f32.mrb[0].mxu0
      %v514 = vadd.f32 %v341, %v513
      %v515 = vpop.f32.mrb[0].mxu0
      %v516 = vadd.f32 %v341, %v515
      %517 = vmatprep.mubr.f32.mxu0 0.0
      %518 = vmatmul.mubr.f32.gmra.mrb[0].mxu0 %v356
      %v519 = vpop.f32.mrb[0].mxu0
      %v520 = vadd.f32 %v346, %v519
      %v521 = vpop.f32.mrb[0].mxu0
      %v522 = vadd.f32 %v346, %v521
      %523 = vdwg.mxu0
      %v528 = vcombine.low %v425, %v427
      %v529 = vcombine.low %v508, %v510
      %532 = vst [vmem:[%s289] sm:$0xff] %v528
      %533 = vst [vmem:[%s289 + $0x8] sm:$0xff] %v529
      %v534 = vcombine.high %v425, %v427
      %v535 = vcombine.high %v508, %v510
      %538 = vst [vmem:[%s299] sm:$0xff] %v534
      %539 = vst [vmem:[%s299 + $0x8] sm:$0xff] %v535
      %540 = vst [vmem:[%s309] sm:$0xff] %v431
      %541 = vst [vmem:[%s309 + $0x8] sm:$0xff] %v433
      %542 = vst [vmem:[%s309 + $0x10] sm:$0xff] %v514
      %543 = vst [vmem:[%s309 + $0x18] sm:$0xff] %v516
      %544 = vst [vmem:[%s309 + $0x20] sm:$0xff] %v437
      %545 = vst [vmem:[%s309 + $0x28] sm:$0xff] %v439
      %546 = vst [vmem:[%s309 + $0x30] sm:$0xff] %v520
      %547 = vst [vmem:[%s309 + $0x38] sm:$0xff] %v522
      %s548 = smul.u32 4, %s22
      %p549 = scmp.lt.s32.totalorder %s21, 1
      %s550 = scalar_select %p549, %s21, 1
      %p551 = scmp.lt.s32.totalorder %s548, 3
      %s552 = scalar_select %p551, %s548, 3
      %s553 = smul.addr %s550, 4
      %s554 = sadd.s32 %s552, %s553
      %s555 = smul.addr %s554, 4
      %s556 = scalar_lea.vmem %s3, %s555
      %s557 = smul.u32 4, %s22
      %p558 = scmp.lt.s32.totalorder %s21, 1
      %s559 = scalar_select %p558, %s21, 1
      %p560 = scmp.lt.s32.totalorder %s557, 3
      %s561 = scalar_select %p560, %s557, 3
      %s562 = smul.addr %s559, 4
      %s563 = sadd.s32 %s561, %s562
      %s564 = smul.addr %s563, 4
      %s565 = scalar_lea.vmem %s4, %s564
      %s566 = smul.u32 4, %s22
      %p567 = scmp.lt.s32.totalorder %s21, 1
      %s568 = scalar_select %p567, %s21, 1
      %p569 = scmp.lt.s32.totalorder %s566, 3
      %s570 = scalar_select %p569, %s566, 3
      %s571 = smul.addr %s568, 8
      %s572 = sadd.s32 %s570, %s571
      %s573 = smul.addr %s572, 8
      %s574 = scalar_lea.vmem %s5, %s573
      // Predicated region
      $region33: #{_lambda_.3} parent=31 // pred_check
        %p575 = pneg %p119
      $region34: #{_lambda_.3} parent=31 // pred_check_branch
        %577 = sbr.rel (%p575) target = $region36
      $region35: #{_lambda_.3} parent=31 // pred_region
        %s578 = smul.u32 4, %s22
      $region36: #{_lambda_.3} parent=31 // pred_fallthru
        _
      // Predicated region
      $region37: #{_lambda_.3} parent=31 // pred_check
        %p579 = pneg %p147
      $region38: #{_lambda_.3} parent=31 // pred_check_branch
        %581 = sbr.rel (%p579) target = $region40
      $region39: #{_lambda_.3} parent=31 // pred_region
        %s582 = smul.u32 4, %s22
      $region40: #{_lambda_.3} parent=31 // pred_fallthru
        _
      // Predicated region
      $region41: #{_lambda_.3} parent=31 // pred_check
        %p583 = pneg %p175
      $region42: #{_lambda_.3} parent=31 // pred_check_branch
        %585 = sbr.rel (%p583) target = $region44
      $region43: #{_lambda_.3} parent=31 // pred_region
        %s586 = smul.u32 4, %s22
      $region44: #{_lambda_.3} parent=31 // pred_fallthru
        _
    $region32: #{_lambda_.3} parent=5 // pred_fallthru
      _
    %p587 = scmp.le.s32.totalorder 2, %s12
    // Predicated region
    $region45: #{_lambda_.3} parent=5 // pred_check
      %p588 = pneg %p587
    $region46: #{_lambda_.3} parent=5 // pred_check_branch
      %590 = sbr.rel (%p588) target = $region48
    $region47: #{_lambda_.3} parent=5 // pred_region
      %s591 = ssub.s32 %s12, 2
      // Predicated region
      $region49: #{_lambda_.3} parent=47 // pred_check
        %p592 = pneg %p125
      $region50: #{_lambda_.3} parent=47 // pred_check_branch
        %594 = sbr.rel (%p592) target = $region52
      $region51: #{_lambda_.3} parent=47 // pred_region
        %s595 = smul.u32 4, %s24
        %p596 = scmp.lt.s32.totalorder %s23, 1
        %s597 = scalar_select %p596, %s23, 1
        %p598 = scmp.lt.s32.totalorder %s595, 3
        %s599 = scalar_select %p598, %s595, 3
        %s600 = smul.addr %s597, 4
        %s601 = sadd.s32 %s599, %s600
        %s602 = smul.addr %s601, 4
        %s603 = scalar_lea.vmem %s3, %s602
      $region52: #{_lambda_.3} parent=47 // pred_fallthru
        _
      // Predicated region
      $region53: #{_lambda_.3} parent=47 // pred_check
        %p604 = pneg %p153
      $region54: #{_lambda_.3} parent=47 // pred_check_branch
        %606 = sbr.rel (%p604) target = $region56
      $region55: #{_lambda_.3} parent=47 // pred_region
        %s607 = smul.u32 4, %s24
        %p608 = scmp.lt.s32.totalorder %s23, 1
        %s609 = scalar_select %p608, %s23, 1
        %p610 = scmp.lt.s32.totalorder %s607, 3
        %s611 = scalar_select %p610, %s607, 3
        %s612 = smul.addr %s609, 4
        %s613 = sadd.s32 %s611, %s612
        %s614 = smul.addr %s613, 4
        %s615 = scalar_lea.vmem %s4, %s614
      $region56: #{_lambda_.3} parent=47 // pred_fallthru
        _
      // Predicated region
      $region57: #{_lambda_.3} parent=47 // pred_check
        %p616 = pneg %p181
      $region58: #{_lambda_.3} parent=47 // pred_check_branch
        %618 = sbr.rel (%p616) target = $region60
      $region59: #{_lambda_.3} parent=47 // pred_region
        %s619 = smul.u32 4, %s24
        %p620 = scmp.lt.s32.totalorder %s23, 1
        %s621 = scalar_select %p620, %s23, 1
        %p622 = scmp.lt.s32.totalorder %s619, 3
        %s623 = scalar_select %p622, %s619, 3
        %s624 = smul.addr %s621, 8
        %s625 = sadd.s32 %s623, %s624
        %s626 = smul.addr %s625, 8
        %s627 = scalar_lea.vmem %s5, %s626
      $region60: #{_lambda_.3} parent=47 // pred_fallthru
        _
    $region48: #{_lambda_.3} parent=5 // pred_fallthru
      _
  $region6: #{_lambda_.3} parent=0 // loop_footer
    %s16 = sadd.s32 1, %s12
  $region7: #{_lambda_.3} parent=0 // loop_footer_branch
    %11 = sbr.rel target = $region3
  $region8: #{_lambda_.3} parent=0 // loop_exit
    _

// kernel: _lambda_.5
$region0: #{_lambda_.5}
  #allocation0 [shape = 'u32[]', space=smem, size = 0x4, offset = 0x4, fixed_abs, tag = 'smem constant byte address 0x4 - core index']
  #allocation1 [shape = 'u32[144,128]{1,0:T(1,128)}', space=vmem, size = 0x12000, scoped, tag = 'internal scratch']
  %s0 = inlined_call_operand.vmem [shape: f32[2,16,512], index: 0, kind: input, shape index: {}]
  %s1 = inlined_call_operand.vmem [shape: f32[32,16], index: 1, kind: input, shape index: {}]
  %s2 = inlined_call_operand.vmem [shape: f32[32,1], index: 2, kind: input, shape index: {}]
  %s3 = inlined_call_operand.vmem [shape: f32[2,32,512], index: 3, kind: output, shape index: {}]
  %s4 = sld [smem:[#allocation0]]
  $region45: #{_lambda_.5} parent=0
    _
  %s6 = ssub.s32 1, %s4
  %s7 = scalar_select 0, %s6, %s4
  loop: start=0, step=1, limit=4
  $region2: #{_lambda_.5} parent=0 // loop_pre_header
    _
  $region3: #{_lambda_.5} parent=0 // loop_header
    %s9 = sphi 0, %s13
    %p10 = scmp.ge.s32.totalorder %s9, 4
    %s16 = sphi 0, %s28
    %s17 = sphi 0, %s24
    %s18 = sphi 0, %s16
    %s19 = sphi 0, %s17
    %s20 = sphi 0, %s18
    %s21 = sphi 0, %s19
    %s33 = sphi 0, %s35
    %s36 = sphi 0, %s33
    %s37 = sphi 0, %s36
    %s53 = sphi 0, %s37
    %s57 = sphi 0, %s57
    %s59 = sphi 0, %s57
    %s60 = sphi 0, %s59
    %s74 = sphi 0, %s60
    %s78 = sphi 0, %s78
    %s80 = sphi 0, %s78
    %s81 = sphi 0, %s80
    %s95 = sphi 0, %s81
    %s103 = sphi 0, %s105
    %s106 = sphi 0, %s103
    %s107 = sphi 0, %s106
    %s123 = sphi 0, %s107
  $region4: #{_lambda_.5} parent=0 // loop_header_branch
    %12 = sbr.rel (%p10) target = $region8
  $region5: #{_lambda_.5} parent=0 // loop_body
    %s14 = ssub.s32 %s9, 1
    %s15 = ssub.s32 %s9, 2
    %s22 = sadd.s32 1, %s17
    %p23 = scmp.ge.s32.totalorder %s22, 1
    %s24 = scalar_select %p23, 0, %s22
    %s25 = sadd.s32 1, %s16
    %s26 = scalar_select %p23, %s25, %s16
    %p27 = scmp.ge.s32.totalorder %s26, 2
    %s28 = scalar_select %p27, 0, %s26
    %s29 = ssub.s32 %s16, %s28
    %s30 = ssub.s32 %s17, %s24
    %s31 = sor.u32 %s29, %s30
    %p32 = scmp.eq.s32.totalorder %s31, 0
    %s34 = sadd.s32 %s33, 1
    %s35 = scalar_select %p32, %s33, %s34
    %p38 = pneg %p32
    %p39 = scmp.eq.s32.totalorder %s9, 1
    %p40 = por %p38, %p39
    %p41 = scmp.ne.s32.totalorder %s33, %s36
    %p42 = scmp.eq.s32.totalorder %s9, 0
    %p43 = por %p41, %p42
    %p44 = scmp.ne.s32.totalorder %s33, %s36
    %p45 = scmp.eq.s32.totalorder %s14, 1
    %p46 = por %p44, %p45
    %p47 = scmp.ne.s32.totalorder %s36, %s37
    %p48 = scmp.eq.s32.totalorder %s14, 0
    %p49 = por %p47, %p48
    %p50 = scmp.ne.s32.totalorder %s36, %s37
    %p51 = scmp.eq.s32.totalorder %s15, 1
    %p52 = por %p50, %p51
    %p54 = scmp.ne.s32.totalorder %s37, %s53
    %p55 = scmp.eq.s32.totalorder %s15, 0
    %p56 = por %p54, %p55
    %s58 = sadd.s32 %s57, 1
    %p61 = scmp.eq.s32.totalorder %s9, 1
    %p62 = scmp.ne.s32.totalorder %s57, %s59
    %p63 = scmp.eq.s32.totalorder %s9, 0
    %p64 = por %p62, %p63
    %p65 = scmp.ne.s32.totalorder %s57, %s59
    %p66 = scmp.eq.s32.totalorder %s14, 1
    %p67 = por %p65, %p66
    %p68 = scmp.ne.s32.totalorder %s59, %s60
    %p69 = scmp.eq.s32.totalorder %s14, 0
    %p70 = por %p68, %p69
    %p71 = scmp.ne.s32.totalorder %s59, %s60
    %p72 = scmp.eq.s32.totalorder %s15, 1
    %p73 = por %p71, %p72
    %p75 = scmp.ne.s32.totalorder %s60, %s74
    %p76 = scmp.eq.s32.totalorder %s15, 0
    %p77 = por %p75, %p76
    %s79 = sadd.s32 %s78, 1
    %p82 = scmp.eq.s32.totalorder %s9, 1
    %p83 = scmp.ne.s32.totalorder %s78, %s80
    %p84 = scmp.eq.s32.totalorder %s9, 0
    %p85 = por %p83, %p84
    %p86 = scmp.ne.s32.totalorder %s78, %s80
    %p87 = scmp.eq.s32.totalorder %s14, 1
    %p88 = por %p86, %p87
    %p89 = scmp.ne.s32.totalorder %s80, %s81
    %p90 = scmp.eq.s32.totalorder %s14, 0
    %p91 = por %p89, %p90
    %p92 = scmp.ne.s32.totalorder %s80, %s81
    %p93 = scmp.eq.s32.totalorder %s15, 1
    %p94 = por %p92, %p93
    %p96 = scmp.ne.s32.totalorder %s81, %s95
    %p97 = scmp.eq.s32.totalorder %s15, 0
    %p98 = por %p96, %p97
    %s99 = ssub.s32 %s16, %s28
    %s100 = ssub.s32 %s17, %s24
    %s101 = sor.u32 %s99, %s100
    %p102 = scmp.eq.s32.totalorder %s101, 0
    %s104 = sadd.s32 %s103, 1
    %s105 = scalar_select %p102, %s103, %s104
    %p108 = pneg %p102
    %p109 = scmp.eq.s32.totalorder %s9, 1
    %p110 = por %p108, %p109
    %p111 = scmp.ne.s32.totalorder %s103, %s106
    %p112 = scmp.eq.s32.totalorder %s9, 0
    %p113 = por %p111, %p112
    %p114 = scmp.ne.s32.totalorder %s103, %s106
    %p115 = scmp.eq.s32.totalorder %s14, 1
    %p116 = por %p114, %p115
    %p117 = scmp.ne.s32.totalorder %s106, %s107
    %p118 = scmp.eq.s32.totalorder %s14, 0
    %p119 = por %p117, %p118
    %p120 = scmp.ne.s32.totalorder %s106, %s107
    %p121 = scmp.eq.s32.totalorder %s15, 1
    %p122 = por %p120, %p121
    %p124 = scmp.ne.s32.totalorder %s107, %s123
    %p125 = scmp.eq.s32.totalorder %s15, 0
    %p126 = por %p124, %p125
    %p127 = scmp.le.s32.totalorder 1, %s9
    %p128 = scmp.lt.s32.totalorder %s9, 3
    %p129 = pnand %p127, %p128
    %p130 = pneg %p129
    // Predicated region
    $region9: #{_lambda_.5} parent=5 // pred_check
      _
    $region10: #{_lambda_.5} parent=5 // pred_check_branch
      %132 = sbr.rel (%p129) target = $region12
    $region11: #{_lambda_.5} parent=5 // pred_region
      %s133 = ssub.s32 %s9, 1
      // Predicated region
      $region13: #{_lambda_.5} parent=11 // pred_check
        %p134 = pneg %p70
      $region14: #{_lambda_.5} parent=11 // pred_check_branch
        %136 = sbr.rel (%p134) target = $region16
      $region15: #{_lambda_.5} parent=11 // pred_region
        _
      $region16: #{_lambda_.5} parent=11 // pred_fallthru
        _
      // Predicated region
      $region17: #{_lambda_.5} parent=11 // pred_check
        %p137 = pneg %p91
      $region18: #{_lambda_.5} parent=11 // pred_check_branch
        %139 = sbr.rel (%p137) target = $region20
      $region19: #{_lambda_.5} parent=11 // pred_region
        _
      $region20: #{_lambda_.5} parent=11 // pred_fallthru
        _
    $region12: #{_lambda_.5} parent=5 // pred_fallthru
      _
    %p140 = scmp.lt.s32.totalorder %s9, 2
    // Predicated region
    $region21: #{_lambda_.5} parent=5 // pred_check
      %p141 = pneg %p140
    $region22: #{_lambda_.5} parent=5 // pred_check_branch
      %143 = sbr.rel (%p141) target = $region24
    $region23: #{_lambda_.5} parent=5 // pred_region
      // Predicated region
      $region25: #{_lambda_.5} parent=23 // pred_check
        %p144 = pneg %p43
      $region26: #{_lambda_.5} parent=23 // pred_check_branch
        %146 = sbr.rel (%p144) target = $region28
      $region27: #{_lambda_.5} parent=23 // pred_region
        %s147 = smul.u32 4, %s17
        %p148 = scmp.lt.s32.totalorder %s16, 1
        %s149 = scalar_select %p148, %s16, 1
        %p150 = scmp.lt.s32.totalorder %s147, 3
        %s151 = scalar_select %p150, %s147, 3
        %s152 = smul.addr %s149, 8
        %s153 = sadd.s32 %s151, %s152
        %s154 = smul.addr %s153, 8
        %s155 = scalar_lea.vmem %s0, %s154
        %s156 = smul.u32 4, %s17
      $region28: #{_lambda_.5} parent=23 // pred_fallthru
        _
    $region24: #{_lambda_.5} parent=5 // pred_fallthru
      _
    %p157 = scmp.le.s32.totalorder 1, %s9
    %p158 = scmp.lt.s32.totalorder %s9, 3
    %p159 = pnand %p157, %p158
    %p160 = pneg %p159
    // Predicated region
    $region29: #{_lambda_.5} parent=5 // pred_check
      _
    $region30: #{_lambda_.5} parent=5 // pred_check_branch
      %162 = sbr.rel (%p159) target = $region32
    $region31: #{_lambda_.5} parent=5 // pred_region
      %s163 = ssub.s32 %s9, 1
      %s164 = smul.u32 4, %s19
      %p165 = scmp.lt.s32.totalorder %s18, 1
      %s166 = scalar_select %p165, %s18, 1
      %p167 = scmp.lt.s32.totalorder %s164, 3
      %s168 = scalar_select %p167, %s164, 3
      %s169 = smul.addr %s166, 8
      %s170 = sadd.s32 %s168, %s169
      %s171 = smul.addr %s170, 8
      %s172 = scalar_lea.vmem %s0, %s171
      %p173 = pneg %p49
      %p174 = pneg %p46
      %p175 = pneg %p70
      %p176 = pneg %p67
      %p177 = pneg %p91
      %p178 = pneg %p88
      %p179 = pneg %p119
      %p180 = pneg %p116
      %s181 = smul.u32 4, %s19
      %p182 = scmp.lt.s32.totalorder %s18, 1
      %s183 = scalar_select %p182, %s18, 1
      %p184 = scmp.lt.s32.totalorder %s181, 3
      %s185 = scalar_select %p184, %s181, 3
      %s186 = smul.addr %s183, 16
      %s187 = sadd.s32 %s185, %s186
      %s188 = smul.addr %s187, 8
      %s189 = scalar_lea.vmem %s3, %s188
      %s190 = smul.u32 4, %s19
      %p191 = scmp.lt.s32.totalorder %s18, 1
      %s192 = scalar_select %p191, %s18, 1
      %p193 = scmp.lt.s32.totalorder %s190, 3
      %s194 = scalar_select %p193, %s190, 3
      %s195 = smul.addr %s192, 8
      %s196 = sadd.s32 %s194, %s195
      %s197 = smul.addr %s196, 8
      %s198 = scalar_lea.vmem %s0, %s197
      %s199 = smul.u32 4, %s19
      %s200 = smul.u32 4, %s19
      %p201 = scmp.lt.s32.totalorder %s18, 1
      %s202 = scalar_select %p201, %s18, 1
      %p203 = scmp.lt.s32.totalorder %s200, 3
      %s204 = scalar_select %p203, %s200, 3
      %s205 = smul.addr %s202, 16
      %s206 = sadd.s32 %s204, %s205
      %s207 = smul.addr %s206, 8
      %s208 = scalar_lea.vmem %s3, %s207
      %s209 = smul.u32 4, %s19
      %v210 = vld [vmem:[%s1] sm:$0xff]
      %v211 = vld [vmem:[%s1 + $0x8] sm:$0xff]
      %v212 = vld [vmem:[%s1 + $0x10] sm:$0xff]
      %v213 = vld [vmem:[%s1 + $0x18] sm:$0xff]
      %v214 = vld [vmem:[%s198] sm:$0xff]
      %v215 = vld [vmem:[%s198 + $0x8] sm:$0xff]
      %v216 = vld [vmem:[%s198 + $0x10] sm:$0xff]
      %v217 = vld [vmem:[%s198 + $0x18] sm:$0xff]
      %v218 = vld [vmem:[%s198 + $0x20] sm:$0xff]
      %v219 = vld [vmem:[%s198 + $0x28] sm:$0xff]
      %v220 = vld [vmem:[%s198 + $0x30] sm:$0xff]
      %v221 = vld [vmem:[%s198 + $0x38] sm:$0xff]
      %v222 = vld [vmem:[%s2] sm:$0xff]
      %v223 = vld [vmem:[%s2 + $0x8] sm:$0xff]
      %v224 = vld [vmem:[%s2 + $0x10] sm:$0xff]
      %v225 = vld [vmem:[%s2 + $0x18] sm:$0xff]
      %227 = vset.pattern.permute.xlu0 0
      %228 = vperm.xlu0 %227, %v222
      %v229 = vpop.permute.xlu0 %228
      %232 = vset.pattern.permute.xlu0 0
      %233 = vperm.xlu0 %232, %v223
      %v234 = vpop.permute.xlu0 %233
      %237 = vset.pattern.permute.xlu0 0
      %238 = vperm.xlu0 %237, %v224
      %v239 = vpop.permute.xlu0 %238
      %242 = vset.pattern.permute.xlu0 0
      %243 = vperm.xlu0 %242, %v225
      %v244 = vpop.permute.xlu0 %243
      %vm246 = vcmask 130048
      %v248 = vsel %vm246, %v210, 0
      %v251 = vsel %vm246, %v211, 0
      %v254 = vsel %vm246, %v212, 0
      %v257 = vsel %vm246, %v213, 0
      %259 = vmatprep.subr.mxu0 %v215
      %260 = vmatpush1.msra.mxu0 %v214
      %261 = vmatprep.subr.mxu0 %v219
      %262 = vmatpush1.msra.mxu0 %v218
      %263 = vmatprep.subr.mxu0 0.0
      %264 = vmatpush1.msra.mxu0 0.0
      %265 = vmatprep.subr.mxu0 0.0
      %266 = vmatpush1.msra.mxu0 0.0
      %267 = vmatprep.subr.mxu0 0.0
      %268 = vmatpush1.msra.mxu0 0.0
      %269 = vmatprep.subr.mxu0 0.0
      %270 = vmatpush1.msra.mxu0 0.0
      %271 = vmatprep.subr.mxu0 0.0
      %272 = vmatpush1.msra.mxu0 0.0
      %273 = vmatprep.subr.mxu0 0.0
      %274 = vmatpush1.msra.mxu0 0.0
      %275 = vmatprep.subr.mxu0 0.0
      %276 = vmatpush1.msra.mxu0 0.0
      %277 = vmatprep.subr.mxu0 0.0
      %278 = vmatpush1.msra.mxu0 0.0
      %279 = vmatprep.subr.mxu0 0.0
      %280 = vmatpush1.msra.mxu0 0.0
      %281 = vmatprep.subr.mxu0 0.0
      %282 = vmatpush1.msra.mxu0 0.0
      %283 = vmatprep.subr.mxu0 0.0
      %284 = vmatpush1.msra.mxu0 0.0
      %285 = vmatprep.subr.mxu0 0.0
      %286 = vmatpush1.msra.mxu0 0.0
      %287 = vmatprep.subr.mxu0 0.0
      %288 = vmatpush1.msra.mxu0 0.0
      %289 = vmatprep.subr.mxu0 0.0
      %290 = vmatpush1.msra.mxu0 0.0
      %291 = vmatprep.subr.mxu0 0.0
      %292 = vmatpush1.msra.mxu0 0.0
      %293 = vmatprep.subr.mxu0 0.0
      %294 = vmatpush1.msra.mxu0 0.0
      %295 = vmatprep.subr.mxu0 0.0
      %296 = vmatpush1.msra.mxu0 0.0
      %297 = vmatprep.subr.mxu0 0.0
      %298 = vmatpush1.msra.mxu0 0.0
      %299 = vmatprep.subr.mxu0 0.0
      %300 = vmatpush1.msra.mxu0 0.0
      %301 = vmatprep.subr.mxu0 0.0
      %302 = vmatpush1.msra.mxu0 0.0
      %303 = vmatprep.subr.mxu0 0.0
      %304 = vmatpush1.msra.mxu0 0.0
      %305 = vmatprep.subr.mxu0 0.0
      %306 = vmatpush1.msra.mxu0 0.0
      %307 = vmatprep.subr.mxu0 0.0
      %308 = vmatpush1.msra.mxu0 0.0
      %309 = vmatprep.subr.mxu0 0.0
      %310 = vmatpush1.msra.mxu0 0.0
      %311 = vmatprep.subr.mxu0 0.0
      %312 = vmatpush1.msra.mxu0 0.0
      %313 = vmatprep.subr.mxu0 0.0
      %314 = vmatpush1.msra.mxu0 0.0
      %315 = vmatprep.subr.mxu0 0.0
      %316 = vmatpush1.msra.mxu0 0.0
      %317 = vmatprep.subr.mxu0 0.0
      %318 = vmatpush1.msra.mxu0 0.0
      %319 = vmatprep.subr.mxu0 0.0
      %320 = vmatpush1.msra.mxu0 0.0
      %321 = vmatprep.subr.mxu0 0.0
      %322 = vmatpush1.msra.mxu0 0.0
      %323 = vmatprep.mubr.f32.mxu0 0.0
      %324 = vmatmul.mubr.f32.gmra.mrb[0].mxu0 %v248
      %v325 = vpop.f32.mrb[0].mxu0
      %v326 = vadd.f32 %v229, %v325
      %v327 = vpop.f32.mrb[0].mxu0
      %v328 = vadd.f32 %v229, %v327
      %329 = vmatprep.mubr.f32.mxu0 0.0
      %330 = vmatmul.mubr.f32.gmra.mrb[0].mxu0 %v251
      %v331 = vpop.f32.mrb[0].mxu0
      %v332 = vadd.f32 %v234, %v331
      %v333 = vpop.f32.mrb[0].mxu0
      %v334 = vadd.f32 %v234, %v333
      %335 = vmatprep.mubr.f32.mxu0 0.0
      %336 = vmatmul.mubr.f32.gmra.mrb[0].mxu0 %v254
      %v337 = vpop.f32.mrb[0].mxu0
      %v338 = vadd.f32 %v239, %v337
      %v339 = vpop.f32.mrb[0].mxu0
      %v340 = vadd.f32 %v239, %v339
      %341 = vmatprep.mubr.f32.mxu0 0.0
      %342 = vmatmul.mubr.f32.gmra.mrb[0].mxu0 %v257
      %v343 = vpop.f32.mrb[0].mxu0
      %v344 = vadd.f32 %v244, %v343
      %v345 = vpop.f32.mrb[0].mxu0
      %v346 = vadd.f32 %v244, %v345
      %347 = vdwg.mxu0
      %348 = vmatprep.subr.mxu0 %v217
      %349 = vmatpush1.msra.mxu0 %v216
      %350 = vmatprep.subr.mxu0 %v221
      %351 = vmatpush1.msra.mxu0 %v220
      %352 = vmatprep.subr.mxu0 0.0
      %353 = vmatpush1.msra.mxu0 0.0
      %354 = vmatprep.subr.mxu0 0.0
      %355 = vmatpush1.msra.mxu0 0.0
      %356 = vmatprep.subr.mxu0 0.0
      %357 = vmatpush1.msra.mxu0 0.0
      %358 = vmatprep.subr.mxu0 0.0
      %359 = vmatpush1.msra.mxu0 0.0
      %360 = vmatprep.subr.mxu0 0.0
      %361 = vmatpush1.msra.mxu0 0.0
      %362 = vmatprep.subr.mxu0 0.0
      %363 = vmatpush1.msra.mxu0 0.0
      %364 = vmatprep.subr.mxu0 0.0
      %365 = vmatpush1.msra.mxu0 0.0
      %366 = vmatprep.subr.mxu0 0.0
      %367 = vmatpush1.msra.mxu0 0.0
      %368 = vmatprep.subr.mxu0 0.0
      %369 = vmatpush1.msra.mxu0 0.0
      %370 = vmatprep.subr.mxu0 0.0
      %371 = vmatpush1.msra.mxu0 0.0
      %372 = vmatprep.subr.mxu0 0.0
      %373 = vmatpush1.msra.mxu0 0.0
      %374 = vmatprep.subr.mxu0 0.0
      %375 = vmatpush1.msra.mxu0 0.0
      %376 = vmatprep.subr.mxu0 0.0
      %377 = vmatpush1.msra.mxu0 0.0
      %378 = vmatprep.subr.mxu0 0.0
      %379 = vmatpush1.msra.mxu0 0.0
      %380 = vmatprep.subr.mxu0 0.0
      %381 = vmatpush1.msra.mxu0 0.0
      %382 = vmatprep.subr.mxu0 0.0
      %383 = vmatpush1.msra.mxu0 0.0
      %384 = vmatprep.subr.mxu0 0.0
      %385 = vmatpush1.msra.mxu0 0.0
      %386 = vmatprep.subr.mxu0 0.0
      %387 = vmatpush1.msra.mxu0 0.0
      %388 = vmatprep.subr.mxu0 0.0
      %389 = vmatpush1.msra.mxu0 0.0
      %390 = vmatprep.subr.mxu0 0.0
      %391 = vmatpush1.msra.mxu0 0.0
      %392 = vmatprep.subr.mxu0 0.0
      %393 = vmatpush1.msra.mxu0 0.0
      %394 = vmatprep.subr.mxu0 0.0
      %395 = vmatpush1.msra.mxu0 0.0
      %396 = vmatprep.subr.mxu0 0.0
      %397 = vmatpush1.msra.mxu0 0.0
      %398 = vmatprep.subr.mxu0 0.0
      %399 = vmatpush1.msra.mxu0 0.0
      %400 = vmatprep.subr.mxu0 0.0
      %401 = vmatpush1.msra.mxu0 0.0
      %402 = vmatprep.subr.mxu0 0.0
      %403 = vmatpush1.msra.mxu0 0.0
      %404 = vmatprep.subr.mxu0 0.0
      %405 = vmatpush1.msra.mxu0 0.0
      %406 = vmatprep.subr.mxu0 0.0
      %407 = vmatpush1.msra.mxu0 0.0
      %408 = vmatprep.subr.mxu0 0.0
      %409 = vmatpush1.msra.mxu0 0.0
      %410 = vmatprep.subr.mxu0 0.0
      %411 = vmatpush1.msra.mxu0 0.0
      %412 = vmatprep.mubr.f32.mxu0 0.0
      %413 = vmatmul.mubr.f32.gmra.mrb[0].mxu0 %v248
      %v414 = vpop.f32.mrb[0].mxu0
      %v415 = vadd.f32 %v229, %v414
      %v416 = vpop.f32.mrb[0].mxu0
      %v417 = vadd.f32 %v229, %v416
      %418 = vmatprep.mubr.f32.mxu0 0.0
      %419 = vmatmul.mubr.f32.gmra.mrb[0].mxu0 %v251
      %v420 = vpop.f32.mrb[0].mxu0
      %v421 = vadd.f32 %v234, %v420
      %v422 = vpop.f32.mrb[0].mxu0
      %v423 = vadd.f32 %v234, %v422
      %424 = vmatprep.mubr.f32.mxu0 0.0
      %425 = vmatmul.mubr.f32.gmra.mrb[0].mxu0 %v254
      %v426 = vpop.f32.mrb[0].mxu0
      %v427 = vadd.f32 %v239, %v426
      %v428 = vpop.f32.mrb[0].mxu0
      %v429 = vadd.f32 %v239, %v428
      %430 = vmatprep.mubr.f32.mxu0 0.0
      %431 = vmatmul.mubr.f32.gmra.mrb[0].mxu0 %v257
      %v432 = vpop.f32.mrb[0].mxu0
      %v433 = vadd.f32 %v244, %v432
      %v434 = vpop.f32.mrb[0].mxu0
      %v435 = vadd.f32 %v244, %v434
      %436 = vdwg.mxu0
      %437 = vst [vmem:[%s208] sm:$0xff] %v326
      %438 = vst [vmem:[%s208 + $0x8] sm:$0xff] %v328
      %439 = vst [vmem:[%s208 + $0x10] sm:$0xff] %v415
      %440 = vst [vmem:[%s208 + $0x18] sm:$0xff] %v417
      %441 = vst [vmem:[%s208 + $0x20] sm:$0xff] %v332
      %442 = vst [vmem:[%s208 + $0x28] sm:$0xff] %v334
      %443 = vst [vmem:[%s208 + $0x30] sm:$0xff] %v421
      %444 = vst [vmem:[%s208 + $0x38] sm:$0xff] %v423
      %445 = vst [vmem:[%s208 + $0x40] sm:$0xff] %v338
      %446 = vst [vmem:[%s208 + $0x48] sm:$0xff] %v340
      %447 = vst [vmem:[%s208 + $0x50] sm:$0xff] %v427
      %448 = vst [vmem:[%s208 + $0x58] sm:$0xff] %v429
      %449 = vst [vmem:[%s208 + $0x60] sm:$0xff] %v344
      %450 = vst [vmem:[%s208 + $0x68] sm:$0xff] %v346
      %451 = vst [vmem:[%s208 + $0x70] sm:$0xff] %v433
      %452 = vst [vmem:[%s208 + $0x78] sm:$0xff] %v435
      %s453 = smul.u32 4, %s19
      %p454 = scmp.lt.s32.totalorder %s18, 1
      %s455 = scalar_select %p454, %s18, 1
      %p456 = scmp.lt.s32.totalorder %s453, 3
      %s457 = scalar_select %p456, %s453, 3
      %s458 = smul.addr %s455, 16
      %s459 = sadd.s32 %s457, %s458
      %s460 = smul.addr %s459, 8
      %s461 = scalar_lea.vmem %s3, %s460
      // Predicated region
      $region33: #{_lambda_.5} parent=31 // pred_check
        %p462 = pneg %p116
      $region34: #{_lambda_.5} parent=31 // pred_check_branch
        %464 = sbr.rel (%p462) target = $region36
      $region35: #{_lambda_.5} parent=31 // pred_region
        %s465 = smul.u32 4, %s19
      $region36: #{_lambda_.5} parent=31 // pred_fallthru
        _
    $region32: #{_lambda_.5} parent=5 // pred_fallthru
      _
    %p466 = scmp.le.s32.totalorder 2, %s9
    // Predicated region
    $region37: #{_lambda_.5} parent=5 // pred_check
      %p467 = pneg %p466
    $region38: #{_lambda_.5} parent=5 // pred_check_branch
      %469 = sbr.rel (%p467) target = $region40
    $region39: #{_lambda_.5} parent=5 // pred_region
      %s470 = ssub.s32 %s9, 2
      // Predicated region
      $region41: #{_lambda_.5} parent=39 // pred_check
        %p471 = pneg %p122
      $region42: #{_lambda_.5} parent=39 // pred_check_branch
        %473 = sbr.rel (%p471) target = $region44
      $region43: #{_lambda_.5} parent=39 // pred_region
        %s474 = smul.u32 4, %s21
        %p475 = scmp.lt.s32.totalorder %s20, 1
        %s476 = scalar_select %p475, %s20, 1
        %p477 = scmp.lt.s32.totalorder %s474, 3
        %s478 = scalar_select %p477, %s474, 3
        %s479 = smul.addr %s476, 16
        %s480 = sadd.s32 %s478, %s479
        %s481 = smul.addr %s480, 8
        %s482 = scalar_lea.vmem %s3, %s481
      $region44: #{_lambda_.5} parent=39 // pred_fallthru
        _
    $region40: #{_lambda_.5} parent=5 // pred_fallthru
      _
  $region6: #{_lambda_.5} parent=0 // loop_footer
    %s13 = sadd.s32 1, %s9
  $region7: #{_lambda_.5} parent=0 // loop_footer_branch
    %8 = sbr.rel target = $region3
  $region8: #{_lambda_.5} parent=0 // loop_exit
    _

// kernel: _lambda_.4
$region0: #{_lambda_.4}
  #allocation0 [shape = 'u32[]', space=smem, size = 0x4, offset = 0x4, fixed_abs, tag = 'smem constant byte address 0x4 - core index']
  #allocation1 [shape = 'u32[144,128]{1,0:T(1,128)}', space=vmem, size = 0x12000, scoped, tag = 'internal scratch']
  #allocation2 [shape = 'f32[512,1]{1,0:T(8,128)}', space=vmem, size = 0x40000, scoped, tag = 'scratch operand']
  #allocation3 [shape = 'f32[512,1]{1,0:T(8,128)}', space=vmem, size = 0x40000, scoped, tag = 'scratch operand']
  #allocation4 [shape = 'f32[512,16]{1,0:T(8,128)}', space=vmem, size = 0x40000, scoped, tag = 'scratch operand']
  %s0 = inlined_call_operand.vmem [shape: f32[2,512,4], index: 0, kind: input, shape index: {}]
  %s1 = inlined_call_operand.vmem [shape: f32[2,4,64], index: 1, kind: input, shape index: {}]
  %s2 = inlined_call_operand.vmem [shape: f32[2,16,64], index: 2, kind: input, shape index: {}]
  %s3 = inlined_call_operand.vmem [shape: f32[2,512,16], index: 3, kind: output, shape index: {}]
  %s4 = sld [smem:[#allocation0]]
  $region53: #{_lambda_.4} parent=0
    _
  %s6 = ssub.s32 1, %s4
  %s7 = scalar_select 0, %s6, %s4
  loop: start=0, step=1, limit=4
  $region2: #{_lambda_.4} parent=0 // loop_pre_header
    _
  $region3: #{_lambda_.4} parent=0 // loop_header
    %s9 = sphi 0, %s13
    %p10 = scmp.ge.s32.totalorder %s9, 4
    %s16 = sphi 0, %s35
    %s17 = sphi 0, %s31
    %s18 = sphi 0, %s27
    %s19 = sphi 0, %s16
    %s20 = sphi 0, %s17
    %s21 = sphi 0, %s18
    %s22 = sphi 0, %s19
    %s23 = sphi 0, %s20
    %s24 = sphi 0, %s21
    %s40 = sphi 0, %s42
    %s43 = sphi 0, %s40
    %s44 = sphi 0, %s43
    %s60 = sphi 0, %s44
    %s68 = sphi 0, %s70
    %s71 = sphi 0, %s68
    %s72 = sphi 0, %s71
    %s88 = sphi 0, %s72
    %s96 = sphi 0, %s98
    %s99 = sphi 0, %s96
    %s100 = sphi 0, %s99
    %s116 = sphi 0, %s100
    %s124 = sphi 0, %s126
    %s127 = sphi 0, %s124
    %s128 = sphi 0, %s127
    %s144 = sphi 0, %s128
  $region4: #{_lambda_.4} parent=0 // loop_header_branch
    %12 = sbr.rel (%p10) target = $region8
  $region5: #{_lambda_.4} parent=0 // loop_body
    %s14 = ssub.s32 %s9, 1
    %s15 = ssub.s32 %s9, 2
    %s25 = sadd.s32 1, %s18
    %p26 = scmp.ge.s32.totalorder %s25, 1
    %s27 = scalar_select %p26, 0, %s25
    %s28 = sadd.s32 1, %s17
    %s29 = scalar_select %p26, %s28, %s17
    %p30 = scmp.ge.s32.totalorder %s29, 1
    %s31 = scalar_select %p30, 0, %s29
    %s32 = sadd.s32 1, %s16
    %s33 = scalar_select %p30, %s32, %s16
    %p34 = scmp.ge.s32.totalorder %s33, 2
    %s35 = scalar_select %p34, 0, %s33
    %s36 = ssub.s32 %s16, %s35
    %s37 = ssub.s32 %s17, %s31
    %s38 = sor.u32 %s36, %s37
    %p39 = scmp.eq.s32.totalorder %s38, 0
    %s41 = sadd.s32 %s40, 1
    %s42 = scalar_select %p39, %s40, %s41
    %p45 = pneg %p39
    %p46 = scmp.eq.s32.totalorder %s9, 1
    %p47 = por %p45, %p46
    %p48 = scmp.ne.s32.totalorder %s40, %s43
    %p49 = scmp.eq.s32.totalorder %s9, 0
    %p50 = por %p48, %p49
    %p51 = scmp.ne.s32.totalorder %s40, %s43
    %p52 = scmp.eq.s32.totalorder %s14, 1
    %p53 = por %p51, %p52
    %p54 = scmp.ne.s32.totalorder %s43, %s44
    %p55 = scmp.eq.s32.totalorder %s14, 0
    %p56 = por %p54, %p55
    %p57 = scmp.ne.s32.totalorder %s43, %s44
    %p58 = scmp.eq.s32.totalorder %s15, 1
    %p59 = por %p57, %p58
    %p61 = scmp.ne.s32.totalorder %s44, %s60
    %p62 = scmp.eq.s32.totalorder %s15, 0
    %p63 = por %p61, %p62
    %s64 = ssub.s32 %s16, %s35
    %s65 = ssub.s32 %s18, %s27
    %s66 = sor.u32 %s64, %s65
    %p67 = scmp.eq.s32.totalorder %s66, 0
    %s69 = sadd.s32 %s68, 1
    %s70 = scalar_select %p67, %s68, %s69
    %p73 = pneg %p67
    %p74 = scmp.eq.s32.totalorder %s9, 1
    %p75 = por %p73, %p74
    %p76 = scmp.ne.s32.totalorder %s68, %s71
    %p77 = scmp.eq.s32.totalorder %s9, 0
    %p78 = por %p76, %p77
    %p79 = scmp.ne.s32.totalorder %s68, %s71
    %p80 = scmp.eq.s32.totalorder %s14, 1
    %p81 = por %p79, %p80
    %p82 = scmp.ne.s32.totalorder %s71, %s72
    %p83 = scmp.eq.s32.totalorder %s14, 0
    %p84 = por %p82, %p83
    %p85 = scmp.ne.s32.totalorder %s71, %s72
    %p86 = scmp.eq.s32.totalorder %s15, 1
    %p87 = por %p85, %p86
    %p89 = scmp.ne.s32.totalorder %s72, %s88
    %p90 = scmp.eq.s32.totalorder %s15, 0
    %p91 = por %p89, %p90
    %s92 = ssub.s32 %s16, %s35
    %s93 = ssub.s32 %s18, %s27
    %s94 = sor.u32 %s92, %s93
    %p95 = scmp.eq.s32.totalorder %s94, 0
    %s97 = sadd.s32 %s96, 1
    %s98 = scalar_select %p95, %s96, %s97
    %p101 = pneg %p95
    %p102 = scmp.eq.s32.totalorder %s9, 1
    %p103 = por %p101, %p102
    %p104 = scmp.ne.s32.totalorder %s96, %s99
    %p105 = scmp.eq.s32.totalorder %s9, 0
    %p106 = por %p104, %p105
    %p107 = scmp.ne.s32.totalorder %s96, %s99
    %p108 = scmp.eq.s32.totalorder %s14, 1
    %p109 = por %p107, %p108
    %p110 = scmp.ne.s32.totalorder %s99, %s100
    %p111 = scmp.eq.s32.totalorder %s14, 0
    %p112 = por %p110, %p111
    %p113 = scmp.ne.s32.totalorder %s99, %s100
    %p114 = scmp.eq.s32.totalorder %s15, 1
    %p115 = por %p113, %p114
    %p117 = scmp.ne.s32.totalorder %s100, %s116
    %p118 = scmp.eq.s32.totalorder %s15, 0
    %p119 = por %p117, %p118
    %s120 = ssub.s32 %s16, %s35
    %s121 = ssub.s32 %s17, %s31
    %s122 = sor.u32 %s120, %s121
    %p123 = scmp.eq.s32.totalorder %s122, 0
    %s125 = sadd.s32 %s124, 1
    %s126 = scalar_select %p123, %s124, %s125
    %p129 = pneg %p123
    %p130 = scmp.eq.s32.totalorder %s9, 1
    %p131 = por %p129, %p130
    %p132 = scmp.ne.s32.totalorder %s124, %s127
    %p133 = scmp.eq.s32.totalorder %s9, 0
    %p134 = por %p132, %p133
    %p135 = scmp.ne.s32.totalorder %s124, %s127
    %p136 = scmp.eq.s32.totalorder %s14, 1
    %p137 = por %p135, %p136
    %p138 = scmp.ne.s32.totalorder %s127, %s128
    %p139 = scmp.eq.s32.totalorder %s14, 0
    %p140 = por %p138, %p139
    %p141 = scmp.ne.s32.totalorder %s127, %s128
    %p142 = scmp.eq.s32.totalorder %s15, 1
    %p143 = por %p141, %p142
    %p145 = scmp.ne.s32.totalorder %s128, %s144
    %p146 = scmp.eq.s32.totalorder %s15, 0
    %p147 = por %p145, %p146
    %p148 = scmp.le.s32.totalorder 1, %s9
    %p149 = scmp.lt.s32.totalorder %s9, 3
    %p150 = pnand %p148, %p149
    %p151 = pneg %p150
    // Predicated region
    $region9: #{_lambda_.4} parent=5 // pred_check
      _
    $region10: #{_lambda_.4} parent=5 // pred_check_branch
      %153 = sbr.rel (%p150) target = $region12
    $region11: #{_lambda_.4} parent=5 // pred_region
      %s154 = ssub.s32 %s9, 1
    $region12: #{_lambda_.4} parent=5 // pred_fallthru
      _
    %p155 = scmp.lt.s32.totalorder %s9, 2
    // Predicated region
    $region13: #{_lambda_.4} parent=5 // pred_check
      %p156 = pneg %p155
    $region14: #{_lambda_.4} parent=5 // pred_check_branch
      %158 = sbr.rel (%p156) target = $region16
    $region15: #{_lambda_.4} parent=5 // pred_region
      // Predicated region
      $region17: #{_lambda_.4} parent=15 // pred_check
        %p159 = pneg %p50
      $region18: #{_lambda_.4} parent=15 // pred_check_branch
        %161 = sbr.rel (%p159) target = $region20
      $region19: #{_lambda_.4} parent=15 // pred_region
        %s162 = smul.u32 64, %s17
        %p163 = scmp.lt.s32.totalorder %s16, 1
        %s164 = scalar_select %p163, %s16, 1
        %p165 = scmp.lt.s32.totalorder %s162, 63
        %s166 = scalar_select %p165, %s162, 63
        %s167 = smul.addr %s164, 64
        %s168 = sadd.s32 %s166, %s167
        %s169 = smul.addr %s168, 8
        %s170 = scalar_lea.vmem %s0, %s169
        %s171 = smul.u32 64, %s17
      $region20: #{_lambda_.4} parent=15 // pred_fallthru
        _
      // Predicated region
      $region21: #{_lambda_.4} parent=15 // pred_check
        %p172 = pneg %p78
      $region22: #{_lambda_.4} parent=15 // pred_check_branch
        %174 = sbr.rel (%p172) target = $region24
      $region23: #{_lambda_.4} parent=15 // pred_region
        %p175 = scmp.lt.s32.totalorder %s16, 1
        %s176 = scalar_select %p175, %s16, 1
        %p177 = scmp.lt.s32.totalorder %s18, 0
        %s178 = scalar_select %p177, %s18, 0
        %s179 = sadd.s32 %s178, %s176
        %s180 = smul.addr %s179, 4
        %s181 = scalar_lea.vmem %s1, %s180
      $region24: #{_lambda_.4} parent=15 // pred_fallthru
        _
      // Predicated region
      $region25: #{_lambda_.4} parent=15 // pred_check
        %p182 = pneg %p106
      $region26: #{_lambda_.4} parent=15 // pred_check_branch
        %184 = sbr.rel (%p182) target = $region28
      $region27: #{_lambda_.4} parent=15 // pred_region
        %p185 = scmp.lt.s32.totalorder %s16, 1
        %s186 = scalar_select %p185, %s16, 1
        %p187 = scmp.lt.s32.totalorder %s18, 0
        %s188 = scalar_select %p187, %s18, 0
        %s189 = smul.addr %s186, 2
        %s190 = sadd.s32 %s188, %s189
        %s191 = smul.addr %s190, 8
        %s192 = scalar_lea.vmem %s2, %s191
      $region28: #{_lambda_.4} parent=15 // pred_fallthru
        _
    $region16: #{_lambda_.4} parent=5 // pred_fallthru
      _
    %p193 = scmp.le.s32.totalorder 1, %s9
    %p194 = scmp.lt.s32.totalorder %s9, 3
    %p195 = pnand %p193, %p194
    %p196 = pneg %p195
    // Predicated region
    $region29: #{_lambda_.4} parent=5 // pred_check
      _
    $region30: #{_lambda_.4} parent=5 // pred_check_branch
      %198 = sbr.rel (%p195) target = $region32
    $region31: #{_lambda_.4} parent=5 // pred_region
      %s199 = ssub.s32 %s9, 1
      %s200 = smul.u32 64, %s20
      %p201 = scmp.lt.s32.totalorder %s19, 1
      %s202 = scalar_select %p201, %s19, 1
      %p203 = scmp.lt.s32.totalorder %s200, 63
      %s204 = scalar_select %p203, %s200, 63
      %s205 = smul.addr %s202, 64
      %s206 = sadd.s32 %s204, %s205
      %s207 = smul.addr %s206, 8
      %s208 = scalar_lea.vmem %s0, %s207
      %p209 = pneg %p56
      %p210 = pneg %p53
      %p211 = scmp.lt.s32.totalorder %s19, 1
      %s212 = scalar_select %p211, %s19, 1
      %p213 = scmp.lt.s32.totalorder %s21, 0
      %s214 = scalar_select %p213, %s21, 0
      %s215 = sadd.s32 %s214, %s212
      %s216 = smul.addr %s215, 4
      %s217 = scalar_lea.vmem %s1, %s216
      %p218 = pneg %p84
      %p219 = pneg %p81
      %p220 = scmp.lt.s32.totalorder %s19, 1
      %s221 = scalar_select %p220, %s19, 1
      %p222 = scmp.lt.s32.totalorder %s21, 0
      %s223 = scalar_select %p222, %s21, 0
      %s224 = smul.addr %s221, 2
      %s225 = sadd.s32 %s223, %s224
      %s226 = smul.addr %s225, 8
      %s227 = scalar_lea.vmem %s2, %s226
      %p228 = pneg %p112
      %p229 = pneg %p109
      %p230 = pneg %p140
      %p231 = pneg %p137
      %s232 = smul.u32 64, %s20
      %p233 = scmp.lt.s32.totalorder %s19, 1
      %s234 = scalar_select %p233, %s19, 1
      %p235 = scmp.lt.s32.totalorder %s232, 63
      %s236 = scalar_select %p235, %s232, 63
      %s237 = smul.addr %s234, 64
      %s238 = sadd.s32 %s236, %s237
      %s239 = smul.addr %s238, 8
      %s240 = scalar_lea.vmem %s3, %s239
      %s241 = smul.u32 64, %s20
      %p242 = scmp.lt.s32.totalorder %s19, 1
      %s243 = scalar_select %p242, %s19, 1
      %p244 = scmp.lt.s32.totalorder %s241, 63
      %s245 = scalar_select %p244, %s241, 63
      %s246 = smul.addr %s243, 64
      %s247 = sadd.s32 %s245, %s246
      %s248 = smul.addr %s247, 8
      %s249 = scalar_lea.vmem %s0, %s248
      %s250 = smul.u32 64, %s20
      %p251 = scmp.lt.s32.totalorder %s19, 1
      %s252 = scalar_select %p251, %s19, 1
      %p253 = scmp.lt.s32.totalorder %s21, 0
      %s254 = scalar_select %p253, %s21, 0
      %s255 = sadd.s32 %s254, %s252
      %s256 = smul.addr %s255, 4
      %s257 = scalar_lea.vmem %s1, %s256
      %p258 = scmp.lt.s32.totalorder %s19, 1
      %s259 = scalar_select %p258, %s19, 1
      %p260 = scmp.lt.s32.totalorder %s21, 0
      %s261 = scalar_select %p260, %s21, 0
      %s262 = smul.addr %s259, 2
      %s263 = sadd.s32 %s261, %s262
      %s264 = smul.addr %s263, 8
      %s265 = scalar_lea.vmem %s2, %s264
      %s266 = smul.u32 64, %s20
      %p267 = scmp.lt.s32.totalorder %s19, 1
      %s268 = scalar_select %p267, %s19, 1
      %p269 = scmp.lt.s32.totalorder %s266, 63
      %s270 = scalar_select %p269, %s266, 63
      %s271 = smul.addr %s268, 64
      %s272 = sadd.s32 %s270, %s271
      %s273 = smul.addr %s272, 8
      %s274 = scalar_lea.vmem %s3, %s273
      %s275 = smul.u32 64, %s20
      %p276 = scmp.eq.s32.totalorder %s21, 0
      // Predicated region
      $region33: #{_lambda_.4} parent=31 // pred_check
        %p277 = pneg %p276
      $region34: #{_lambda_.4} parent=31 // pred_check_branch
        %279 = sbr.rel (%p277) target = $region36
      $region35: #{_lambda_.4} parent=31 // pred_region
        %vm280 = vcmask 7168
        %281 = vst.msk [vmem:[#allocation2] sm:$0xff] %vm280, -inf
        %282 = vst.msk [vmem:[#allocation2 + $0x8] sm:$0xff] %vm280, -inf
        %283 = vst.msk [vmem:[#allocation2 + $0x10] sm:$0xff] %vm280, -inf
        %284 = vst.msk [vmem:[#allocation2 + $0x18] sm:$0xff] %vm280, -inf
        %285 = vst.msk [vmem:[#allocation2 + $0x20] sm:$0xff] %vm280, -inf
        %286 = vst.msk [vmem:[#allocation2 + $0x28] sm:$0xff] %vm280, -inf
        %287 = vst.msk [vmem:[#allocation2 + $0x30] sm:$0xff] %vm280, -inf
        %288 = vst.msk [vmem:[#allocation2 + $0x38] sm:$0xff] %vm280, -inf
        %289 = vst.msk [vmem:[#allocation2 + $0x40] sm:$0xff] %vm280, -inf
        %290 = vst.msk [vmem:[#allocation2 + $0x48] sm:$0xff] %vm280, -inf
        %291 = vst.msk [vmem:[#allocation2 + $0x50] sm:$0xff] %vm280, -inf
        %292 = vst.msk [vmem:[#allocation2 + $0x58] sm:$0xff] %vm280, -inf
        %293 = vst.msk [vmem:[#allocation2 + $0x60] sm:$0xff] %vm280, -inf
        %294 = vst.msk [vmem:[#allocation2 + $0x68] sm:$0xff] %vm280, -inf
        %295 = vst.msk [vmem:[#allocation2 + $0x70] sm:$0xff] %vm280, -inf
        %296 = vst.msk [vmem:[#allocation2 + $0x78] sm:$0xff] %vm280, -inf
        %297 = vst.msk [vmem:[#allocation2 + $0x80] sm:$0xff] %vm280, -inf
        %298 = vst.msk [vmem:[#allocation2 + $0x88] sm:$0xff] %vm280, -inf
        %299 = vst.msk [vmem:[#allocation2 + $0x90] sm:$0xff] %vm280, -inf
        %300 = vst.msk [vmem:[#allocation2 + $0x98] sm:$0xff] %vm280, -inf
        %301 = vst.msk [vmem:[#allocation2 + $0xa0] sm:$0xff] %vm280, -inf
        %302 = vst.msk [vmem:[#allocation2 + $0xa8] sm:$0xff] %vm280, -inf
        %303 = vst.msk [vmem:[#allocation2 + $0xb0] sm:$0xff] %vm280, -inf
        %304 = vst.msk [vmem:[#allocation2 + $0xb8] sm:$0xff] %vm280, -inf
        %305 = vst.msk [vmem:[#allocation2 + $0xc0] sm:$0xff] %vm280, -inf
        %306 = vst.msk [vmem:[#allocation2 + $0xc8] sm:$0xff] %vm280, -inf
        %307 = vst.msk [vmem:[#allocation2 + $0xd0] sm:$0xff] %vm280, -inf
        %308 = vst.msk [vmem:[#allocation2 + $0xd8] sm:$0xff] %vm280, -inf
        %309 = vst.msk [vmem:[#allocation2 + $0xe0] sm:$0xff] %vm280, -inf
        %310 = vst.msk [vmem:[#allocation2 + $0xe8] sm:$0xff] %vm280, -inf
        %311 = vst.msk [vmem:[#allocation2 + $0xf0] sm:$0xff] %vm280, -inf
        %312 = vst.msk [vmem:[#allocation2 + $0xf8] sm:$0xff] %vm280, -inf
        %313 = vst.msk [vmem:[#allocation2 + $0x100] sm:$0xff] %vm280, -inf
        %314 = vst.msk [vmem:[#allocation2 + $0x108] sm:$0xff] %vm280, -inf
        %315 = vst.msk [vmem:[#allocation2 + $0x110] sm:$0xff] %vm280, -inf
        %316 = vst.msk [vmem:[#allocation2 + $0x118] sm:$0xff] %vm280, -inf
        %317 = vst.msk [vmem:[#allocation2 + $0x120] sm:$0xff] %vm280, -inf
        %318 = vst.msk [vmem:[#allocation2 + $0x128] sm:$0xff] %vm280, -inf
        %319 = vst.msk [vmem:[#allocation2 + $0x130] sm:$0xff] %vm280, -inf
        %320 = vst.msk [vmem:[#allocation2 + $0x138] sm:$0xff] %vm280, -inf
        %321 = vst.msk [vmem:[#allocation2 + $0x140] sm:$0xff] %vm280, -inf
        %322 = vst.msk [vmem:[#allocation2 + $0x148] sm:$0xff] %vm280, -inf
        %323 = vst.msk [vmem:[#allocation2 + $0x150] sm:$0xff] %vm280, -inf
        %324 = vst.msk [vmem:[#allocation2 + $0x158] sm:$0xff] %vm280, -inf
        %325 = vst.msk [vmem:[#allocation2 + $0x160] sm:$0xff] %vm280, -inf
        %326 = vst.msk [vmem:[#allocation2 + $0x168] sm:$0xff] %vm280, -inf
        %327 = vst.msk [vmem:[#allocation2 + $0x170] sm:$0xff] %vm280, -inf
        %328 = vst.msk [vmem:[#allocation2 + $0x178] sm:$0xff] %vm280, -inf
        %329 = vst.msk [vmem:[#allocation2 + $0x180] sm:$0xff] %vm280, -inf
        %330 = vst.msk [vmem:[#allocation2 + $0x188] sm:$0xff] %vm280, -inf
        %331 = vst.msk [vmem:[#allocation2 + $0x190] sm:$0xff] %vm280, -inf
        %332 = vst.msk [vmem:[#allocation2 + $0x198] sm:$0xff] %vm280, -inf
        %333 = vst.msk [vmem:[#allocation2 + $0x1a0] sm:$0xff] %vm280, -inf
        %334 = vst.msk [vmem:[#allocation2 + $0x1a8] sm:$0xff] %vm280, -inf
        %335 = vst.msk [vmem:[#allocation2 + $0x1b0] sm:$0xff] %vm280, -inf
        %336 = vst.msk [vmem:[#allocation2 + $0x1b8] sm:$0xff] %vm280, -inf
        %337 = vst.msk [vmem:[#allocation2 + $0x1c0] sm:$0xff] %vm280, -inf
        %338 = vst.msk [vmem:[#allocation2 + $0x1c8] sm:$0xff] %vm280, -inf
        %339 = vst.msk [vmem:[#allocation2 + $0x1d0] sm:$0xff] %vm280, -inf
        %340 = vst.msk [vmem:[#allocation2 + $0x1d8] sm:$0xff] %vm280, -inf
        %341 = vst.msk [vmem:[#allocation2 + $0x1e0] sm:$0xff] %vm280, -inf
        %342 = vst.msk [vmem:[#allocation2 + $0x1e8] sm:$0xff] %vm280, -inf
        %343 = vst.msk [vmem:[#allocation2 + $0x1f0] sm:$0xff] %vm280, -inf
        %344 = vst.msk [vmem:[#allocation2 + $0x1f8] sm:$0xff] %vm280, -inf
        %345 = vst.msk [vmem:[#allocation3] sm:$0xff] %vm280, 0.0
        %346 = vst.msk [vmem:[#allocation3 + $0x8] sm:$0xff] %vm280, 0.0
        %347 = vst.msk [vmem:[#allocation3 + $0x10] sm:$0xff] %vm280, 0.0
        %348 = vst.msk [vmem:[#allocation3 + $0x18] sm:$0xff] %vm280, 0.0
        %349 = vst.msk [vmem:[#allocation3 + $0x20] sm:$0xff] %vm280, 0.0
        %350 = vst.msk [vmem:[#allocation3 + $0x28] sm:$0xff] %vm280, 0.0
        %351 = vst.msk [vmem:[#allocation3 + $0x30] sm:$0xff] %vm280, 0.0
        %352 = vst.msk [vmem:[#allocation3 + $0x38] sm:$0xff] %vm280, 0.0
        %353 = vst.msk [vmem:[#allocation3 + $0x40] sm:$0xff] %vm280, 0.0
        %354 = vst.msk [vmem:[#allocation3 + $0x48] sm:$0xff] %vm280, 0.0
        %355 = vst.msk [vmem:[#allocation3 + $0x50] sm:$0xff] %vm280, 0.0
        %356 = vst.msk [vmem:[#allocation3 + $0x58] sm:$0xff] %vm280, 0.0
        %357 = vst.msk [vmem:[#allocation3 + $0x60] sm:$0xff] %vm280, 0.0
        %358 = vst.msk [vmem:[#allocation3 + $0x68] sm:$0xff] %vm280, 0.0
        %359 = vst.msk [vmem:[#allocation3 + $0x70] sm:$0xff] %vm280, 0.0
        %360 = vst.msk [vmem:[#allocation3 + $0x78] sm:$0xff] %vm280, 0.0
        %361 = vst.msk [vmem:[#allocation3 + $0x80] sm:$0xff] %vm280, 0.0
        %362 = vst.msk [vmem:[#allocation3 + $0x88] sm:$0xff] %vm280, 0.0
        %363 = vst.msk [vmem:[#allocation3 + $0x90] sm:$0xff] %vm280, 0.0
        %364 = vst.msk [vmem:[#allocation3 + $0x98] sm:$0xff] %vm280, 0.0
        %365 = vst.msk [vmem:[#allocation3 + $0xa0] sm:$0xff] %vm280, 0.0
        %366 = vst.msk [vmem:[#allocation3 + $0xa8] sm:$0xff] %vm280, 0.0
        %367 = vst.msk [vmem:[#allocation3 + $0xb0] sm:$0xff] %vm280, 0.0
        %368 = vst.msk [vmem:[#allocation3 + $0xb8] sm:$0xff] %vm280, 0.0
        %369 = vst.msk [vmem:[#allocation3 + $0xc0] sm:$0xff] %vm280, 0.0
        %370 = vst.msk [vmem:[#allocation3 + $0xc8] sm:$0xff] %vm280, 0.0
        %371 = vst.msk [vmem:[#allocation3 + $0xd0] sm:$0xff] %vm280, 0.0
        %372 = vst.msk [vmem:[#allocation3 + $0xd8] sm:$0xff] %vm280, 0.0
        %373 = vst.msk [vmem:[#allocation3 + $0xe0] sm:$0xff] %vm280, 0.0
        %374 = vst.msk [vmem:[#allocation3 + $0xe8] sm:$0xff] %vm280, 0.0
        %375 = vst.msk [vmem:[#allocation3 + $0xf0] sm:$0xff] %vm280, 0.0
        %376 = vst.msk [vmem:[#allocation3 + $0xf8] sm:$0xff] %vm280, 0.0
        %377 = vst.msk [vmem:[#allocation3 + $0x100] sm:$0xff] %vm280, 0.0
        %378 = vst.msk [vmem:[#allocation3 + $0x108] sm:$0xff] %vm280, 0.0
        %379 = vst.msk [vmem:[#allocation3 + $0x110] sm:$0xff] %vm280, 0.0
        %380 = vst.msk [vmem:[#allocation3 + $0x118] sm:$0xff] %vm280, 0.0
        %381 = vst.msk [vmem:[#allocation3 + $0x120] sm:$0xff] %vm280, 0.0
        %382 = vst.msk [vmem:[#allocation3 + $0x128] sm:$0xff] %vm280, 0.0
        %383 = vst.msk [vmem:[#allocation3 + $0x130] sm:$0xff] %vm280, 0.0
        %384 = vst.msk [vmem:[#allocation3 + $0x138] sm:$0xff] %vm280, 0.0
        %385 = vst.msk [vmem:[#allocation3 + $0x140] sm:$0xff] %vm280, 0.0
        %386 = vst.msk [vmem:[#allocation3 + $0x148] sm:$0xff] %vm280, 0.0
        %387 = vst.msk [vmem:[#allocation3 + $0x150] sm:$0xff] %vm280, 0.0
        %388 = vst.msk [vmem:[#allocation3 + $0x158] sm:$0xff] %vm280, 0.0
        %389 = vst.msk [vmem:[#allocation3 + $0x160] sm:$0xff] %vm280, 0.0
        %390 = vst.msk [vmem:[#allocation3 + $0x168] sm:$0xff] %vm280, 0.0
        %391 = vst.msk [vmem:[#allocation3 + $0x170] sm:$0xff] %vm280, 0.0
        %392 = vst.msk [vmem:[#allocation3 + $0x178] sm:$0xff] %vm280, 0.0
        %393 = vst.msk [vmem:[#allocation3 + $0x180] sm:$0xff] %vm280, 0.0
        %394 = vst.msk [vmem:[#allocation3 + $0x188] sm:$0xff] %vm280, 0.0
        %395 = vst.msk [vmem:[#allocation3 + $0x190] sm:$0xff] %vm280, 0.0
        %396 = vst.msk [vmem:[#allocation3 + $0x198] sm:$0xff] %vm280, 0.0
        %397 = vst.msk [vmem:[#allocation3 + $0x1a0] sm:$0xff] %vm280, 0.0
        %398 = vst.msk [vmem:[#allocation3 + $0x1a8] sm:$0xff] %vm280, 0.0
        %399 = vst.msk [vmem:[#allocation3 + $0x1b0] sm:$0xff] %vm280, 0.0
        %400 = vst.msk [vmem:[#allocation3 + $0x1b8] sm:$0xff] %vm280, 0.0
        %401 = vst.msk [vmem:[#allocation3 + $0x1c0] sm:$0xff] %vm280, 0.0
        %402 = vst.msk [vmem:[#allocation3 + $0x1c8] sm:$0xff] %vm280, 0.0
        %403 = vst.msk [vmem:[#allocation3 + $0x1d0] sm:$0xff] %vm280, 0.0
        %404 = vst.msk [vmem:[#allocation3 + $0x1d8] sm:$0xff] %vm280, 0.0
        %405 = vst.msk [vmem:[#allocation3 + $0x1e0] sm:$0xff] %vm280, 0.0
        %406 = vst.msk [vmem:[#allocation3 + $0x1e8] sm:$0xff] %vm280, 0.0
        %407 = vst.msk [vmem:[#allocation3 + $0x1f0] sm:$0xff] %vm280, 0.0
        %408 = vst.msk [vmem:[#allocation3 + $0x1f8] sm:$0xff] %vm280, 0.0
        %vm409 = vcmask 130048
        %410 = vst.msk [vmem:[#allocation4] sm:$0xff] %vm409, 0.0
        %411 = vst.msk [vmem:[#allocation4 + $0x8] sm:$0xff] %vm409, 0.0
        %412 = vst.msk [vmem:[#allocation4 + $0x10] sm:$0xff] %vm409, 0.0
        %413 = vst.msk [vmem:[#allocation4 + $0x18] sm:$0xff] %vm409, 0.0
        %414 = vst.msk [vmem:[#allocation4 + $0x20] sm:$0xff] %vm409, 0.0
        %415 = vst.msk [vmem:[#allocation4 + $0x28] sm:$0xff] %vm409, 0.0
        %416 = vst.msk [vmem:[#allocation4 + $0x30] sm:$0xff] %vm409, 0.0
        %417 = vst.msk [vmem:[#allocation4 + $0x38] sm:$0xff] %vm409, 0.0
        %418 = vst.msk [vmem:[#allocation4 + $0x40] sm:$0xff] %vm409, 0.0
        %419 = vst.msk [vmem:[#allocation4 + $0x48] sm:$0xff] %vm409, 0.0
        %420 = vst.msk [vmem:[#allocation4 + $0x50] sm:$0xff] %vm409, 0.0
        %421 = vst.msk [vmem:[#allocation4 + $0x58] sm:$0xff] %vm409, 0.0
        %422 = vst.msk [vmem:[#allocation4 + $0x60] sm:$0xff] %vm409, 0.0
        %423 = vst.msk [vmem:[#allocation4 + $0x68] sm:$0xff] %vm409, 0.0
        %424 = vst.msk [vmem:[#allocation4 + $0x70] sm:$0xff] %vm409, 0.0
        %425 = vst.msk [vmem:[#allocation4 + $0x78] sm:$0xff] %vm409, 0.0
        %426 = vst.msk [vmem:[#allocation4 + $0x80] sm:$0xff] %vm409, 0.0
        %427 = vst.msk [vmem:[#allocation4 + $0x88] sm:$0xff] %vm409, 0.0
        %428 = vst.msk [vmem:[#allocation4 + $0x90] sm:$0xff] %vm409, 0.0
        %429 = vst.msk [vmem:[#allocation4 + $0x98] sm:$0xff] %vm409, 0.0
        %430 = vst.msk [vmem:[#allocation4 + $0xa0] sm:$0xff] %vm409, 0.0
        %431 = vst.msk [vmem:[#allocation4 + $0xa8] sm:$0xff] %vm409, 0.0
        %432 = vst.msk [vmem:[#allocation4 + $0xb0] sm:$0xff] %vm409, 0.0
        %433 = vst.msk [vmem:[#allocation4 + $0xb8] sm:$0xff] %vm409, 0.0
        %434 = vst.msk [vmem:[#allocation4 + $0xc0] sm:$0xff] %vm409, 0.0
        %435 = vst.msk [vmem:[#allocation4 + $0xc8] sm:$0xff] %vm409, 0.0
        %436 = vst.msk [vmem:[#allocation4 + $0xd0] sm:$0xff] %vm409, 0.0
        %437 = vst.msk [vmem:[#allocation4 + $0xd8] sm:$0xff] %vm409, 0.0
        %438 = vst.msk [vmem:[#allocation4 + $0xe0] sm:$0xff] %vm409, 0.0
        %439 = vst.msk [vmem:[#allocation4 + $0xe8] sm:$0xff] %vm409, 0.0
        %440 = vst.msk [vmem:[#allocation4 + $0xf0] sm:$0xff] %vm409, 0.0
        %441 = vst.msk [vmem:[#allocation4 + $0xf8] sm:$0xff] %vm409, 0.0
        %442 = vst.msk [vmem:[#allocation4 + $0x100] sm:$0xff] %vm409, 0.0
        %443 = vst.msk [vmem:[#allocation4 + $0x108] sm:$0xff] %vm409, 0.0
        %444 = vst.msk [vmem:[#allocation4 + $0x110] sm:$0xff] %vm409, 0.0
        %445 = vst.msk [vmem:[#allocation4 + $0x118] sm:$0xff] %vm409, 0.0
        %446 = vst.msk [vmem:[#allocation4 + $0x120] sm:$0xff] %vm409, 0.0
        %447 = vst.msk [vmem:[#allocation4 + $0x128] sm:$0xff] %vm409, 0.0
        %448 = vst.msk [vmem:[#allocation4 + $0x130] sm:$0xff] %vm409, 0.0
        %449 = vst.msk [vmem:[#allocation4 + $0x138] sm:$0xff] %vm409, 0.0
        %450 = vst.msk [vmem:[#allocation4 + $0x140] sm:$0xff] %vm409, 0.0
        %451 = vst.msk [vmem:[#allocation4 + $0x148] sm:$0xff] %vm409, 0.0
        %452 = vst.msk [vmem:[#allocation4 + $0x150] sm:$0xff] %vm409, 0.0
        %453 = vst.msk [vmem:[#allocation4 + $0x158] sm:$0xff] %vm409, 0.0
        %454 = vst.msk [vmem:[#allocation4 + $0x160] sm:$0xff] %vm409, 0.0
        %455 = vst.msk [vmem:[#allocation4 + $0x168] sm:$0xff] %vm409, 0.0
        %456 = vst.msk [vmem:[#allocation4 + $0x170] sm:$0xff] %vm409, 0.0
        %457 = vst.msk [vmem:[#allocation4 + $0x178] sm:$0xff] %vm409, 0.0
        %458 = vst.msk [vmem:[#allocation4 + $0x180] sm:$0xff] %vm409, 0.0
        %459 = vst.msk [vmem:[#allocation4 + $0x188] sm:$0xff] %vm409, 0.0
        %460 = vst.msk [vmem:[#allocation4 + $0x190] sm:$0xff] %vm409, 0.0
        %461 = vst.msk [vmem:[#allocation4 + $0x198] sm:$0xff] %vm409, 0.0
        %462 = vst.msk [vmem:[#allocation4 + $0x1a0] sm:$0xff] %vm409, 0.0
        %463 = vst.msk [vmem:[#allocation4 + $0x1a8] sm:$0xff] %vm409, 0.0
        %464 = vst.msk [vmem:[#allocation4 + $0x1b0] sm:$0xff] %vm409, 0.0
        %465 = vst.msk [vmem:[#allocation4 + $0x1b8] sm:$0xff] %vm409, 0.0
        %466 = vst.msk [vmem:[#allocation4 + $0x1c0] sm:$0xff] %vm409, 0.0
        %467 = vst.msk [vmem:[#allocation4 + $0x1c8] sm:$0xff] %vm409, 0.0
        %468 = vst.msk [vmem:[#allocation4 + $0x1d0] sm:$0xff] %vm409, 0.0
        %469 = vst.msk [vmem:[#allocation4 + $0x1d8] sm:$0xff] %vm409, 0.0
        %470 = vst.msk [vmem:[#allocation4 + $0x1e0] sm:$0xff] %vm409, 0.0
        %471 = vst.msk [vmem:[#allocation4 + $0x1e8] sm:$0xff] %vm409, 0.0
        %472 = vst.msk [vmem:[#allocation4 + $0x1f0] sm:$0xff] %vm409, 0.0
        %473 = vst.msk [vmem:[#allocation4 + $0x1f8] sm:$0xff] %vm409, 0.0
      $region36: #{_lambda_.4} parent=31 // pred_fallthru
        _
      %v474 = vld [vmem:[%s249] sm:$0xff]
      %v475 = vld [vmem:[%s249 + $0x8] sm:$0xff]
      %v476 = vld [vmem:[%s249 + $0x10] sm:$0xff]
      %v477 = vld [vmem:[%s249 + $0x18] sm:$0xff]
      %v478 = vld [vmem:[%s249 + $0x20] sm:$0xff]
      %v479 = vld [vmem:[%s249 + $0x28] sm:$0xff]
      %v480 = vld [vmem:[%s249 + $0x30] sm:$0xff]
      %v481 = vld [vmem:[%s249 + $0x38] sm:$0xff]
      %v482 = vld [vmem:[%s249 + $0x40] sm:$0xff]
      %v483 = vld [vmem:[%s249 + $0x48] sm:$0xff]
      %v484 = vld [vmem:[%s249 + $0x50] sm:$0xff]
      %v485 = vld [vmem:[%s249 + $0x58] sm:$0xff]
      %v486 = vld [vmem:[%s249 + $0x60] sm:$0xff]
      %v487 = vld [vmem:[%s249 + $0x68] sm:$0xff]
      %v488 = vld [vmem:[%s249 + $0x70] sm:$0xff]
      %v489 = vld [vmem:[%s249 + $0x78] sm:$0xff]
      %v490 = vld [vmem:[%s249 + $0x80] sm:$0xff]
      %v491 = vld [vmem:[%s249 + $0x88] sm:$0xff]
      %v492 = vld [vmem:[%s249 + $0x90] sm:$0xff]
      %v493 = vld [vmem:[%s249 + $0x98] sm:$0xff]
      %v494 = vld [vmem:[%s249 + $0xa0] sm:$0xff]
      %v495 = vld [vmem:[%s249 + $0xa8] sm:$0xff]
      %v496 = vld [vmem:[%s249 + $0xb0] sm:$0xff]
      %v497 = vld [vmem:[%s249 + $0xb8] sm:$0xff]
      %v498 = vld [vmem:[%s249 + $0xc0] sm:$0xff]
      %v499 = vld [vmem:[%s249 + $0xc8] sm:$0xff]
      %v500 = vld [vmem:[%s249 + $0xd0] sm:$0xff]
      %v501 = vld [vmem:[%s249 + $0xd8] sm:$0xff]
      %v502 = vld [vmem:[%s249 + $0xe0] sm:$0xff]
      %v503 = vld [vmem:[%s249 + $0xe8] sm:$0xff]
      %v504 = vld [vmem:[%s249 + $0xf0] sm:$0xff]
      %v505 = vld [vmem:[%s249 + $0xf8] sm:$0xff]
      %v506 = vld [vmem:[%s249 + $0x100] sm:$0xff]
      %v507 = vld [vmem:[%s249 + $0x108] sm:$0xff]
      %v508 = vld [vmem:[%s249 + $0x110] sm:$0xff]
      %v509 = vld [vmem:[%s249 + $0x118] sm:$0xff]
      %v510 = vld [vmem:[%s249 + $0x120] sm:$0xff]
      %v511 = vld [vmem:[%s249 + $0x128] sm:$0xff]
      %v512 = vld [vmem:[%s249 + $0x130] sm:$0xff]
      %v513 = vld [vmem:[%s249 + $0x138] sm:$0xff]
      %v514 = vld [vmem:[%s249 + $0x140] sm:$0xff]
      %v515 = vld [vmem:[%s249 + $0x148] sm:$0xff]
      %v516 = vld [vmem:[%s249 + $0x150] sm:$0xff]
      %v517 = vld [vmem:[%s249 + $0x158] sm:$0xff]
      %v518 = vld [vmem:[%s249 + $0x160] sm:$0xff]
      %v519 = vld [vmem:[%s249 + $0x168] sm:$0xff]
      %v520 = vld [vmem:[%s249 + $0x170] sm:$0xff]
      %v521 = vld [vmem:[%s249 + $0x178] sm:$0xff]
      %v522 = vld [vmem:[%s249 + $0x180] sm:$0xff]
      %v523 = vld [vmem:[%s249 + $0x188] sm:$0xff]
      %v524 = vld [vmem:[%s249 + $0x190] sm:$0xff]
      %v525 = vld [vmem:[%s249 + $0x198] sm:$0xff]
      %v526 = vld [vmem:[%s249 + $0x1a0] sm:$0xff]
      %v527 = vld [vmem:[%s249 + $0x1a8] sm:$0xff]
      %v528 = vld [vmem:[%s249 + $0x1b0] sm:$0xff]
      %v529 = vld [vmem:[%s249 + $0x1b8] sm:$0xff]
      %v530 = vld [vmem:[%s249 + $0x1c0] sm:$0xff]
      %v531 = vld [vmem:[%s249 + $0x1c8] sm:$0xff]
      %v532 = vld [vmem:[%s249 + $0x1d0] sm:$0xff]
      %v533 = vld [vmem:[%s249 + $0x1d8] sm:$0xff]
      %v534 = vld [vmem:[%s249 + $0x1e0] sm:$0xff]
      %v535 = vld [vmem:[%s249 + $0x1e8] sm:$0xff]
      %v536 = vld [vmem:[%s249 + $0x1f0] sm:$0xff]
      %v537 = vld [vmem:[%s249 + $0x1f8] sm:$0xff]
      %v538 = vld [vmem:[%s257] sm:$0xf]
      %vm539 = vcmask 31744
      %v541 = vsel %vm539, %v474, 0
      %v544 = vsel %vm539, %v475, 0
      %v547 = vsel %vm539, %v476, 0
      %v550 = vsel %vm539, %v477, 0
      %v553 = vsel %vm539, %v478, 0
      %v556 = vsel %vm539, %v479, 0
      %v559 = vsel %vm539, %v480, 0
      %v562 = vsel %vm539, %v481, 0
      %v565 = vsel %vm539, %v482, 0
      %v568 = vsel %vm539, %v483, 0
      %v571 = vsel %vm539, %v484, 0
      %v574 = vsel %vm539, %v485, 0
      %v577 = vsel %vm539, %v486, 0
      %v580 = vsel %vm539, %v487, 0
      %v583 = vsel %vm539, %v488, 0
      %v586 = vsel %vm539, %v489, 0
      %v589 = vsel %vm539, %v490, 0
      %v592 = vsel %vm539, %v491, 0
      %v595 = vsel %vm539, %v492, 0
      %v598 = vsel %vm539, %v493, 0
      %v601 = vsel %vm539, %v494, 0
      %v604 = vsel %vm539, %v495, 0
      %v607 = vsel %vm539, %v496, 0
      %v610 = vsel %vm539, %v497, 0
      %v613 = vsel %vm539, %v498, 0
      %v616 = vsel %vm539, %v499, 0
      %v619 = vsel %vm539, %v500, 0
      %v622 = vsel %vm539, %v501, 0
      %v625 = vsel %vm539, %v502, 0
      %v628 = vsel %vm539, %v503, 0
      %v631 = vsel %vm539, %v504, 0
      %v634 = vsel %vm539, %v505, 0
      %v637 = vsel %vm539, %v506, 0
      %v640 = vsel %vm539, %v507, 0
      %v643 = vsel %vm539, %v508, 0
      %v646 = vsel %vm539, %v509, 0
      %v649 = vsel %vm539, %v510, 0
      %v652 = vsel %vm539, %v511, 0
      %v655 = vsel %vm539, %v512, 0
      %v658 = vsel %vm539, %v513, 0
      %v661 = vsel %vm539, %v514, 0
      %v664 = vsel %vm539, %v515, 0
      %v667 = vsel %vm539, %v516, 0
      %v670 = vsel %vm539, %v517, 0
      %v673 = vsel %vm539, %v518, 0
      %v676 = vsel %vm539, %v519, 0
      %v679 = vsel %vm539, %v520, 0
      %v682 = vsel %vm539, %v521, 0
      %v685 = vsel %vm539, %v522, 0
      %v688 = vsel %vm539, %v523, 0
      %v691 = vsel %vm539, %v524, 0
      %v694 = vsel %vm539, %v525, 0
      %v697 = vsel %vm539, %v526, 0
      %v700 = vsel %vm539, %v527, 0
      %v703 = vsel %vm539, %v528, 0
      %v706 = vsel %vm539, %v529, 0
      %v709 = vsel %vm539, %v530, 0
      %v712 = vsel %vm539, %v531, 0
      %v715 = vsel %vm539, %v532, 0
      %v718 = vsel %vm539, %v533, 0
      %v721 = vsel %vm539, %v534, 0
      %v724 = vsel %vm539, %v535, 0
      %v727 = vsel %vm539, %v536, 0
      %v730 = vsel %vm539, %v537, 0
      %vm732 = vcmask 1043456
      %v734 = vsel %vm732, %v538, 0
      %736 = vmatprep.subr.mxu0 0.0
      %737 = vmatpush1.msra.mxu0 %v734
      %738 = vmatprep.subr.mxu0 0.0
      %739 = vmatpush1.msra.mxu0 0.0
      %740 = vmatprep.subr.mxu0 0.0
      %741 = vmatpush1.msra.mxu0 0.0
      %742 = vmatprep.subr.mxu0 0.0
      %743 = vmatpush1.msra.mxu0 0.0
      %744 = vmatprep.subr.mxu0 0.0
      %745 = vmatpush1.msra.mxu0 0.0
      %746 = vmatprep.subr.mxu0 0.0
      %747 = vmatpush1.msra.mxu0 0.0
      %748 = vmatprep.subr.mxu0 0.0
      %749 = vmatpush1.msra.mxu0 0.0
      %750 = vmatprep.subr.mxu0 0.0
      %751 = vmatpush1.msra.mxu0 0.0
      %752 = vmatprep.subr.mxu0 0.0
      %753 = vmatpush1.msra.mxu0 0.0
      %754 = vmatprep.subr.mxu0 0.0
      %755 = vmatpush1.msra.mxu0 0.0
      %756 = vmatprep.subr.mxu0 0.0
      %757 = vmatpush1.msra.mxu0 0.0
      %758 = vmatprep.subr.mxu0 0.0
      %759 = vmatpush1.msra.mxu0 0.0
      %760 = vmatprep.subr.mxu0 0.0
      %761 = vmatpush1.msra.mxu0 0.0
      %762 = vmatprep.subr.mxu0 0.0
      %763 = vmatpush1.msra.mxu0 0.0
      %764 = vmatprep.subr.mxu0 0.0
      %765 = vmatpush1.msra.mxu0 0.0
      %766 = vmatprep.subr.mxu0 0.0
      %767 = vmatpush1.msra.mxu0 0.0
      %768 = vmatprep.subr.mxu0 0.0
      %769 = vmatpush1.msra.mxu0 0.0
      %770 = vmatprep.subr.mxu0 0.0
      %771 = vmatpush1.msra.mxu0 0.0
      %772 = vmatprep.subr.mxu0 0.0
      %773 = vmatpush1.msra.mxu0 0.0
      %774 = vmatprep.subr.mxu0 0.0
      %775 = vmatpush1.msra.mxu0 0.0
      %776 = vmatprep.subr.mxu0 0.0
      %777 = vmatpush1.msra.mxu0 0.0
      %778 = vmatprep.subr.mxu0 0.0
      %779 = vmatpush1.msra.mxu0 0.0
      %780 = vmatprep.subr.mxu0 0.0
      %781 = vmatpush1.msra.mxu0 0.0
      %782 = vmatprep.subr.mxu0 0.0
      %783 = vmatpush1.msra.mxu0 0.0
      %784 = vmatprep.subr.mxu0 0.0
      %785 = vmatpush1.msra.mxu0 0.0
      %786 = vmatprep.subr.mxu0 0.0
      %787 = vmatpush1.msra.mxu0 0.0
      %788 = vmatprep.subr.mxu0 0.0
      %789 = vmatpush1.msra.mxu0 0.0
      %790 = vmatprep.subr.mxu0 0.0
      %791 = vmatpush1.msra.mxu0 0.0
      %792 = vmatprep.subr.mxu0 0.0
      %793 = vmatpush1.msra.mxu0 0.0
      %794 = vmatprep.subr.mxu0 0.0
      %795 = vmatpush1.msra.mxu0 0.0
      %796 = vmatprep.subr.mxu0 0.0
      %797 = vmatpush1.msra.mxu0 0.0
      %798 = vmatprep.subr.mxu0 0.0
      %799 = vmatpush1.msra.mxu0 0.0
      %800 = vmatprep.mubr.f32.mxu0 0.0
      %801 = vmatmul.mubr.f32.gmra.mrb[0].mxu0 %v541
      %v802 = vpop.f32.mrb[0].mxu0
      %v803 = vadd.f32 0.0, %v802
      %v804 = vpop.f32.mrb[0].mxu0
      %805 = vmatprep.mubr.f32.mxu0 0.0
      %806 = vmatmul.mubr.f32.gmra.mrb[0].mxu0 %v544
      %v807 = vpop.f32.mrb[0].mxu0
      %v808 = vadd.f32 0.0, %v807
      %v809 = vpop.f32.mrb[0].mxu0
      %810 = vmatprep.mubr.f32.mxu0 0.0
      %811 = vmatmul.mubr.f32.gmra.mrb[0].mxu0 %v547
      %v812 = vpop.f32.mrb[0].mxu0
      %v813 = vadd.f32 0.0, %v812
      %v814 = vpop.f32.mrb[0].mxu0
      %815 = vmatprep.mubr.f32.mxu0 0.0
      %816 = vmatmul.mubr.f32.gmra.mrb[0].mxu0 %v550
      %v817 = vpop.f32.mrb[0].mxu0
      %v818 = vadd.f32 0.0, %v817
      %v819 = vpop.f32.mrb[0].mxu0
      %820 = vmatprep.mubr.f32.mxu0 0.0
      %821 = vmatmul.mubr.f32.gmra.mrb[0].mxu0 %v553
      %v822 = vpop.f32.mrb[0].mxu0
      %v823 = vadd.f32 0.0, %v822
      %v824 = vpop.f32.mrb[0].mxu0
      %825 = vmatprep.mubr.f32.mxu0 0.0
      %826 = vmatmul.mubr.f32.gmra.mrb[0].mxu0 %v556
      %v827 = vpop.f32.mrb[0].mxu0
      %v828 = vadd.f32 0.0, %v827
      %v829 = vpop.f32.mrb[0].mxu0
      %830 = vmatprep.mubr.f32.mxu0 0.0
      %831 = vmatmul.mubr.f32.gmra.mrb[0].mxu0 %v559
      %v832 = vpop.f32.mrb[0].mxu0
      %v833 = vadd.f32 0.0, %v832
      %v834 = vpop.f32.mrb[0].mxu0
      %835 = vmatprep.mubr.f32.mxu0 0.0
      %836 = vmatmul.mubr.f32.gmra.mrb[0].mxu0 %v562
      %v837 = vpop.f32.mrb[0].mxu0
      %v838 = vadd.f32 0.0, %v837
      %v839 = vpop.f32.mrb[0].mxu0
      %840 = vmatprep.mubr.f32.mxu0 0.0
      %841 = vmatmul.mubr.f32.gmra.mrb[0].mxu0 %v565
      %v842 = vpop.f32.mrb[0].mxu0
      %v843 = vadd.f32 0.0, %v842
      %v844 = vpop.f32.mrb[0].mxu0
      %845 = vmatprep.mubr.f32.mxu0 0.0
      %846 = vmatmul.mubr.f32.gmra.mrb[0].mxu0 %v568
      %v847 = vpop.f32.mrb[0].mxu0
      %v848 = vadd.f32 0.0, %v847
      %v849 = vpop.f32.mrb[0].mxu0
      %850 = vmatprep.mubr.f32.mxu0 0.0
      %851 = vmatmul.mubr.f32.gmra.mrb[0].mxu0 %v571
      %v852 = vpop.f32.mrb[0].mxu0
      %v853 = vadd.f32 0.0, %v852
      %v854 = vpop.f32.mrb[0].mxu0
      %855 = vmatprep.mubr.f32.mxu0 0.0
      %856 = vmatmul.mubr.f32.gmra.mrb[0].mxu0 %v574
      %v857 = vpop.f32.mrb[0].mxu0
      %v858 = vadd.f32 0.0, %v857
      %v859 = vpop.f32.mrb[0].mxu0
      %860 = vmatprep.mubr.f32.mxu0 0.0
      %861 = vmatmul.mubr.f32.gmra.mrb[0].mxu0 %v577
      %v862 = vpop.f32.mrb[0].mxu0
      %v863 = vadd.f32 0.0, %v862
      %v864 = vpop.f32.mrb[0].mxu0
      %865 = vmatprep.mubr.f32.mxu0 0.0
      %866 = vmatmul.mubr.f32.gmra.mrb[0].mxu0 %v580
      %v867 = vpop.f32.mrb[0].mxu0
      %v868 = vadd.f32 0.0, %v867
      %v869 = vpop.f32.mrb[0].mxu0
      %870 = vmatprep.mubr.f32.mxu0 0.0
      %871 = vmatmul.mubr.f32.gmra.mrb[0].mxu0 %v583
      %v872 = vpop.f32.mrb[0].mxu0
      %v873 = vadd.f32 0.0, %v872
      %v874 = vpop.f32.mrb[0].mxu0
      %875 = vmatprep.mubr.f32.mxu0 0.0
      %876 = vmatmul.mubr.f32.gmra.mrb[0].mxu0 %v586
      %v877 = vpop.f32.mrb[0].mxu0
      %v878 = vadd.f32 0.0, %v877
      %v879 = vpop.f32.mrb[0].mxu0
      %880 = vmatprep.mubr.f32.mxu0 0.0
      %881 = vmatmul.mubr.f32.gmra.mrb[0].mxu0 %v589
      %v882 = vpop.f32.mrb[0].mxu0
      %v883 = vadd.f32 0.0, %v882
      %v884 = vpop.f32.mrb[0].mxu0
      %885 = vmatprep.mubr.f32.mxu0 0.0
      %886 = vmatmul.mubr.f32.gmra.mrb[0].mxu0 %v592
      %v887 = vpop.f32.mrb[0].mxu0
      %v888 = vadd.f32 0.0, %v887
      %v889 = vpop.f32.mrb[0].mxu0
      %890 = vmatprep.mubr.f32.mxu0 0.0
      %891 = vmatmul.mubr.f32.gmra.mrb[0].mxu0 %v595
      %v892 = vpop.f32.mrb[0].mxu0
      %v893 = vadd.f32 0.0, %v892
      %v894 = vpop.f32.mrb[0].mxu0
      %895 = vmatprep.mubr.f32.mxu0 0.0
      %896 = vmatmul.mubr.f32.gmra.mrb[0].mxu0 %v598
      %v897 = vpop.f32.mrb[0].mxu0
      %v898 = vadd.f32 0.0, %v897
      %v899 = vpop.f32.mrb[0].mxu0
      %900 = vmatprep.mubr.f32.mxu0 0.0
      %901 = vmatmul.mubr.f32.gmra.mrb[0].mxu0 %v601
      %v902 = vpop.f32.mrb[0].mxu0
      %v903 = vadd.f32 0.0, %v902
      %v904 = vpop.f32.mrb[0].mxu0
      %905 = vmatprep.mubr.f32.mxu0 0.0
      %906 = vmatmul.mubr.f32.gmra.mrb[0].mxu0 %v604
      %v907 = vpop.f32.mrb[0].mxu0
      %v908 = vadd.f32 0.0, %v907
      %v909 = vpop.f32.mrb[0].mxu0
      %910 = vmatprep.mubr.f32.mxu0 0.0
      %911 = vmatmul.mubr.f32.gmra.mrb[0].mxu0 %v607
      %v912 = vpop.f32.mrb[0].mxu0
      %v913 = vadd.f32 0.0, %v912
      %v914 = vpop.f32.mrb[0].mxu0
      %915 = vmatprep.mubr.f32.mxu0 0.0
      %916 = vmatmul.mubr.f32.gmra.mrb[0].mxu0 %v610
      %v917 = vpop.f32.mrb[0].mxu0
      %v918 = vadd.f32 0.0, %v917
      %v919 = vpop.f32.mrb[0].mxu0
      %920 = vmatprep.mubr.f32.mxu0 0.0
      %921 = vmatmul.mubr.f32.gmra.mrb[0].mxu0 %v613
      %v922 = vpop.f32.mrb[0].mxu0
      %v923 = vadd.f32 0.0, %v922
      %v924 = vpop.f32.mrb[0].mxu0
      %925 = vmatprep.mubr.f32.mxu0 0.0
      %926 = vmatmul.mubr.f32.gmra.mrb[0].mxu0 %v616
      %v927 = vpop.f32.mrb[0].mxu0
      %v928 = vadd.f32 0.0, %v927
      %v929 = vpop.f32.mrb[0].mxu0
      %930 = vmatprep.mubr.f32.mxu0 0.0
      %931 = vmatmul.mubr.f32.gmra.mrb[0].mxu0 %v619
      %v932 = vpop.f32.mrb[0].mxu0
      %v933 = vadd.f32 0.0, %v932
      %v934 = vpop.f32.mrb[0].mxu0
      %935 = vmatprep.mubr.f32.mxu0 0.0
      %936 = vmatmul.mubr.f32.gmra.mrb[0].mxu0 %v622
      %v937 = vpop.f32.mrb[0].mxu0
      %v938 = vadd.f32 0.0, %v937
      %v939 = vpop.f32.mrb[0].mxu0
      %940 = vmatprep.mubr.f32.mxu0 0.0
      %941 = vmatmul.mubr.f32.gmra.mrb[0].mxu0 %v625
      %v942 = vpop.f32.mrb[0].mxu0
      %v943 = vadd.f32 0.0, %v942
      %v944 = vpop.f32.mrb[0].mxu0
      %945 = vmatprep.mubr.f32.mxu0 0.0
      %946 = vmatmul.mubr.f32.gmra.mrb[0].mxu0 %v628
      %v947 = vpop.f32.mrb[0].mxu0
      %v948 = vadd.f32 0.0, %v947
      %v949 = vpop.f32.mrb[0].mxu0
      %950 = vmatprep.mubr.f32.mxu0 0.0
      %951 = vmatmul.mubr.f32.gmra.mrb[0].mxu0 %v631
      %v952 = vpop.f32.mrb[0].mxu0
      %v953 = vadd.f32 0.0, %v952
      %v954 = vpop.f32.mrb[0].mxu0
      %955 = vmatprep.mubr.f32.mxu0 0.0
      %956 = vmatmul.mubr.f32.gmra.mrb[0].mxu0 %v634
      %v957 = vpop.f32.mrb[0].mxu0
      %v958 = vadd.f32 0.0, %v957
      %v959 = vpop.f32.mrb[0].mxu0
      %960 = vmatprep.mubr.f32.mxu0 0.0
      %961 = vmatmul.mubr.f32.gmra.mrb[0].mxu0 %v637
      %v962 = vpop.f32.mrb[0].mxu0
      %v963 = vadd.f32 0.0, %v962
      %v964 = vpop.f32.mrb[0].mxu0
      %965 = vmatprep.mubr.f32.mxu0 0.0
      %966 = vmatmul.mubr.f32.gmra.mrb[0].mxu0 %v640
      %v967 = vpop.f32.mrb[0].mxu0
      %v968 = vadd.f32 0.0, %v967
      %v969 = vpop.f32.mrb[0].mxu0
      %970 = vmatprep.mubr.f32.mxu0 0.0
      %971 = vmatmul.mubr.f32.gmra.mrb[0].mxu0 %v643
      %v972 = vpop.f32.mrb[0].mxu0
      %v973 = vadd.f32 0.0, %v972
      %v974 = vpop.f32.mrb[0].mxu0
      %975 = vmatprep.mubr.f32.mxu0 0.0
      %976 = vmatmul.mubr.f32.gmra.mrb[0].mxu0 %v646
      %v977 = vpop.f32.mrb[0].mxu0
      %v978 = vadd.f32 0.0, %v977
      %v979 = vpop.f32.mrb[0].mxu0
      %980 = vmatprep.mubr.f32.mxu0 0.0
      %981 = vmatmul.mubr.f32.gmra.mrb[0].mxu0 %v649
      %v982 = vpop.f32.mrb[0].mxu0
      %v983 = vadd.f32 0.0, %v982
      %v984 = vpop.f32.mrb[0].mxu0
      %985 = vmatprep.mubr.f32.mxu0 0.0
      %986 = vmatmul.mubr.f32.gmra.mrb[0].mxu0 %v652
      %v987 = vpop.f32.mrb[0].mxu0
      %v988 = vadd.f32 0.0, %v987
      %v989 = vpop.f32.mrb[0].mxu0
      %990 = vmatprep.mubr.f32.mxu0 0.0
      %991 = vmatmul.mubr.f32.gmra.mrb[0].mxu0 %v655
      %v992 = vpop.f32.mrb[0].mxu0
      %v993 = vadd.f32 0.0, %v992
      %v994 = vpop.f32.mrb[0].mxu0
      %995 = vmatprep.mubr.f32.mxu0 0.0
      %996 = vmatmul.mubr.f32.gmra.mrb[0].mxu0 %v658
      %v997 = vpop.f32.mrb[0].mxu0
      %v998 = vadd.f32 0.0, %v997
      %v999 = vpop.f32.mrb[0].mxu0
      %1000 = vmatprep.mubr.f32.mxu0 0.0
      %1001 = vmatmul.mubr.f32.gmra.mrb[0].mxu0 %v661
      %v1002 = vpop.f32.mrb[0].mxu0
      %v1003 = vadd.f32 0.0, %v1002
      %v1004 = vpop.f32.mrb[0].mxu0
      %1005 = vmatprep.mubr.f32.mxu0 0.0
      %1006 = vmatmul.mubr.f32.gmra.mrb[0].mxu0 %v664
      %v1007 = vpop.f32.mrb[0].mxu0
      %v1008 = vadd.f32 0.0, %v1007
      %v1009 = vpop.f32.mrb[0].mxu0
      %1010 = vmatprep.mubr.f32.mxu0 0.0
      %1011 = vmatmul.mubr.f32.gmra.mrb[0].mxu0 %v667
      %v1012 = vpop.f32.mrb[0].mxu0
      %v1013 = vadd.f32 0.0, %v1012
      %v1014 = vpop.f32.mrb[0].mxu0
      %1015 = vmatprep.mubr.f32.mxu0 0.0
      %1016 = vmatmul.mubr.f32.gmra.mrb[0].mxu0 %v670
      %v1017 = vpop.f32.mrb[0].mxu0
      %v1018 = vadd.f32 0.0, %v1017
      %v1019 = vpop.f32.mrb[0].mxu0
      %1020 = vmatprep.mubr.f32.mxu0 0.0
      %1021 = vmatmul.mubr.f32.gmra.mrb[0].mxu0 %v673
      %v1022 = vpop.f32.mrb[0].mxu0
      %v1023 = vadd.f32 0.0, %v1022
      %v1024 = vpop.f32.mrb[0].mxu0
      %1025 = vmatprep.mubr.f32.mxu0 0.0
      %1026 = vmatmul.mubr.f32.gmra.mrb[0].mxu0 %v676
      %v1027 = vpop.f32.mrb[0].mxu0
      %v1028 = vadd.f32 0.0, %v1027
      %v1029 = vpop.f32.mrb[0].mxu0
      %1030 = vmatprep.mubr.f32.mxu0 0.0
      %1031 = vmatmul.mubr.f32.gmra.mrb[0].mxu0 %v679
      %v1032 = vpop.f32.mrb[0].mxu0
      %v1033 = vadd.f32 0.0, %v1032
      %v1034 = vpop.f32.mrb[0].mxu0
      %1035 = vmatprep.mubr.f32.mxu0 0.0
      %1036 = vmatmul.mubr.f32.gmra.mrb[0].mxu0 %v682
      %v1037 = vpop.f32.mrb[0].mxu0
      %v1038 = vadd.f32 0.0, %v1037
      %v1039 = vpop.f32.mrb[0].mxu0
      %1040 = vmatprep.mubr.f32.mxu0 0.0
      %1041 = vmatmul.mubr.f32.gmra.mrb[0].mxu0 %v685
      %v1042 = vpop.f32.mrb[0].mxu0
      %v1043 = vadd.f32 0.0, %v1042
      %v1044 = vpop.f32.mrb[0].mxu0
      %1045 = vmatprep.mubr.f32.mxu0 0.0
      %1046 = vmatmul.mubr.f32.gmra.mrb[0].mxu0 %v688
      %v1047 = vpop.f32.mrb[0].mxu0
      %v1048 = vadd.f32 0.0, %v1047
      %v1049 = vpop.f32.mrb[0].mxu0
      %1050 = vmatprep.mubr.f32.mxu0 0.0
      %1051 = vmatmul.mubr.f32.gmra.mrb[0].mxu0 %v691
      %v1052 = vpop.f32.mrb[0].mxu0
      %v1053 = vadd.f32 0.0, %v1052
      %v1054 = vpop.f32.mrb[0].mxu0
      %1055 = vmatprep.mubr.f32.mxu0 0.0
      %1056 = vmatmul.mubr.f32.gmra.mrb[0].mxu0 %v694
      %v1057 = vpop.f32.mrb[0].mxu0
      %v1058 = vadd.f32 0.0, %v1057
      %v1059 = vpop.f32.mrb[0].mxu0
      %1060 = vmatprep.mubr.f32.mxu0 0.0
      %1061 = vmatmul.mubr.f32.gmra.mrb[0].mxu0 %v697
      %v1062 = vpop.f32.mrb[0].mxu0
      %v1063 = vadd.f32 0.0, %v1062
      %v1064 = vpop.f32.mrb[0].mxu0
      %1065 = vmatprep.mubr.f32.mxu0 0.0
      %1066 = vmatmul.mubr.f32.gmra.mrb[0].mxu0 %v700
      %v1067 = vpop.f32.mrb[0].mxu0
      %v1068 = vadd.f32 0.0, %v1067
      %v1069 = vpop.f32.mrb[0].mxu0
      %1070 = vmatprep.mubr.f32.mxu0 0.0
      %1071 = vmatmul.mubr.f32.gmra.mrb[0].mxu0 %v703
      %v1072 = vpop.f32.mrb[0].mxu0
      %v1073 = vadd.f32 0.0, %v1072
      %v1074 = vpop.f32.mrb[0].mxu0
      %1075 = vmatprep.mubr.f32.mxu0 0.0
      %1076 = vmatmul.mubr.f32.gmra.mrb[0].mxu0 %v706
      %v1077 = vpop.f32.mrb[0].mxu0
      %v1078 = vadd.f32 0.0, %v1077
      %v1079 = vpop.f32.mrb[0].mxu0
      %1080 = vmatprep.mubr.f32.mxu0 0.0
      %1081 = vmatmul.mubr.f32.gmra.mrb[0].mxu0 %v709
      %v1082 = vpop.f32.mrb[0].mxu0
      %v1083 = vadd.f32 0.0, %v1082
      %v1084 = vpop.f32.mrb[0].mxu0
      %1085 = vmatprep.mubr.f32.mxu0 0.0
      %1086 = vmatmul.mubr.f32.gmra.mrb[0].mxu0 %v712
      %v1087 = vpop.f32.mrb[0].mxu0
      %v1088 = vadd.f32 0.0, %v1087
      %v1089 = vpop.f32.mrb[0].mxu0
      %1090 = vmatprep.mubr.f32.mxu0 0.0
      %1091 = vmatmul.mubr.f32.gmra.mrb[0].mxu0 %v715
      %v1092 = vpop.f32.mrb[0].mxu0
      %v1093 = vadd.f32 0.0, %v1092
      %v1094 = vpop.f32.mrb[0].mxu0
      %1095 = vmatprep.mubr.f32.mxu0 0.0
      %1096 = vmatmul.mubr.f32.gmra.mrb[0].mxu0 %v718
      %v1097 = vpop.f32.mrb[0].mxu0
      %v1098 = vadd.f32 0.0, %v1097
      %v1099 = vpop.f32.mrb[0].mxu0
      %1100 = vmatprep.mubr.f32.mxu0 0.0
      %1101 = vmatmul.mubr.f32.gmra.mrb[0].mxu0 %v721
      %v1102 = vpop.f32.mrb[0].mxu0
      %v1103 = vadd.f32 0.0, %v1102
      %v1104 = vpop.f32.mrb[0].mxu0
      %1105 = vmatprep.mubr.f32.mxu0 0.0
      %1106 = vmatmul.mubr.f32.gmra.mrb[0].mxu0 %v724
      %v1107 = vpop.f32.mrb[0].mxu0
      %v1108 = vadd.f32 0.0, %v1107
      %v1109 = vpop.f32.mrb[0].mxu0
      %1110 = vmatprep.mubr.f32.mxu0 0.0
      %1111 = vmatmul.mubr.f32.gmra.mrb[0].mxu0 %v727
      %v1112 = vpop.f32.mrb[0].mxu0
      %v1113 = vadd.f32 0.0, %v1112
      %v1114 = vpop.f32.mrb[0].mxu0
      %1115 = vmatprep.mubr.f32.mxu0 0.0
      %1116 = vmatmul.mubr.f32.gmra.mrb[0].mxu0 %v730
      %v1117 = vpop.f32.mrb[0].mxu0
      %v1118 = vadd.f32 0.0, %v1117
      %v1119 = vpop.f32.mrb[0].mxu0
      %1120 = vdwg.mxu0
      %v1121 = vld [vmem:[#allocation2] sm:$0xff]
      %v1122 = vld [vmem:[#allocation2 + $0x8] sm:$0xff]
      %v1123 = vld [vmem:[#allocation2 + $0x10] sm:$0xff]
      %v1124 = vld [vmem:[#allocation2 + $0x18] sm:$0xff]
      %v1125 = vld [vmem:[#allocation2 + $0x20] sm:$0xff]
      %v1126 = vld [vmem:[#allocation2 + $0x28] sm:$0xff]
      %v1127 = vld [vmem:[#allocation2 + $0x30] sm:$0xff]
      %v1128 = vld [vmem:[#allocation2 + $0x38] sm:$0xff]
      %v1129 = vld [vmem:[#allocation2 + $0x40] sm:$0xff]
      %v1130 = vld [vmem:[#allocation2 + $0x48] sm:$0xff]
      %v1131 = vld [vmem:[#allocation2 + $0x50] sm:$0xff]
      %v1132 = vld [vmem:[#allocation2 + $0x58] sm:$0xff]
      %v1133 = vld [vmem:[#allocation2 + $0x60] sm:$0xff]
      %v1134 = vld [vmem:[#allocation2 + $0x68] sm:$0xff]
      %v1135 = vld [vmem:[#allocation2 + $0x70] sm:$0xff]
      %v1136 = vld [vmem:[#allocation2 + $0x78] sm:$0xff]
      %v1137 = vld [vmem:[#allocation2 + $0x80] sm:$0xff]
      %v1138 = vld [vmem:[#allocation2 + $0x88] sm:$0xff]
      %v1139 = vld [vmem:[#allocation2 + $0x90] sm:$0xff]
      %v1140 = vld [vmem:[#allocation2 + $0x98] sm:$0xff]
      %v1141 = vld [vmem:[#allocation2 + $0xa0] sm:$0xff]
      %v1142 = vld [vmem:[#allocation2 + $0xa8] sm:$0xff]
      %v1143 = vld [vmem:[#allocation2 + $0xb0] sm:$0xff]
      %v1144 = vld [vmem:[#allocation2 + $0xb8] sm:$0xff]
      %v1145 = vld [vmem:[#allocation2 + $0xc0] sm:$0xff]
      %v1146 = vld [vmem:[#allocation2 + $0xc8] sm:$0xff]
      %v1147 = vld [vmem:[#allocation2 + $0xd0] sm:$0xff]
      %v1148 = vld [vmem:[#allocation2 + $0xd8] sm:$0xff]
      %v1149 = vld [vmem:[#allocation2 + $0xe0] sm:$0xff]
      %v1150 = vld [vmem:[#allocation2 + $0xe8] sm:$0xff]
      %v1151 = vld [vmem:[#allocation2 + $0xf0] sm:$0xff]
      %v1152 = vld [vmem:[#allocation2 + $0xf8] sm:$0xff]
      %v1153 = vld [vmem:[#allocation2 + $0x100] sm:$0xff]
      %v1154 = vld [vmem:[#allocation2 + $0x108] sm:$0xff]
      %v1155 = vld [vmem:[#allocation2 + $0x110] sm:$0xff]
      %v1156 = vld [vmem:[#allocation2 + $0x118] sm:$0xff]
      %v1157 = vld [vmem:[#allocation2 + $0x120] sm:$0xff]
      %v1158 = vld [vmem:[#allocation2 + $0x128] sm:$0xff]
      %v1159 = vld [vmem:[#allocation2 + $0x130] sm:$0xff]
      %v1160 = vld [vmem:[#allocation2 + $0x138] sm:$0xff]
      %v1161 = vld [vmem:[#allocation2 + $0x140] sm:$0xff]
      %v1162 = vld [vmem:[#allocation2 + $0x148] sm:$0xff]
      %v1163 = vld [vmem:[#allocation2 + $0x150] sm:$0xff]
      %v1164 = vld [vmem:[#allocation2 + $0x158] sm:$0xff]
      %v1165 = vld [vmem:[#allocation2 + $0x160] sm:$0xff]
      %v1166 = vld [vmem:[#allocation2 + $0x168] sm:$0xff]
      %v1167 = vld [vmem:[#allocation2 + $0x170] sm:$0xff]
      %v1168 = vld [vmem:[#allocation2 + $0x178] sm:$0xff]
      %v1169 = vld [vmem:[#allocation2 + $0x180] sm:$0xff]
      %v1170 = vld [vmem:[#allocation2 + $0x188] sm:$0xff]
      %v1171 = vld [vmem:[#allocation2 + $0x190] sm:$0xff]
      %v1172 = vld [vmem:[#allocation2 + $0x198] sm:$0xff]
      %v1173 = vld [vmem:[#allocation2 + $0x1a0] sm:$0xff]
      %v1174 = vld [vmem:[#allocation2 + $0x1a8] sm:$0xff]
      %v1175 = vld [vmem:[#allocation2 + $0x1b0] sm:$0xff]
      %v1176 = vld [vmem:[#allocation2 + $0x1b8] sm:$0xff]
      %v1177 = vld [vmem:[#allocation2 + $0x1c0] sm:$0xff]
      %v1178 = vld [vmem:[#allocation2 + $0x1c8] sm:$0xff]
      %v1179 = vld [vmem:[#allocation2 + $0x1d0] sm:$0xff]
      %v1180 = vld [vmem:[#allocation2 + $0x1d8] sm:$0xff]
      %v1181 = vld [vmem:[#allocation2 + $0x1e0] sm:$0xff]
      %v1182 = vld [vmem:[#allocation2 + $0x1e8] sm:$0xff]
      %v1183 = vld [vmem:[#allocation2 + $0x1f0] sm:$0xff]
      %v1184 = vld [vmem:[#allocation2 + $0x1f8] sm:$0xff]
      %vm1185 = vcmask 523264
      %v1186 = vsel %vm1185, %v803, -inf
      %1187 = vmax.xlane.f32.xlu0 %v1186
      %v1188 = vpop.xlane.xlu0 %1187
      %v1189 = vsel %vm1185, %v808, -inf
      %1190 = vmax.xlane.f32.xlu0 %v1189
      %v1191 = vpop.xlane.xlu0 %1190
      %v1192 = vsel %vm1185, %v813, -inf
      %1193 = vmax.xlane.f32.xlu0 %v1192
      %v1194 = vpop.xlane.xlu0 %1193
      %v1195 = vsel %vm1185, %v818, -inf
      %1196 = vmax.xlane.f32.xlu0 %v1195
      %v1197 = vpop.xlane.xlu0 %1196
      %v1198 = vsel %vm1185, %v823, -inf
      %1199 = vmax.xlane.f32.xlu0 %v1198
      %v1200 = vpop.xlane.xlu0 %1199
      %v1201 = vsel %vm1185, %v828, -inf
      %1202 = vmax.xlane.f32.xlu0 %v1201
      %v1203 = vpop.xlane.xlu0 %1202
      %v1204 = vsel %vm1185, %v833, -inf
      %1205 = vmax.xlane.f32.xlu0 %v1204
      %v1206 = vpop.xlane.xlu0 %1205
      %v1207 = vsel %vm1185, %v838, -inf
      %1208 = vmax.xlane.f32.xlu0 %v1207
      %v1209 = vpop.xlane.xlu0 %1208
      %v1210 = vsel %vm1185, %v843, -inf
      %1211 = vmax.xlane.f32.xlu0 %v1210
      %v1212 = vpop.xlane.xlu0 %1211
      %v1213 = vsel %vm1185, %v848, -inf
      %1214 = vmax.xlane.f32.xlu0 %v1213
      %v1215 = vpop.xlane.xlu0 %1214
      %v1216 = vsel %vm1185, %v853, -inf
      %1217 = vmax.xlane.f32.xlu0 %v1216
      %v1218 = vpop.xlane.xlu0 %1217
      %v1219 = vsel %vm1185, %v858, -inf
      %1220 = vmax.xlane.f32.xlu0 %v1219
      %v1221 = vpop.xlane.xlu0 %1220
      %v1222 = vsel %vm1185, %v863, -inf
      %1223 = vmax.xlane.f32.xlu0 %v1222
      %v1224 = vpop.xlane.xlu0 %1223
      %v1225 = vsel %vm1185, %v868, -inf
      %1226 = vmax.xlane.f32.xlu0 %v1225
      %v1227 = vpop.xlane.xlu0 %1226
      %v1228 = vsel %vm1185, %v873, -inf
      %1229 = vmax.xlane.f32.xlu0 %v1228
      %v1230 = vpop.xlane.xlu0 %1229
      %v1231 = vsel %vm1185, %v878, -inf
      %1232 = vmax.xlane.f32.xlu0 %v1231
      %v1233 = vpop.xlane.xlu0 %1232
      %v1234 = vsel %vm1185, %v883, -inf
      %1235 = vmax.xlane.f32.xlu0 %v1234
      %v1236 = vpop.xlane.xlu0 %1235
      %v1237 = vsel %vm1185, %v888, -inf
      %1238 = vmax.xlane.f32.xlu0 %v1237
      %v1239 = vpop.xlane.xlu0 %1238
      %v1240 = vsel %vm1185, %v893, -inf
      %1241 = vmax.xlane.f32.xlu0 %v1240
      %v1242 = vpop.xlane.xlu0 %1241
      %v1243 = vsel %vm1185, %v898, -inf
      %1244 = vmax.xlane.f32.xlu0 %v1243
      %v1245 = vpop.xlane.xlu0 %1244
      %v1246 = vsel %vm1185, %v903, -inf
      %1247 = vmax.xlane.f32.xlu0 %v1246
      %v1248 = vpop.xlane.xlu0 %1247
      %v1249 = vsel %vm1185, %v908, -inf
      %1250 = vmax.xlane.f32.xlu0 %v1249
      %v1251 = vpop.xlane.xlu0 %1250
      %v1252 = vsel %vm1185, %v913, -inf
      %1253 = vmax.xlane.f32.xlu0 %v1252
      %v1254 = vpop.xlane.xlu0 %1253
      %v1255 = vsel %vm1185, %v918, -inf
      %1256 = vmax.xlane.f32.xlu0 %v1255
      %v1257 = vpop.xlane.xlu0 %1256
      %v1258 = vsel %vm1185, %v923, -inf
      %1259 = vmax.xlane.f32.xlu0 %v1258
      %v1260 = vpop.xlane.xlu0 %1259
      %v1261 = vsel %vm1185, %v928, -inf
      %1262 = vmax.xlane.f32.xlu0 %v1261
      %v1263 = vpop.xlane.xlu0 %1262
      %v1264 = vsel %vm1185, %v933, -inf
      %1265 = vmax.xlane.f32.xlu0 %v1264
      %v1266 = vpop.xlane.xlu0 %1265
      %v1267 = vsel %vm1185, %v938, -inf
      %1268 = vmax.xlane.f32.xlu0 %v1267
      %v1269 = vpop.xlane.xlu0 %1268
      %v1270 = vsel %vm1185, %v943, -inf
      %1271 = vmax.xlane.f32.xlu0 %v1270
      %v1272 = vpop.xlane.xlu0 %1271
      %v1273 = vsel %vm1185, %v948, -inf
      %1274 = vmax.xlane.f32.xlu0 %v1273
      %v1275 = vpop.xlane.xlu0 %1274
      %v1276 = vsel %vm1185, %v953, -inf
      %1277 = vmax.xlane.f32.xlu0 %v1276
      %v1278 = vpop.xlane.xlu0 %1277
      %v1279 = vsel %vm1185, %v958, -inf
      %1280 = vmax.xlane.f32.xlu0 %v1279
      %v1281 = vpop.xlane.xlu0 %1280
      %v1282 = vsel %vm1185, %v963, -inf
      %1283 = vmax.xlane.f32.xlu0 %v1282
      %v1284 = vpop.xlane.xlu0 %1283
      %v1285 = vsel %vm1185, %v968, -inf
      %1286 = vmax.xlane.f32.xlu0 %v1285
      %v1287 = vpop.xlane.xlu0 %1286
      %v1288 = vsel %vm1185, %v973, -inf
      %1289 = vmax.xlane.f32.xlu0 %v1288
      %v1290 = vpop.xlane.xlu0 %1289
      %v1291 = vsel %vm1185, %v978, -inf
      %1292 = vmax.xlane.f32.xlu0 %v1291
      %v1293 = vpop.xlane.xlu0 %1292
      %v1294 = vsel %vm1185, %v983, -inf
      %1295 = vmax.xlane.f32.xlu0 %v1294
      %v1296 = vpop.xlane.xlu0 %1295
      %v1297 = vsel %vm1185, %v988, -inf
      %1298 = vmax.xlane.f32.xlu0 %v1297
      %v1299 = vpop.xlane.xlu0 %1298
      %v1300 = vsel %vm1185, %v993, -inf
      %1301 = vmax.xlane.f32.xlu0 %v1300
      %v1302 = vpop.xlane.xlu0 %1301
      %v1303 = vsel %vm1185, %v998, -inf
      %1304 = vmax.xlane.f32.xlu0 %v1303
      %v1305 = vpop.xlane.xlu0 %1304
      %v1306 = vsel %vm1185, %v1003, -inf
      %1307 = vmax.xlane.f32.xlu0 %v1306
      %v1308 = vpop.xlane.xlu0 %1307
      %v1309 = vsel %vm1185, %v1008, -inf
      %1310 = vmax.xlane.f32.xlu0 %v1309
      %v1311 = vpop.xlane.xlu0 %1310
      %v1312 = vsel %vm1185, %v1013, -inf
      %1313 = vmax.xlane.f32.xlu0 %v1312
      %v1314 = vpop.xlane.xlu0 %1313
      %v1315 = vsel %vm1185, %v1018, -inf
      %1316 = vmax.xlane.f32.xlu0 %v1315
      %v1317 = vpop.xlane.xlu0 %1316
      %v1318 = vsel %vm1185, %v1023, -inf
      %1319 = vmax.xlane.f32.xlu0 %v1318
      %v1320 = vpop.xlane.xlu0 %1319
      %v1321 = vsel %vm1185, %v1028, -inf
      %1322 = vmax.xlane.f32.xlu0 %v1321
      %v1323 = vpop.xlane.xlu0 %1322
      %v1324 = vsel %vm1185, %v1033, -inf
      %1325 = vmax.xlane.f32.xlu0 %v1324
      %v1326 = vpop.xlane.xlu0 %1325
      %v1327 = vsel %vm1185, %v1038, -inf
      %1328 = vmax.xlane.f32.xlu0 %v1327
      %v1329 = vpop.xlane.xlu0 %1328
      %v1330 = vsel %vm1185, %v1043, -inf
      %1331 = vmax.xlane.f32.xlu0 %v1330
      %v1332 = vpop.xlane.xlu0 %1331
      %v1333 = vsel %vm1185, %v1048, -inf
      %1334 = vmax.xlane.f32.xlu0 %v1333
      %v1335 = vpop.xlane.xlu0 %1334
      %v1336 = vsel %vm1185, %v1053, -inf
      %1337 = vmax.xlane.f32.xlu0 %v1336
      %v1338 = vpop.xlane.xlu0 %1337
      %v1339 = vsel %vm1185, %v1058, -inf
      %1340 = vmax.xlane.f32.xlu0 %v1339
      %v1341 = vpop.xlane.xlu0 %1340
      %v1342 = vsel %vm1185, %v1063, -inf
      %1343 = vmax.xlane.f32.xlu0 %v1342
      %v1344 = vpop.xlane.xlu0 %1343
      %v1345 = vsel %vm1185, %v1068, -inf
      %1346 = vmax.xlane.f32.xlu0 %v1345
      %v1347 = vpop.xlane.xlu0 %1346
      %v1348 = vsel %vm1185, %v1073, -inf
      %1349 = vmax.xlane.f32.xlu0 %v1348
      %v1350 = vpop.xlane.xlu0 %1349
      %v1351 = vsel %vm1185, %v1078, -inf
      %1352 = vmax.xlane.f32.xlu0 %v1351
      %v1353 = vpop.xlane.xlu0 %1352
      %v1354 = vsel %vm1185, %v1083, -inf
      %1355 = vmax.xlane.f32.xlu0 %v1354
      %v1356 = vpop.xlane.xlu0 %1355
      %v1357 = vsel %vm1185, %v1088, -inf
      %1358 = vmax.xlane.f32.xlu0 %v1357
      %v1359 = vpop.xlane.xlu0 %1358
      %v1360 = vsel %vm1185, %v1093, -inf
      %1361 = vmax.xlane.f32.xlu0 %v1360
      %v1362 = vpop.xlane.xlu0 %1361
      %v1363 = vsel %vm1185, %v1098, -inf
      %1364 = vmax.xlane.f32.xlu0 %v1363
      %v1365 = vpop.xlane.xlu0 %1364
      %v1366 = vsel %vm1185, %v1103, -inf
      %1367 = vmax.xlane.f32.xlu0 %v1366
      %v1368 = vpop.xlane.xlu0 %1367
      %v1369 = vsel %vm1185, %v1108, -inf
      %1370 = vmax.xlane.f32.xlu0 %v1369
      %v1371 = vpop.xlane.xlu0 %1370
      %v1372 = vsel %vm1185, %v1113, -inf
      %1373 = vmax.xlane.f32.xlu0 %v1372
      %v1374 = vpop.xlane.xlu0 %1373
      %v1375 = vsel %vm1185, %v1118, -inf
      %1376 = vmax.xlane.f32.xlu0 %v1375
      %v1377 = vpop.xlane.xlu0 %1376
      %v1378 = vmax.f32 %v1121, %v1188
      %v1379 = vmax.f32 %v1122, %v1191
      %v1380 = vmax.f32 %v1123, %v1194
      %v1381 = vmax.f32 %v1124, %v1197
      %v1382 = vmax.f32 %v1125, %v1200
      %v1383 = vmax.f32 %v1126, %v1203
      %v1384 = vmax.f32 %v1127, %v1206
      %v1385 = vmax.f32 %v1128, %v1209
      %v1386 = vmax.f32 %v1129, %v1212
      %v1387 = vmax.f32 %v1130, %v1215
      %v1388 = vmax.f32 %v1131, %v1218
      %v1389 = vmax.f32 %v1132, %v1221
      %v1390 = vmax.f32 %v1133, %v1224
      %v1391 = vmax.f32 %v1134, %v1227
      %v1392 = vmax.f32 %v1135, %v1230
      %v1393 = vmax.f32 %v1136, %v1233
      %v1394 = vmax.f32 %v1137, %v1236
      %v1395 = vmax.f32 %v1138, %v1239
      %v1396 = vmax.f32 %v1139, %v1242
      %v1397 = vmax.f32 %v1140, %v1245
      %v1398 = vmax.f32 %v1141, %v1248
      %v1399 = vmax.f32 %v1142, %v1251
      %v1400 = vmax.f32 %v1143, %v1254
      %v1401 = vmax.f32 %v1144, %v1257
      %v1402 = vmax.f32 %v1145, %v1260
      %v1403 = vmax.f32 %v1146, %v1263
      %v1404 = vmax.f32 %v1147, %v1266
      %v1405 = vmax.f32 %v1148, %v1269
      %v1406 = vmax.f32 %v1149, %v1272
      %v1407 = vmax.f32 %v1150, %v1275
      %v1408 = vmax.f32 %v1151, %v1278
      %v1409 = vmax.f32 %v1152, %v1281
      %v1410 = vmax.f32 %v1153, %v1284
      %v1411 = vmax.f32 %v1154, %v1287
      %v1412 = vmax.f32 %v1155, %v1290
      %v1413 = vmax.f32 %v1156, %v1293
      %v1414 = vmax.f32 %v1157, %v1296
      %v1415 = vmax.f32 %v1158, %v1299
      %v1416 = vmax.f32 %v1159, %v1302
      %v1417 = vmax.f32 %v1160, %v1305
      %v1418 = vmax.f32 %v1161, %v1308
      %v1419 = vmax.f32 %v1162, %v1311
      %v1420 = vmax.f32 %v1163, %v1314
      %v1421 = vmax.f32 %v1164, %v1317
      %v1422 = vmax.f32 %v1165, %v1320
      %v1423 = vmax.f32 %v1166, %v1323
      %v1424 = vmax.f32 %v1167, %v1326
      %v1425 = vmax.f32 %v1168, %v1329
      %v1426 = vmax.f32 %v1169, %v1332
      %v1427 = vmax.f32 %v1170, %v1335
      %v1428 = vmax.f32 %v1171, %v1338
      %v1429 = vmax.f32 %v1172, %v1341
      %v1430 = vmax.f32 %v1173, %v1344
      %v1431 = vmax.f32 %v1174, %v1347
      %v1432 = vmax.f32 %v1175, %v1350
      %v1433 = vmax.f32 %v1176, %v1353
      %v1434 = vmax.f32 %v1177, %v1356
      %v1435 = vmax.f32 %v1178, %v1359
      %v1436 = vmax.f32 %v1179, %v1362
      %v1437 = vmax.f32 %v1180, %v1365
      %v1438 = vmax.f32 %v1181, %v1368
      %v1439 = vmax.f32 %v1182, %v1371
      %v1440 = vmax.f32 %v1183, %v1374
      %v1441 = vmax.f32 %v1184, %v1377
      %v1442 = vsub.f32 %v1121, %v1378
      %v1443 = vsub.f32 %v1122, %v1379
      %v1444 = vsub.f32 %v1123, %v1380
      %v1445 = vsub.f32 %v1124, %v1381
      %v1446 = vsub.f32 %v1125, %v1382
      %v1447 = vsub.f32 %v1126, %v1383
      %v1448 = vsub.f32 %v1127, %v1384
      %v1449 = vsub.f32 %v1128, %v1385
      %v1450 = vsub.f32 %v1129, %v1386
      %v1451 = vsub.f32 %v1130, %v1387
      %v1452 = vsub.f32 %v1131, %v1388
      %v1453 = vsub.f32 %v1132, %v1389
      %v1454 = vsub.f32 %v1133, %v1390
      %v1455 = vsub.f32 %v1134, %v1391
      %v1456 = vsub.f32 %v1135, %v1392
      %v1457 = vsub.f32 %v1136, %v1393
      %v1458 = vsub.f32 %v1137, %v1394
      %v1459 = vsub.f32 %v1138, %v1395
      %v1460 = vsub.f32 %v1139, %v1396
      %v1461 = vsub.f32 %v1140, %v1397
      %v1462 = vsub.f32 %v1141, %v1398
      %v1463 = vsub.f32 %v1142, %v1399
      %v1464 = vsub.f32 %v1143, %v1400
      %v1465 = vsub.f32 %v1144, %v1401
      %v1466 = vsub.f32 %v1145, %v1402
      %v1467 = vsub.f32 %v1146, %v1403
      %v1468 = vsub.f32 %v1147, %v1404
      %v1469 = vsub.f32 %v1148, %v1405
      %v1470 = vsub.f32 %v1149, %v1406
      %v1471 = vsub.f32 %v1150, %v1407
      %v1472 = vsub.f32 %v1151, %v1408
      %v1473 = vsub.f32 %v1152, %v1409
      %v1474 = vsub.f32 %v1153, %v1410
      %v1475 = vsub.f32 %v1154, %v1411
      %v1476 = vsub.f32 %v1155, %v1412
      %v1477 = vsub.f32 %v1156, %v1413
      %v1478 = vsub.f32 %v1157, %v1414
      %v1479 = vsub.f32 %v1158, %v1415
      %v1480 = vsub.f32 %v1159, %v1416
      %v1481 = vsub.f32 %v1160, %v1417
      %v1482 = vsub.f32 %v1161, %v1418
      %v1483 = vsub.f32 %v1162, %v1419
      %v1484 = vsub.f32 %v1163, %v1420
      %v1485 = vsub.f32 %v1164, %v1421
      %v1486 = vsub.f32 %v1165, %v1422
      %v1487 = vsub.f32 %v1166, %v1423
      %v1488 = vsub.f32 %v1167, %v1424
      %v1489 = vsub.f32 %v1168, %v1425
      %v1490 = vsub.f32 %v1169, %v1426
      %v1491 = vsub.f32 %v1170, %v1427
      %v1492 = vsub.f32 %v1171, %v1428
      %v1493 = vsub.f32 %v1172, %v1429
      %v1494 = vsub.f32 %v1173, %v1430
      %v1495 = vsub.f32 %v1174, %v1431
      %v1496 = vsub.f32 %v1175, %v1432
      %v1497 = vsub.f32 %v1176, %v1433
      %v1498 = vsub.f32 %v1177, %v1434
      %v1499 = vsub.f32 %v1178, %v1435
      %v1500 = vsub.f32 %v1179, %v1436
      %v1501 = vsub.f32 %v1180, %v1437
      %v1502 = vsub.f32 %v1181, %v1438
      %v1503 = vsub.f32 %v1182, %v1439
      %v1504 = vsub.f32 %v1183, %v1440
      %v1505 = vsub.f32 %v1184, %v1441
      %v1506 = vmul.f32 %v1442, 1.442695
      %v1507 = vpow.pop %v1506
      %v1508 = vmul.f32 %v1443, 1.442695
      %v1509 = vpow.pop %v1508
      %v1510 = vmul.f32 %v1444, 1.442695
      %v1511 = vpow.pop %v1510
      %v1512 = vmul.f32 %v1445, 1.442695
      %v1513 = vpow.pop %v1512
      %v1514 = vmul.f32 %v1446, 1.442695
      %v1515 = vpow.pop %v1514
      %v1516 = vmul.f32 %v1447, 1.442695
      %v1517 = vpow.pop %v1516
      %v1518 = vmul.f32 %v1448, 1.442695
      %v1519 = vpow.pop %v1518
      %v1520 = vmul.f32 %v1449, 1.442695
      %v1521 = vpow.pop %v1520
      %v1522 = vmul.f32 %v1450, 1.442695
      %v1523 = vpow.pop %v1522
      %v1524 = vmul.f32 %v1451, 1.442695
      %v1525 = vpow.pop %v1524
      %v1526 = vmul.f32 %v1452, 1.442695
      %v1527 = vpow.pop %v1526
      %v1528 = vmul.f32 %v1453, 1.442695
      %v1529 = vpow.pop %v1528
      %v1530 = vmul.f32 %v1454, 1.442695
      %v1531 = vpow.pop %v1530
      %v1532 = vmul.f32 %v1455, 1.442695
      %v1533 = vpow.pop %v1532
      %v1534 = vmul.f32 %v1456, 1.442695
      %v1535 = vpow.pop %v1534
      %v1536 = vmul.f32 %v1457, 1.442695
      %v1537 = vpow.pop %v1536
      %v1538 = vmul.f32 %v1458, 1.442695
      %v1539 = vpow.pop %v1538
      %v1540 = vmul.f32 %v1459, 1.442695
      %v1541 = vpow.pop %v1540
      %v1542 = vmul.f32 %v1460, 1.442695
      %v1543 = vpow.pop %v1542
      %v1544 = vmul.f32 %v1461, 1.442695
      %v1545 = vpow.pop %v1544
      %v1546 = vmul.f32 %v1462, 1.442695
      %v1547 = vpow.pop %v1546
      %v1548 = vmul.f32 %v1463, 1.442695
      %v1549 = vpow.pop %v1548
      %v1550 = vmul.f32 %v1464, 1.442695
      %v1551 = vpow.pop %v1550
      %v1552 = vmul.f32 %v1465, 1.442695
      %v1553 = vpow.pop %v1552
      %v1554 = vmul.f32 %v1466, 1.442695
      %v1555 = vpow.pop %v1554
      %v1556 = vmul.f32 %v1467, 1.442695
      %v1557 = vpow.pop %v1556
      %v1558 = vmul.f32 %v1468, 1.442695
      %v1559 = vpow.pop %v1558
      %v1560 = vmul.f32 %v1469, 1.442695
      %v1561 = vpow.pop %v1560
      %v1562 = vmul.f32 %v1470, 1.442695
      %v1563 = vpow.pop %v1562
      %v1564 = vmul.f32 %v1471, 1.442695
      %v1565 = vpow.pop %v1564
      %v1566 = vmul.f32 %v1472, 1.442695
      %v1567 = vpow.pop %v1566
      %v1568 = vmul.f32 %v1473, 1.442695
      %v1569 = vpow.pop %v1568
      %v1570 = vmul.f32 %v1474, 1.442695
      %v1571 = vpow.pop %v1570
      %v1572 = vmul.f32 %v1475, 1.442695
      %v1573 = vpow.pop %v1572
      %v1574 = vmul.f32 %v1476, 1.442695
      %v1575 = vpow.pop %v1574
      %v1576 = vmul.f32 %v1477, 1.442695
      %v1577 = vpow.pop %v1576
      %v1578 = vmul.f32 %v1478, 1.442695
      %v1579 = vpow.pop %v1578
      %v1580 = vmul.f32 %v1479, 1.442695
      %v1581 = vpow.pop %v1580
      %v1582 = vmul.f32 %v1480, 1.442695
      %v1583 = vpow.pop %v1582
      %v1584 = vmul.f32 %v1481, 1.442695
      %v1585 = vpow.pop %v1584
      %v1586 = vmul.f32 %v1482, 1.442695
      %v1587 = vpow.pop %v1586
      %v1588 = vmul.f32 %v1483, 1.442695
      %v1589 = vpow.pop %v1588
      %v1590 = vmul.f32 %v1484, 1.442695
      %v1591 = vpow.pop %v1590
      %v1592 = vmul.f32 %v1485, 1.442695
      %v1593 = vpow.pop %v1592
      %v1594 = vmul.f32 %v1486, 1.442695
      %v1595 = vpow.pop %v1594
      %v1596 = vmul.f32 %v1487, 1.442695
      %v1597 = vpow.pop %v1596
      %v1598 = vmul.f32 %v1488, 1.442695
      %v1599 = vpow.pop %v1598
      %v1600 = vmul.f32 %v1489, 1.442695
      %v1601 = vpow.pop %v1600
      %v1602 = vmul.f32 %v1490, 1.442695
      %v1603 = vpow.pop %v1602
      %v1604 = vmul.f32 %v1491, 1.442695
      %v1605 = vpow.pop %v1604
      %v1606 = vmul.f32 %v1492, 1.442695
      %v1607 = vpow.pop %v1606
      %v1608 = vmul.f32 %v1493, 1.442695
      %v1609 = vpow.pop %v1608
      %v1610 = vmul.f32 %v1494, 1.442695
      %v1611 = vpow.pop %v1610
      %v1612 = vmul.f32 %v1495, 1.442695
      %v1613 = vpow.pop %v1612
      %v1614 = vmul.f32 %v1496, 1.442695
      %v1615 = vpow.pop %v1614
      %v1616 = vmul.f32 %v1497, 1.442695
      %v1617 = vpow.pop %v1616
      %v1618 = vmul.f32 %v1498, 1.442695
      %v1619 = vpow.pop %v1618
      %v1620 = vmul.f32 %v1499, 1.442695
      %v1621 = vpow.pop %v1620
      %v1622 = vmul.f32 %v1500, 1.442695
      %v1623 = vpow.pop %v1622
      %v1624 = vmul.f32 %v1501, 1.442695
      %v1625 = vpow.pop %v1624
      %v1626 = vmul.f32 %v1502, 1.442695
      %v1627 = vpow.pop %v1626
      %v1628 = vmul.f32 %v1503, 1.442695
      %v1629 = vpow.pop %v1628
      %v1630 = vmul.f32 %v1504, 1.442695
      %v1631 = vpow.pop %v1630
      %v1632 = vmul.f32 %v1505, 1.442695
      %v1633 = vpow.pop %v1632
      %1635 = vset.pattern.permute.xlu0 0
      %1636 = vperm.xlu0 %1635, %v1378
      %v1637 = vpop.permute.xlu0 %1636
      %1640 = vset.pattern.permute.xlu0 0
      %1641 = vperm.xlu0 %1640, %v1379
      %v1642 = vpop.permute.xlu0 %1641
      %1645 = vset.pattern.permute.xlu0 0
      %1646 = vperm.xlu0 %1645, %v1380
      %v1647 = vpop.permute.xlu0 %1646
      %1650 = vset.pattern.permute.xlu0 0
      %1651 = vperm.xlu0 %1650, %v1381
      %v1652 = vpop.permute.xlu0 %1651
      %1655 = vset.pattern.permute.xlu0 0
      %1656 = vperm.xlu0 %1655, %v1382
      %v1657 = vpop.permute.xlu0 %1656
      %1660 = vset.pattern.permute.xlu0 0
      %1661 = vperm.xlu0 %1660, %v1383
      %v1662 = vpop.permute.xlu0 %1661
      %1665 = vset.pattern.permute.xlu0 0
      %1666 = vperm.xlu0 %1665, %v1384
      %v1667 = vpop.permute.xlu0 %1666
      %1670 = vset.pattern.permute.xlu0 0
      %1671 = vperm.xlu0 %1670, %v1385
      %v1672 = vpop.permute.xlu0 %1671
      %1675 = vset.pattern.permute.xlu0 0
      %1676 = vperm.xlu0 %1675, %v1386
      %v1677 = vpop.permute.xlu0 %1676
      %1680 = vset.pattern.permute.xlu0 0
      %1681 = vperm.xlu0 %1680, %v1387
      %v1682 = vpop.permute.xlu0 %1681
      %1685 = vset.pattern.permute.xlu0 0
      %1686 = vperm.xlu0 %1685, %v1388
      %v1687 = vpop.permute.xlu0 %1686
      %1690 = vset.pattern.permute.xlu0 0
      %1691 = vperm.xlu0 %1690, %v1389
      %v1692 = vpop.permute.xlu0 %1691
      %1695 = vset.pattern.permute.xlu0 0
      %1696 = vperm.xlu0 %1695, %v1390
      %v1697 = vpop.permute.xlu0 %1696
      %1700 = vset.pattern.permute.xlu0 0
      %1701 = vperm.xlu0 %1700, %v1391
      %v1702 = vpop.permute.xlu0 %1701
      %1705 = vset.pattern.permute.xlu0 0
      %1706 = vperm.xlu0 %1705, %v1392
      %v1707 = vpop.permute.xlu0 %1706
      %1710 = vset.pattern.permute.xlu0 0
      %1711 = vperm.xlu0 %1710, %v1393
      %v1712 = vpop.permute.xlu0 %1711
      %1715 = vset.pattern.permute.xlu0 0
      %1716 = vperm.xlu0 %1715, %v1394
      %v1717 = vpop.permute.xlu0 %1716
      %1720 = vset.pattern.permute.xlu0 0
      %1721 = vperm.xlu0 %1720, %v1395
      %v1722 = vpop.permute.xlu0 %1721
      %1725 = vset.pattern.permute.xlu0 0
      %1726 = vperm.xlu0 %1725, %v1396
      %v1727 = vpop.permute.xlu0 %1726
      %1730 = vset.pattern.permute.xlu0 0
      %1731 = vperm.xlu0 %1730, %v1397
      %v1732 = vpop.permute.xlu0 %1731
      %1735 = vset.pattern.permute.xlu0 0
      %1736 = vperm.xlu0 %1735, %v1398
      %v1737 = vpop.permute.xlu0 %1736
      %1740 = vset.pattern.permute.xlu0 0
      %1741 = vperm.xlu0 %1740, %v1399
      %v1742 = vpop.permute.xlu0 %1741
      %1745 = vset.pattern.permute.xlu0 0
      %1746 = vperm.xlu0 %1745, %v1400
      %v1747 = vpop.permute.xlu0 %1746
      %1750 = vset.pattern.permute.xlu0 0
      %1751 = vperm.xlu0 %1750, %v1401
      %v1752 = vpop.permute.xlu0 %1751
      %1755 = vset.pattern.permute.xlu0 0
      %1756 = vperm.xlu0 %1755, %v1402
      %v1757 = vpop.permute.xlu0 %1756
      %1760 = vset.pattern.permute.xlu0 0
      %1761 = vperm.xlu0 %1760, %v1403
      %v1762 = vpop.permute.xlu0 %1761
      %1765 = vset.pattern.permute.xlu0 0
      %1766 = vperm.xlu0 %1765, %v1404
      %v1767 = vpop.permute.xlu0 %1766
      %1770 = vset.pattern.permute.xlu0 0
      %1771 = vperm.xlu0 %1770, %v1405
      %v1772 = vpop.permute.xlu0 %1771
      %1775 = vset.pattern.permute.xlu0 0
      %1776 = vperm.xlu0 %1775, %v1406
      %v1777 = vpop.permute.xlu0 %1776
      %1780 = vset.pattern.permute.xlu0 0
      %1781 = vperm.xlu0 %1780, %v1407
      %v1782 = vpop.permute.xlu0 %1781
      %1785 = vset.pattern.permute.xlu0 0
      %1786 = vperm.xlu0 %1785, %v1408
      %v1787 = vpop.permute.xlu0 %1786
      %1790 = vset.pattern.permute.xlu0 0
      %1791 = vperm.xlu0 %1790, %v1409
      %v1792 = vpop.permute.xlu0 %1791
      %1795 = vset.pattern.permute.xlu0 0
      %1796 = vperm.xlu0 %1795, %v1410
      %v1797 = vpop.permute.xlu0 %1796
      %1800 = vset.pattern.permute.xlu0 0
      %1801 = vperm.xlu0 %1800, %v1411
      %v1802 = vpop.permute.xlu0 %1801
      %1805 = vset.pattern.permute.xlu0 0
      %1806 = vperm.xlu0 %1805, %v1412
      %v1807 = vpop.permute.xlu0 %1806
      %1810 = vset.pattern.permute.xlu0 0
      %1811 = vperm.xlu0 %1810, %v1413
      %v1812 = vpop.permute.xlu0 %1811
      %1815 = vset.pattern.permute.xlu0 0
      %1816 = vperm.xlu0 %1815, %v1414
      %v1817 = vpop.permute.xlu0 %1816
      %1820 = vset.pattern.permute.xlu0 0
      %1821 = vperm.xlu0 %1820, %v1415
      %v1822 = vpop.permute.xlu0 %1821
      %1825 = vset.pattern.permute.xlu0 0
      %1826 = vperm.xlu0 %1825, %v1416
      %v1827 = vpop.permute.xlu0 %1826
      %1830 = vset.pattern.permute.xlu0 0
      %1831 = vperm.xlu0 %1830, %v1417
      %v1832 = vpop.permute.xlu0 %1831
      %1835 = vset.pattern.permute.xlu0 0
      %1836 = vperm.xlu0 %1835, %v1418
      %v1837 = vpop.permute.xlu0 %1836
      %1840 = vset.pattern.permute.xlu0 0
      %1841 = vperm.xlu0 %1840, %v1419
      %v1842 = vpop.permute.xlu0 %1841
      %1845 = vset.pattern.permute.xlu0 0
      %1846 = vperm.xlu0 %1845, %v1420
      %v1847 = vpop.permute.xlu0 %1846
      %1850 = vset.pattern.permute.xlu0 0
      %1851 = vperm.xlu0 %1850, %v1421
      %v1852 = vpop.permute.xlu0 %1851
      %1855 = vset.pattern.permute.xlu0 0
      %1856 = vperm.xlu0 %1855, %v1422
      %v1857 = vpop.permute.xlu0 %1856
      %1860 = vset.pattern.permute.xlu0 0
      %1861 = vperm.xlu0 %1860, %v1423
      %v1862 = vpop.permute.xlu0 %1861
      %1865 = vset.pattern.permute.xlu0 0
      %1866 = vperm.xlu0 %1865, %v1424
      %v1867 = vpop.permute.xlu0 %1866
      %1870 = vset.pattern.permute.xlu0 0
      %1871 = vperm.xlu0 %1870, %v1425
      %v1872 = vpop.permute.xlu0 %1871
      %1875 = vset.pattern.permute.xlu0 0
      %1876 = vperm.xlu0 %1875, %v1426
      %v1877 = vpop.permute.xlu0 %1876
      %1880 = vset.pattern.permute.xlu0 0
      %1881 = vperm.xlu0 %1880, %v1427
      %v1882 = vpop.permute.xlu0 %1881
      %1885 = vset.pattern.permute.xlu0 0
      %1886 = vperm.xlu0 %1885, %v1428
      %v1887 = vpop.permute.xlu0 %1886
      %1890 = vset.pattern.permute.xlu0 0
      %1891 = vperm.xlu0 %1890, %v1429
      %v1892 = vpop.permute.xlu0 %1891
      %1895 = vset.pattern.permute.xlu0 0
      %1896 = vperm.xlu0 %1895, %v1430
      %v1897 = vpop.permute.xlu0 %1896
      %1900 = vset.pattern.permute.xlu0 0
      %1901 = vperm.xlu0 %1900, %v1431
      %v1902 = vpop.permute.xlu0 %1901
      %1905 = vset.pattern.permute.xlu0 0
      %1906 = vperm.xlu0 %1905, %v1432
      %v1907 = vpop.permute.xlu0 %1906
      %1910 = vset.pattern.permute.xlu0 0
      %1911 = vperm.xlu0 %1910, %v1433
      %v1912 = vpop.permute.xlu0 %1911
      %1915 = vset.pattern.permute.xlu0 0
      %1916 = vperm.xlu0 %1915, %v1434
      %v1917 = vpop.permute.xlu0 %1916
      %1920 = vset.pattern.permute.xlu0 0
      %1921 = vperm.xlu0 %1920, %v1435
      %v1922 = vpop.permute.xlu0 %1921
      %1925 = vset.pattern.permute.xlu0 0
      %1926 = vperm.xlu0 %1925, %v1436
      %v1927 = vpop.permute.xlu0 %1926
      %1930 = vset.pattern.permute.xlu0 0
      %1931 = vperm.xlu0 %1930, %v1437
      %v1932 = vpop.permute.xlu0 %1931
      %1935 = vset.pattern.permute.xlu0 0
      %1936 = vperm.xlu0 %1935, %v1438
      %v1937 = vpop.permute.xlu0 %1936
      %1940 = vset.pattern.permute.xlu0 0
      %1941 = vperm.xlu0 %1940, %v1439
      %v1942 = vpop.permute.xlu0 %1941
      %1945 = vset.pattern.permute.xlu0 0
      %1946 = vperm.xlu0 %1945, %v1440
      %v1947 = vpop.permute.xlu0 %1946
      %1950 = vset.pattern.permute.xlu0 0
      %1951 = vperm.xlu0 %1950, %v1441
      %v1952 = vpop.permute.xlu0 %1951
      %v1954 = vsub.f32 %v803, %v1637
      %v1955 = vsub.f32 %v808, %v1642
      %v1956 = vsub.f32 %v813, %v1647
      %v1957 = vsub.f32 %v818, %v1652
      %v1958 = vsub.f32 %v823, %v1657
      %v1959 = vsub.f32 %v828, %v1662
      %v1960 = vsub.f32 %v833, %v1667
      %v1961 = vsub.f32 %v838, %v1672
      %v1962 = vsub.f32 %v843, %v1677
      %v1963 = vsub.f32 %v848, %v1682
      %v1964 = vsub.f32 %v853, %v1687
      %v1965 = vsub.f32 %v858, %v1692
      %v1966 = vsub.f32 %v863, %v1697
      %v1967 = vsub.f32 %v868, %v1702
      %v1968 = vsub.f32 %v873, %v1707
      %v1969 = vsub.f32 %v878, %v1712
      %v1970 = vsub.f32 %v883, %v1717
      %v1971 = vsub.f32 %v888, %v1722
      %v1972 = vsub.f32 %v893, %v1727
      %v1973 = vsub.f32 %v898, %v1732
      %v1974 = vsub.f32 %v903, %v1737
      %v1975 = vsub.f32 %v908, %v1742
      %v1976 = vsub.f32 %v913, %v1747
      %v1977 = vsub.f32 %v918, %v1752
      %v1978 = vsub.f32 %v923, %v1757
      %v1979 = vsub.f32 %v928, %v1762
      %v1980 = vsub.f32 %v933, %v1767
      %v1981 = vsub.f32 %v938, %v1772
      %v1982 = vsub.f32 %v943, %v1777
      %v1983 = vsub.f32 %v948, %v1782
      %v1984 = vsub.f32 %v953, %v1787
      %v1985 = vsub.f32 %v958, %v1792
      %v1986 = vsub.f32 %v963, %v1797
      %v1987 = vsub.f32 %v968, %v1802
      %v1988 = vsub.f32 %v973, %v1807
      %v1989 = vsub.f32 %v978, %v1812
      %v1990 = vsub.f32 %v983, %v1817
      %v1991 = vsub.f32 %v988, %v1822
      %v1992 = vsub.f32 %v993, %v1827
      %v1993 = vsub.f32 %v998, %v1832
      %v1994 = vsub.f32 %v1003, %v1837
      %v1995 = vsub.f32 %v1008, %v1842
      %v1996 = vsub.f32 %v1013, %v1847
      %v1997 = vsub.f32 %v1018, %v1852
      %v1998 = vsub.f32 %v1023, %v1857
      %v1999 = vsub.f32 %v1028, %v1862
      %v2000 = vsub.f32 %v1033, %v1867
      %v2001 = vsub.f32 %v1038, %v1872
      %v2002 = vsub.f32 %v1043, %v1877
      %v2003 = vsub.f32 %v1048, %v1882
      %v2004 = vsub.f32 %v1053, %v1887
      %v2005 = vsub.f32 %v1058, %v1892
      %v2006 = vsub.f32 %v1063, %v1897
      %v2007 = vsub.f32 %v1068, %v1902
      %v2008 = vsub.f32 %v1073, %v1907
      %v2009 = vsub.f32 %v1078, %v1912
      %v2010 = vsub.f32 %v1083, %v1917
      %v2011 = vsub.f32 %v1088, %v1922
      %v2012 = vsub.f32 %v1093, %v1927
      %v2013 = vsub.f32 %v1098, %v1932
      %v2014 = vsub.f32 %v1103, %v1937
      %v2015 = vsub.f32 %v1108, %v1942
      %v2016 = vsub.f32 %v1113, %v1947
      %v2017 = vsub.f32 %v1118, %v1952
      %v2018 = vmul.f32 %v1954, 1.442695
      %v2019 = vpow.pop %v2018
      %v2020 = vmul.f32 %v1955, 1.442695
      %v2021 = vpow.pop %v2020
      %v2022 = vmul.f32 %v1956, 1.442695
      %v2023 = vpow.pop %v2022
      %v2024 = vmul.f32 %v1957, 1.442695
      %v2025 = vpow.pop %v2024
      %v2026 = vmul.f32 %v1958, 1.442695
      %v2027 = vpow.pop %v2026
      %v2028 = vmul.f32 %v1959, 1.442695
      %v2029 = vpow.pop %v2028
      %v2030 = vmul.f32 %v1960, 1.442695
      %v2031 = vpow.pop %v2030
      %v2032 = vmul.f32 %v1961, 1.442695
      %v2033 = vpow.pop %v2032
      %v2034 = vmul.f32 %v1962, 1.442695
      %v2035 = vpow.pop %v2034
      %v2036 = vmul.f32 %v1963, 1.442695
      %v2037 = vpow.pop %v2036
      %v2038 = vmul.f32 %v1964, 1.442695
      %v2039 = vpow.pop %v2038
      %v2040 = vmul.f32 %v1965, 1.442695
      %v2041 = vpow.pop %v2040
      %v2042 = vmul.f32 %v1966, 1.442695
      %v2043 = vpow.pop %v2042
      %v2044 = vmul.f32 %v1967, 1.442695
      %v2045 = vpow.pop %v2044
      %v2046 = vmul.f32 %v1968, 1.442695
      %v2047 = vpow.pop %v2046
      %v2048 = vmul.f32 %v1969, 1.442695
      %v2049 = vpow.pop %v2048
      %v2050 = vmul.f32 %v1970, 1.442695
      %v2051 = vpow.pop %v2050
      %v2052 = vmul.f32 %v1971, 1.442695
      %v2053 = vpow.pop %v2052
      %v2054 = vmul.f32 %v1972, 1.442695
      %v2055 = vpow.pop %v2054
      %v2056 = vmul.f32 %v1973, 1.442695
      %v2057 = vpow.pop %v2056
      %v2058 = vmul.f32 %v1974, 1.442695
      %v2059 = vpow.pop %v2058
      %v2060 = vmul.f32 %v1975, 1.442695
      %v2061 = vpow.pop %v2060
      %v2062 = vmul.f32 %v1976, 1.442695
      %v2063 = vpow.pop %v2062
      %v2064 = vmul.f32 %v1977, 1.442695
      %v2065 = vpow.pop %v2064
      %v2066 = vmul.f32 %v1978, 1.442695
      %v2067 = vpow.pop %v2066
      %v2068 = vmul.f32 %v1979, 1.442695
      %v2069 = vpow.pop %v2068
      %v2070 = vmul.f32 %v1980, 1.442695
      %v2071 = vpow.pop %v2070
      %v2072 = vmul.f32 %v1981, 1.442695
      %v2073 = vpow.pop %v2072
      %v2074 = vmul.f32 %v1982, 1.442695
      %v2075 = vpow.pop %v2074
      %v2076 = vmul.f32 %v1983, 1.442695
      %v2077 = vpow.pop %v2076
      %v2078 = vmul.f32 %v1984, 1.442695
      %v2079 = vpow.pop %v2078
      %v2080 = vmul.f32 %v1985, 1.442695
      %v2081 = vpow.pop %v2080
      %v2082 = vmul.f32 %v1986, 1.442695
      %v2083 = vpow.pop %v2082
      %v2084 = vmul.f32 %v1987, 1.442695
      %v2085 = vpow.pop %v2084
      %v2086 = vmul.f32 %v1988, 1.442695
      %v2087 = vpow.pop %v2086
      %v2088 = vmul.f32 %v1989, 1.442695
      %v2089 = vpow.pop %v2088
      %v2090 = vmul.f32 %v1990, 1.442695
      %v2091 = vpow.pop %v2090
      %v2092 = vmul.f32 %v1991, 1.442695
      %v2093 = vpow.pop %v2092
      %v2094 = vmul.f32 %v1992, 1.442695
      %v2095 = vpow.pop %v2094
      %v2096 = vmul.f32 %v1993, 1.442695
      %v2097 = vpow.pop %v2096
      %v2098 = vmul.f32 %v1994, 1.442695
      %v2099 = vpow.pop %v2098
      %v2100 = vmul.f32 %v1995, 1.442695
      %v2101 = vpow.pop %v2100
      %v2102 = vmul.f32 %v1996, 1.442695
      %v2103 = vpow.pop %v2102
      %v2104 = vmul.f32 %v1997, 1.442695
      %v2105 = vpow.pop %v2104
      %v2106 = vmul.f32 %v1998, 1.442695
      %v2107 = vpow.pop %v2106
      %v2108 = vmul.f32 %v1999, 1.442695
      %v2109 = vpow.pop %v2108
      %v2110 = vmul.f32 %v2000, 1.442695
      %v2111 = vpow.pop %v2110
      %v2112 = vmul.f32 %v2001, 1.442695
      %v2113 = vpow.pop %v2112
      %v2114 = vmul.f32 %v2002, 1.442695
      %v2115 = vpow.pop %v2114
      %v2116 = vmul.f32 %v2003, 1.442695
      %v2117 = vpow.pop %v2116
      %v2118 = vmul.f32 %v2004, 1.442695
      %v2119 = vpow.pop %v2118
      %v2120 = vmul.f32 %v2005, 1.442695
      %v2121 = vpow.pop %v2120
      %v2122 = vmul.f32 %v2006, 1.442695
      %v2123 = vpow.pop %v2122
      %v2124 = vmul.f32 %v2007, 1.442695
      %v2125 = vpow.pop %v2124
      %v2126 = vmul.f32 %v2008, 1.442695
      %v2127 = vpow.pop %v2126
      %v2128 = vmul.f32 %v2009, 1.442695
      %v2129 = vpow.pop %v2128
      %v2130 = vmul.f32 %v2010, 1.442695
      %v2131 = vpow.pop %v2130
      %v2132 = vmul.f32 %v2011, 1.442695
      %v2133 = vpow.pop %v2132
      %v2134 = vmul.f32 %v2012, 1.442695
      %v2135 = vpow.pop %v2134
      %v2136 = vmul.f32 %v2013, 1.442695
      %v2137 = vpow.pop %v2136
      %v2138 = vmul.f32 %v2014, 1.442695
      %v2139 = vpow.pop %v2138
      %v2140 = vmul.f32 %v2015, 1.442695
      %v2141 = vpow.pop %v2140
      %v2142 = vmul.f32 %v2016, 1.442695
      %v2143 = vpow.pop %v2142
      %v2144 = vmul.f32 %v2017, 1.442695
      %v2145 = vpow.pop %v2144
      %v2146 = vld [vmem:[#allocation3] sm:$0xff]
      %v2147 = vld [vmem:[#allocation3 + $0x8] sm:$0xff]
      %v2148 = vld [vmem:[#allocation3 + $0x10] sm:$0xff]
      %v2149 = vld [vmem:[#allocation3 + $0x18] sm:$0xff]
      %v2150 = vld [vmem:[#allocation3 + $0x20] sm:$0xff]
      %v2151 = vld [vmem:[#allocation3 + $0x28] sm:$0xff]
      %v2152 = vld [vmem:[#allocation3 + $0x30] sm:$0xff]
      %v2153 = vld [vmem:[#allocation3 + $0x38] sm:$0xff]
      %v2154 = vld [vmem:[#allocation3 + $0x40] sm:$0xff]
      %v2155 = vld [vmem:[#allocation3 + $0x48] sm:$0xff]
      %v2156 = vld [vmem:[#allocation3 + $0x50] sm:$0xff]
      %v2157 = vld [vmem:[#allocation3 + $0x58] sm:$0xff]
      %v2158 = vld [vmem:[#allocation3 + $0x60] sm:$0xff]
      %v2159 = vld [vmem:[#allocation3 + $0x68] sm:$0xff]
      %v2160 = vld [vmem:[#allocation3 + $0x70] sm:$0xff]
      %v2161 = vld [vmem:[#allocation3 + $0x78] sm:$0xff]
      %v2162 = vld [vmem:[#allocation3 + $0x80] sm:$0xff]
      %v2163 = vld [vmem:[#allocation3 + $0x88] sm:$0xff]
      %v2164 = vld [vmem:[#allocation3 + $0x90] sm:$0xff]
      %v2165 = vld [vmem:[#allocation3 + $0x98] sm:$0xff]
      %v2166 = vld [vmem:[#allocation3 + $0xa0] sm:$0xff]
      %v2167 = vld [vmem:[#allocation3 + $0xa8] sm:$0xff]
      %v2168 = vld [vmem:[#allocation3 + $0xb0] sm:$0xff]
      %v2169 = vld [vmem:[#allocation3 + $0xb8] sm:$0xff]
      %v2170 = vld [vmem:[#allocation3 + $0xc0] sm:$0xff]
      %v2171 = vld [vmem:[#allocation3 + $0xc8] sm:$0xff]
      %v2172 = vld [vmem:[#allocation3 + $0xd0] sm:$0xff]
      %v2173 = vld [vmem:[#allocation3 + $0xd8] sm:$0xff]
      %v2174 = vld [vmem:[#allocation3 + $0xe0] sm:$0xff]
      %v2175 = vld [vmem:[#allocation3 + $0xe8] sm:$0xff]
      %v2176 = vld [vmem:[#allocation3 + $0xf0] sm:$0xff]
      %v2177 = vld [vmem:[#allocation3 + $0xf8] sm:$0xff]
      %v2178 = vld [vmem:[#allocation3 + $0x100] sm:$0xff]
      %v2179 = vld [vmem:[#allocation3 + $0x108] sm:$0xff]
      %v2180 = vld [vmem:[#allocation3 + $0x110] sm:$0xff]
      %v2181 = vld [vmem:[#allocation3 + $0x118] sm:$0xff]
      %v2182 = vld [vmem:[#allocation3 + $0x120] sm:$0xff]
      %v2183 = vld [vmem:[#allocation3 + $0x128] sm:$0xff]
      %v2184 = vld [vmem:[#allocation3 + $0x130] sm:$0xff]
      %v2185 = vld [vmem:[#allocation3 + $0x138] sm:$0xff]
      %v2186 = vld [vmem:[#allocation3 + $0x140] sm:$0xff]
      %v2187 = vld [vmem:[#allocation3 + $0x148] sm:$0xff]
      %v2188 = vld [vmem:[#allocation3 + $0x150] sm:$0xff]
      %v2189 = vld [vmem:[#allocation3 + $0x158] sm:$0xff]
      %v2190 = vld [vmem:[#allocation3 + $0x160] sm:$0xff]
      %v2191 = vld [vmem:[#allocation3 + $0x168] sm:$0xff]
      %v2192 = vld [vmem:[#allocation3 + $0x170] sm:$0xff]
      %v2193 = vld [vmem:[#allocation3 + $0x178] sm:$0xff]
      %v2194 = vld [vmem:[#allocation3 + $0x180] sm:$0xff]
      %v2195 = vld [vmem:[#allocation3 + $0x188] sm:$0xff]
      %v2196 = vld [vmem:[#allocation3 + $0x190] sm:$0xff]
      %v2197 = vld [vmem:[#allocation3 + $0x198] sm:$0xff]
      %v2198 = vld [vmem:[#allocation3 + $0x1a0] sm:$0xff]
      %v2199 = vld [vmem:[#allocation3 + $0x1a8] sm:$0xff]
      %v2200 = vld [vmem:[#allocation3 + $0x1b0] sm:$0xff]
      %v2201 = vld [vmem:[#allocation3 + $0x1b8] sm:$0xff]
      %v2202 = vld [vmem:[#allocation3 + $0x1c0] sm:$0xff]
      %v2203 = vld [vmem:[#allocation3 + $0x1c8] sm:$0xff]
      %v2204 = vld [vmem:[#allocation3 + $0x1d0] sm:$0xff]
      %v2205 = vld [vmem:[#allocation3 + $0x1d8] sm:$0xff]
      %v2206 = vld [vmem:[#allocation3 + $0x1e0] sm:$0xff]
      %v2207 = vld [vmem:[#allocation3 + $0x1e8] sm:$0xff]
      %v2208 = vld [vmem:[#allocation3 + $0x1f0] sm:$0xff]
      %v2209 = vld [vmem:[#allocation3 + $0x1f8] sm:$0xff]
      %v2210 = vmul.f32 %v1507, %v2146
      %v2211 = vmul.f32 %v1509, %v2147
      %v2212 = vmul.f32 %v1511, %v2148
      %v2213 = vmul.f32 %v1513, %v2149
      %v2214 = vmul.f32 %v1515, %v2150
      %v2215 = vmul.f32 %v1517, %v2151
      %v2216 = vmul.f32 %v1519, %v2152
      %v2217 = vmul.f32 %v1521, %v2153
      %v2218 = vmul.f32 %v1523, %v2154
      %v2219 = vmul.f32 %v1525, %v2155
      %v2220 = vmul.f32 %v1527, %v2156
      %v2221 = vmul.f32 %v1529, %v2157
      %v2222 = vmul.f32 %v1531, %v2158
      %v2223 = vmul.f32 %v1533, %v2159
      %v2224 = vmul.f32 %v1535, %v2160
      %v2225 = vmul.f32 %v1537, %v2161
      %v2226 = vmul.f32 %v1539, %v2162
      %v2227 = vmul.f32 %v1541, %v2163
      %v2228 = vmul.f32 %v1543, %v2164
      %v2229 = vmul.f32 %v1545, %v2165
      %v2230 = vmul.f32 %v1547, %v2166
      %v2231 = vmul.f32 %v1549, %v2167
      %v2232 = vmul.f32 %v1551, %v2168
      %v2233 = vmul.f32 %v1553, %v2169
      %v2234 = vmul.f32 %v1555, %v2170
      %v2235 = vmul.f32 %v1557, %v2171
      %v2236 = vmul.f32 %v1559, %v2172
      %v2237 = vmul.f32 %v1561, %v2173
      %v2238 = vmul.f32 %v1563, %v2174
      %v2239 = vmul.f32 %v1565, %v2175
      %v2240 = vmul.f32 %v1567, %v2176
      %v2241 = vmul.f32 %v1569, %v2177
      %v2242 = vmul.f32 %v1571, %v2178
      %v2243 = vmul.f32 %v1573, %v2179
      %v2244 = vmul.f32 %v1575, %v2180
      %v2245 = vmul.f32 %v1577, %v2181
      %v2246 = vmul.f32 %v1579, %v2182
      %v2247 = vmul.f32 %v1581, %v2183
      %v2248 = vmul.f32 %v1583, %v2184
      %v2249 = vmul.f32 %v1585, %v2185
      %v2250 = vmul.f32 %v1587, %v2186
      %v2251 = vmul.f32 %v1589, %v2187
      %v2252 = vmul.f32 %v1591, %v2188
      %v2253 = vmul.f32 %v1593, %v2189
      %v2254 = vmul.f32 %v1595, %v2190
      %v2255 = vmul.f32 %v1597, %v2191
      %v2256 = vmul.f32 %v1599, %v2192
      %v2257 = vmul.f32 %v1601, %v2193
      %v2258 = vmul.f32 %v1603, %v2194
      %v2259 = vmul.f32 %v1605, %v2195
      %v2260 = vmul.f32 %v1607, %v2196
      %v2261 = vmul.f32 %v1609, %v2197
      %v2262 = vmul.f32 %v1611, %v2198
      %v2263 = vmul.f32 %v1613, %v2199
      %v2264 = vmul.f32 %v1615, %v2200
      %v2265 = vmul.f32 %v1617, %v2201
      %v2266 = vmul.f32 %v1619, %v2202
      %v2267 = vmul.f32 %v1621, %v2203
      %v2268 = vmul.f32 %v1623, %v2204
      %v2269 = vmul.f32 %v1625, %v2205
      %v2270 = vmul.f32 %v1627, %v2206
      %v2271 = vmul.f32 %v1629, %v2207
      %v2272 = vmul.f32 %v1631, %v2208
      %v2273 = vmul.f32 %v1633, %v2209
      %v2274 = vsel %vm1185, %v2019, 0.0
      %2275 = vadd.xlane.f32.xlu0 %v2274
      %v2276 = vpop.xlane.xlu0 %2275
      %v2277 = vsel %vm1185, %v2021, 0.0
      %2278 = vadd.xlane.f32.xlu0 %v2277
      %v2279 = vpop.xlane.xlu0 %2278
      %v2280 = vsel %vm1185, %v2023, 0.0
      %2281 = vadd.xlane.f32.xlu0 %v2280
      %v2282 = vpop.xlane.xlu0 %2281
      %v2283 = vsel %vm1185, %v2025, 0.0
      %2284 = vadd.xlane.f32.xlu0 %v2283
      %v2285 = vpop.xlane.xlu0 %2284
      %v2286 = vsel %vm1185, %v2027, 0.0
      %2287 = vadd.xlane.f32.xlu0 %v2286
      %v2288 = vpop.xlane.xlu0 %2287
      %v2289 = vsel %vm1185, %v2029, 0.0
      %2290 = vadd.xlane.f32.xlu0 %v2289
      %v2291 = vpop.xlane.xlu0 %2290
      %v2292 = vsel %vm1185, %v2031, 0.0
      %2293 = vadd.xlane.f32.xlu0 %v2292
      %v2294 = vpop.xlane.xlu0 %2293
      %v2295 = vsel %vm1185, %v2033, 0.0
      %2296 = vadd.xlane.f32.xlu0 %v2295
      %v2297 = vpop.xlane.xlu0 %2296
      %v2298 = vsel %vm1185, %v2035, 0.0
      %2299 = vadd.xlane.f32.xlu0 %v2298
      %v2300 = vpop.xlane.xlu0 %2299
      %v2301 = vsel %vm1185, %v2037, 0.0
      %2302 = vadd.xlane.f32.xlu0 %v2301
      %v2303 = vpop.xlane.xlu0 %2302
      %v2304 = vsel %vm1185, %v2039, 0.0
      %2305 = vadd.xlane.f32.xlu0 %v2304
      %v2306 = vpop.xlane.xlu0 %2305
      %v2307 = vsel %vm1185, %v2041, 0.0
      %2308 = vadd.xlane.f32.xlu0 %v2307
      %v2309 = vpop.xlane.xlu0 %2308
      %v2310 = vsel %vm1185, %v2043, 0.0
      %2311 = vadd.xlane.f32.xlu0 %v2310
      %v2312 = vpop.xlane.xlu0 %2311
      %v2313 = vsel %vm1185, %v2045, 0.0
      %2314 = vadd.xlane.f32.xlu0 %v2313
      %v2315 = vpop.xlane.xlu0 %2314
      %v2316 = vsel %vm1185, %v2047, 0.0
      %2317 = vadd.xlane.f32.xlu0 %v2316
      %v2318 = vpop.xlane.xlu0 %2317
      %v2319 = vsel %vm1185, %v2049, 0.0
      %2320 = vadd.xlane.f32.xlu0 %v2319
      %v2321 = vpop.xlane.xlu0 %2320
      %v2322 = vsel %vm1185, %v2051, 0.0
      %2323 = vadd.xlane.f32.xlu0 %v2322
      %v2324 = vpop.xlane.xlu0 %2323
      %v2325 = vsel %vm1185, %v2053, 0.0
      %2326 = vadd.xlane.f32.xlu0 %v2325
      %v2327 = vpop.xlane.xlu0 %2326
      %v2328 = vsel %vm1185, %v2055, 0.0
      %2329 = vadd.xlane.f32.xlu0 %v2328
      %v2330 = vpop.xlane.xlu0 %2329
      %v2331 = vsel %vm1185, %v2057, 0.0
      %2332 = vadd.xlane.f32.xlu0 %v2331
      %v2333 = vpop.xlane.xlu0 %2332
      %v2334 = vsel %vm1185, %v2059, 0.0
      %2335 = vadd.xlane.f32.xlu0 %v2334
      %v2336 = vpop.xlane.xlu0 %2335
      %v2337 = vsel %vm1185, %v2061, 0.0
      %2338 = vadd.xlane.f32.xlu0 %v2337
      %v2339 = vpop.xlane.xlu0 %2338
      %v2340 = vsel %vm1185, %v2063, 0.0
      %2341 = vadd.xlane.f32.xlu0 %v2340
      %v2342 = vpop.xlane.xlu0 %2341
      %v2343 = vsel %vm1185, %v2065, 0.0
      %2344 = vadd.xlane.f32.xlu0 %v2343
      %v2345 = vpop.xlane.xlu0 %2344
      %v2346 = vsel %vm1185, %v2067, 0.0
      %2347 = vadd.xlane.f32.xlu0 %v2346
      %v2348 = vpop.xlane.xlu0 %2347
      %v2349 = vsel %vm1185, %v2069, 0.0
      %2350 = vadd.xlane.f32.xlu0 %v2349
      %v2351 = vpop.xlane.xlu0 %2350
      %v2352 = vsel %vm1185, %v2071, 0.0
      %2353 = vadd.xlane.f32.xlu0 %v2352
      %v2354 = vpop.xlane.xlu0 %2353
      %v2355 = vsel %vm1185, %v2073, 0.0
      %2356 = vadd.xlane.f32.xlu0 %v2355
      %v2357 = vpop.xlane.xlu0 %2356
      %v2358 = vsel %vm1185, %v2075, 0.0
      %2359 = vadd.xlane.f32.xlu0 %v2358
      %v2360 = vpop.xlane.xlu0 %2359
      %v2361 = vsel %vm1185, %v2077, 0.0
      %2362 = vadd.xlane.f32.xlu0 %v2361
      %v2363 = vpop.xlane.xlu0 %2362
      %v2364 = vsel %vm1185, %v2079, 0.0
      %2365 = vadd.xlane.f32.xlu0 %v2364
      %v2366 = vpop.xlane.xlu0 %2365
      %v2367 = vsel %vm1185, %v2081, 0.0
      %2368 = vadd.xlane.f32.xlu0 %v2367
      %v2369 = vpop.xlane.xlu0 %2368
      %v2370 = vsel %vm1185, %v2083, 0.0
      %2371 = vadd.xlane.f32.xlu0 %v2370
      %v2372 = vpop.xlane.xlu0 %2371
      %v2373 = vsel %vm1185, %v2085, 0.0
      %2374 = vadd.xlane.f32.xlu0 %v2373
      %v2375 = vpop.xlane.xlu0 %2374
      %v2376 = vsel %vm1185, %v2087, 0.0
      %2377 = vadd.xlane.f32.xlu0 %v2376
      %v2378 = vpop.xlane.xlu0 %2377
      %v2379 = vsel %vm1185, %v2089, 0.0
      %2380 = vadd.xlane.f32.xlu0 %v2379
      %v2381 = vpop.xlane.xlu0 %2380
      %v2382 = vsel %vm1185, %v2091, 0.0
      %2383 = vadd.xlane.f32.xlu0 %v2382
      %v2384 = vpop.xlane.xlu0 %2383
      %v2385 = vsel %vm1185, %v2093, 0.0
      %2386 = vadd.xlane.f32.xlu0 %v2385
      %v2387 = vpop.xlane.xlu0 %2386
      %v2388 = vsel %vm1185, %v2095, 0.0
      %2389 = vadd.xlane.f32.xlu0 %v2388
      %v2390 = vpop.xlane.xlu0 %2389
      %v2391 = vsel %vm1185, %v2097, 0.0
      %2392 = vadd.xlane.f32.xlu0 %v2391
      %v2393 = vpop.xlane.xlu0 %2392
      %v2394 = vsel %vm1185, %v2099, 0.0
      %2395 = vadd.xlane.f32.xlu0 %v2394
      %v2396 = vpop.xlane.xlu0 %2395
      %v2397 = vsel %vm1185, %v2101, 0.0
      %2398 = vadd.xlane.f32.xlu0 %v2397
      %v2399 = vpop.xlane.xlu0 %2398
      %v2400 = vsel %vm1185, %v2103, 0.0
      %2401 = vadd.xlane.f32.xlu0 %v2400
      %v2402 = vpop.xlane.xlu0 %2401
      %v2403 = vsel %vm1185, %v2105, 0.0
      %2404 = vadd.xlane.f32.xlu0 %v2403
      %v2405 = vpop.xlane.xlu0 %2404
      %v2406 = vsel %vm1185, %v2107, 0.0
      %2407 = vadd.xlane.f32.xlu0 %v2406
      %v2408 = vpop.xlane.xlu0 %2407
      %v2409 = vsel %vm1185, %v2109, 0.0
      %2410 = vadd.xlane.f32.xlu0 %v2409
      %v2411 = vpop.xlane.xlu0 %2410
      %v2412 = vsel %vm1185, %v2111, 0.0
      %2413 = vadd.xlane.f32.xlu0 %v2412
      %v2414 = vpop.xlane.xlu0 %2413
      %v2415 = vsel %vm1185, %v2113, 0.0
      %2416 = vadd.xlane.f32.xlu0 %v2415
      %v2417 = vpop.xlane.xlu0 %2416
      %v2418 = vsel %vm1185, %v2115, 0.0
      %2419 = vadd.xlane.f32.xlu0 %v2418
      %v2420 = vpop.xlane.xlu0 %2419
      %v2421 = vsel %vm1185, %v2117, 0.0
      %2422 = vadd.xlane.f32.xlu0 %v2421
      %v2423 = vpop.xlane.xlu0 %2422
      %v2424 = vsel %vm1185, %v2119, 0.0
      %2425 = vadd.xlane.f32.xlu0 %v2424
      %v2426 = vpop.xlane.xlu0 %2425
      %v2427 = vsel %vm1185, %v2121, 0.0
      %2428 = vadd.xlane.f32.xlu0 %v2427
      %v2429 = vpop.xlane.xlu0 %2428
      %v2430 = vsel %vm1185, %v2123, 0.0
      %2431 = vadd.xlane.f32.xlu0 %v2430
      %v2432 = vpop.xlane.xlu0 %2431
      %v2433 = vsel %vm1185, %v2125, 0.0
      %2434 = vadd.xlane.f32.xlu0 %v2433
      %v2435 = vpop.xlane.xlu0 %2434
      %v2436 = vsel %vm1185, %v2127, 0.0
      %2437 = vadd.xlane.f32.xlu0 %v2436
      %v2438 = vpop.xlane.xlu0 %2437
      %v2439 = vsel %vm1185, %v2129, 0.0
      %2440 = vadd.xlane.f32.xlu0 %v2439
      %v2441 = vpop.xlane.xlu0 %2440
      %v2442 = vsel %vm1185, %v2131, 0.0
      %2443 = vadd.xlane.f32.xlu0 %v2442
      %v2444 = vpop.xlane.xlu0 %2443
      %v2445 = vsel %vm1185, %v2133, 0.0
      %2446 = vadd.xlane.f32.xlu0 %v2445
      %v2447 = vpop.xlane.xlu0 %2446
      %v2448 = vsel %vm1185, %v2135, 0.0
      %2449 = vadd.xlane.f32.xlu0 %v2448
      %v2450 = vpop.xlane.xlu0 %2449
      %v2451 = vsel %vm1185, %v2137, 0.0
      %2452 = vadd.xlane.f32.xlu0 %v2451
      %v2453 = vpop.xlane.xlu0 %2452
      %v2454 = vsel %vm1185, %v2139, 0.0
      %2455 = vadd.xlane.f32.xlu0 %v2454
      %v2456 = vpop.xlane.xlu0 %2455
      %v2457 = vsel %vm1185, %v2141, 0.0
      %2458 = vadd.xlane.f32.xlu0 %v2457
      %v2459 = vpop.xlane.xlu0 %2458
      %v2460 = vsel %vm1185, %v2143, 0.0
      %2461 = vadd.xlane.f32.xlu0 %v2460
      %v2462 = vpop.xlane.xlu0 %2461
      %v2463 = vsel %vm1185, %v2145, 0.0
      %2464 = vadd.xlane.f32.xlu0 %v2463
      %v2465 = vpop.xlane.xlu0 %2464
      %v2466 = vadd.f32 %v2210, %v2276
      %v2467 = vadd.f32 %v2211, %v2279
      %v2468 = vadd.f32 %v2212, %v2282
      %v2469 = vadd.f32 %v2213, %v2285
      %v2470 = vadd.f32 %v2214, %v2288
      %v2471 = vadd.f32 %v2215, %v2291
      %v2472 = vadd.f32 %v2216, %v2294
      %v2473 = vadd.f32 %v2217, %v2297
      %v2474 = vadd.f32 %v2218, %v2300
      %v2475 = vadd.f32 %v2219, %v2303
      %v2476 = vadd.f32 %v2220, %v2306
      %v2477 = vadd.f32 %v2221, %v2309
      %v2478 = vadd.f32 %v2222, %v2312
      %v2479 = vadd.f32 %v2223, %v2315
      %v2480 = vadd.f32 %v2224, %v2318
      %v2481 = vadd.f32 %v2225, %v2321
      %v2482 = vadd.f32 %v2226, %v2324
      %v2483 = vadd.f32 %v2227, %v2327
      %v2484 = vadd.f32 %v2228, %v2330
      %v2485 = vadd.f32 %v2229, %v2333
      %v2486 = vadd.f32 %v2230, %v2336
      %v2487 = vadd.f32 %v2231, %v2339
      %v2488 = vadd.f32 %v2232, %v2342
      %v2489 = vadd.f32 %v2233, %v2345
      %v2490 = vadd.f32 %v2234, %v2348
      %v2491 = vadd.f32 %v2235, %v2351
      %v2492 = vadd.f32 %v2236, %v2354
      %v2493 = vadd.f32 %v2237, %v2357
      %v2494 = vadd.f32 %v2238, %v2360
      %v2495 = vadd.f32 %v2239, %v2363
      %v2496 = vadd.f32 %v2240, %v2366
      %v2497 = vadd.f32 %v2241, %v2369
      %v2498 = vadd.f32 %v2242, %v2372
      %v2499 = vadd.f32 %v2243, %v2375
      %v2500 = vadd.f32 %v2244, %v2378
      %v2501 = vadd.f32 %v2245, %v2381
      %v2502 = vadd.f32 %v2246, %v2384
      %v2503 = vadd.f32 %v2247, %v2387
      %v2504 = vadd.f32 %v2248, %v2390
      %v2505 = vadd.f32 %v2249, %v2393
      %v2506 = vadd.f32 %v2250, %v2396
      %v2507 = vadd.f32 %v2251, %v2399
      %v2508 = vadd.f32 %v2252, %v2402
      %v2509 = vadd.f32 %v2253, %v2405
      %v2510 = vadd.f32 %v2254, %v2408
      %v2511 = vadd.f32 %v2255, %v2411
      %v2512 = vadd.f32 %v2256, %v2414
      %v2513 = vadd.f32 %v2257, %v2417
      %v2514 = vadd.f32 %v2258, %v2420
      %v2515 = vadd.f32 %v2259, %v2423
      %v2516 = vadd.f32 %v2260, %v2426
      %v2517 = vadd.f32 %v2261, %v2429
      %v2518 = vadd.f32 %v2262, %v2432
      %v2519 = vadd.f32 %v2263, %v2435
      %v2520 = vadd.f32 %v2264, %v2438
      %v2521 = vadd.f32 %v2265, %v2441
      %v2522 = vadd.f32 %v2266, %v2444
      %v2523 = vadd.f32 %v2267, %v2447
      %v2524 = vadd.f32 %v2268, %v2450
      %v2525 = vadd.f32 %v2269, %v2453
      %v2526 = vadd.f32 %v2270, %v2456
      %v2527 = vadd.f32 %v2271, %v2459
      %v2528 = vadd.f32 %v2272, %v2462
      %v2529 = vadd.f32 %v2273, %v2465
      %vm2530 = vcmask 7168
      %2531 = vst.msk [vmem:[#allocation3] sm:$0xff] %vm2530, %v2466
      %2532 = vst.msk [vmem:[#allocation3 + $0x8] sm:$0xff] %vm2530, %v2467
      %2533 = vst.msk [vmem:[#allocation3 + $0x10] sm:$0xff] %vm2530, %v2468
      %2534 = vst.msk [vmem:[#allocation3 + $0x18] sm:$0xff] %vm2530, %v2469
      %2535 = vst.msk [vmem:[#allocation3 + $0x20] sm:$0xff] %vm2530, %v2470
      %2536 = vst.msk [vmem:[#allocation3 + $0x28] sm:$0xff] %vm2530, %v2471
      %2537 = vst.msk [vmem:[#allocation3 + $0x30] sm:$0xff] %vm2530, %v2472
      %2538 = vst.msk [vmem:[#allocation3 + $0x38] sm:$0xff] %vm2530, %v2473
      %2539 = vst.msk [vmem:[#allocation3 + $0x40] sm:$0xff] %vm2530, %v2474
      %2540 = vst.msk [vmem:[#allocation3 + $0x48] sm:$0xff] %vm2530, %v2475
      %2541 = vst.msk [vmem:[#allocation3 + $0x50] sm:$0xff] %vm2530, %v2476
      %2542 = vst.msk [vmem:[#allocation3 + $0x58] sm:$0xff] %vm2530, %v2477
      %2543 = vst.msk [vmem:[#allocation3 + $0x60] sm:$0xff] %vm2530, %v2478
      %2544 = vst.msk [vmem:[#allocation3 + $0x68] sm:$0xff] %vm2530, %v2479
      %2545 = vst.msk [vmem:[#allocation3 + $0x70] sm:$0xff] %vm2530, %v2480
      %2546 = vst.msk [vmem:[#allocation3 + $0x78] sm:$0xff] %vm2530, %v2481
      %2547 = vst.msk [vmem:[#allocation3 + $0x80] sm:$0xff] %vm2530, %v2482
      %2548 = vst.msk [vmem:[#allocation3 + $0x88] sm:$0xff] %vm2530, %v2483
      %2549 = vst.msk [vmem:[#allocation3 + $0x90] sm:$0xff] %vm2530, %v2484
      %2550 = vst.msk [vmem:[#allocation3 + $0x98] sm:$0xff] %vm2530, %v2485
      %2551 = vst.msk [vmem:[#allocation3 + $0xa0] sm:$0xff] %vm2530, %v2486
      %2552 = vst.msk [vmem:[#allocation3 + $0xa8] sm:$0xff] %vm2530, %v2487
      %2553 = vst.msk [vmem:[#allocation3 + $0xb0] sm:$0xff] %vm2530, %v2488
      %2554 = vst.msk [vmem:[#allocation3 + $0xb8] sm:$0xff] %vm2530, %v2489
      %2555 = vst.msk [vmem:[#allocation3 + $0xc0] sm:$0xff] %vm2530, %v2490
      %2556 = vst.msk [vmem:[#allocation3 + $0xc8] sm:$0xff] %vm2530, %v2491
      %2557 = vst.msk [vmem:[#allocation3 + $0xd0] sm:$0xff] %vm2530, %v2492
      %2558 = vst.msk [vmem:[#allocation3 + $0xd8] sm:$0xff] %vm2530, %v2493
      %2559 = vst.msk [vmem:[#allocation3 + $0xe0] sm:$0xff] %vm2530, %v2494
      %2560 = vst.msk [vmem:[#allocation3 + $0xe8] sm:$0xff] %vm2530, %v2495
      %2561 = vst.msk [vmem:[#allocation3 + $0xf0] sm:$0xff] %vm2530, %v2496
      %2562 = vst.msk [vmem:[#allocation3 + $0xf8] sm:$0xff] %vm2530, %v2497
      %2563 = vst.msk [vmem:[#allocation3 + $0x100] sm:$0xff] %vm2530, %v2498
      %2564 = vst.msk [vmem:[#allocation3 + $0x108] sm:$0xff] %vm2530, %v2499
      %2565 = vst.msk [vmem:[#allocation3 + $0x110] sm:$0xff] %vm2530, %v2500
      %2566 = vst.msk [vmem:[#allocation3 + $0x118] sm:$0xff] %vm2530, %v2501
      %2567 = vst.msk [vmem:[#allocation3 + $0x120] sm:$0xff] %vm2530, %v2502
      %2568 = vst.msk [vmem:[#allocation3 + $0x128] sm:$0xff] %vm2530, %v2503
      %2569 = vst.msk [vmem:[#allocation3 + $0x130] sm:$0xff] %vm2530, %v2504
      %2570 = vst.msk [vmem:[#allocation3 + $0x138] sm:$0xff] %vm2530, %v2505
      %2571 = vst.msk [vmem:[#allocation3 + $0x140] sm:$0xff] %vm2530, %v2506
      %2572 = vst.msk [vmem:[#allocation3 + $0x148] sm:$0xff] %vm2530, %v2507
      %2573 = vst.msk [vmem:[#allocation3 + $0x150] sm:$0xff] %vm2530, %v2508
      %2574 = vst.msk [vmem:[#allocation3 + $0x158] sm:$0xff] %vm2530, %v2509
      %2575 = vst.msk [vmem:[#allocation3 + $0x160] sm:$0xff] %vm2530, %v2510
      %2576 = vst.msk [vmem:[#allocation3 + $0x168] sm:$0xff] %vm2530, %v2511
      %2577 = vst.msk [vmem:[#allocation3 + $0x170] sm:$0xff] %vm2530, %v2512
      %2578 = vst.msk [vmem:[#allocation3 + $0x178] sm:$0xff] %vm2530, %v2513
      %2579 = vst.msk [vmem:[#allocation3 + $0x180] sm:$0xff] %vm2530, %v2514
      %2580 = vst.msk [vmem:[#allocation3 + $0x188] sm:$0xff] %vm2530, %v2515
      %2581 = vst.msk [vmem:[#allocation3 + $0x190] sm:$0xff] %vm2530, %v2516
      %2582 = vst.msk [vmem:[#allocation3 + $0x198] sm:$0xff] %vm2530, %v2517
      %2583 = vst.msk [vmem:[#allocation3 + $0x1a0] sm:$0xff] %vm2530, %v2518
      %2584 = vst.msk [vmem:[#allocation3 + $0x1a8] sm:$0xff] %vm2530, %v2519
      %2585 = vst.msk [vmem:[#allocation3 + $0x1b0] sm:$0xff] %vm2530, %v2520
      %2586 = vst.msk [vmem:[#allocation3 + $0x1b8] sm:$0xff] %vm2530, %v2521
      %2587 = vst.msk [vmem:[#allocation3 + $0x1c0] sm:$0xff] %vm2530, %v2522
      %2588 = vst.msk [vmem:[#allocation3 + $0x1c8] sm:$0xff] %vm2530, %v2523
      %2589 = vst.msk [vmem:[#allocation3 + $0x1d0] sm:$0xff] %vm2530, %v2524
      %2590 = vst.msk [vmem:[#allocation3 + $0x1d8] sm:$0xff] %vm2530, %v2525
      %2591 = vst.msk [vmem:[#allocation3 + $0x1e0] sm:$0xff] %vm2530, %v2526
      %2592 = vst.msk [vmem:[#allocation3 + $0x1e8] sm:$0xff] %vm2530, %v2527
      %2593 = vst.msk [vmem:[#allocation3 + $0x1f0] sm:$0xff] %vm2530, %v2528
      %2594 = vst.msk [vmem:[#allocation3 + $0x1f8] sm:$0xff] %vm2530, %v2529
      %v2595 = vld [vmem:[%s265] sm:$0xff]
      %v2596 = vld [vmem:[%s265 + $0x8] sm:$0xff]
      %v2598 = vsel %vm1185, %v2019, 0
      %v2601 = vsel %vm1185, %v2021, 0
      %v2604 = vsel %vm1185, %v2023, 0
      %v2607 = vsel %vm1185, %v2025, 0
      %v2610 = vsel %vm1185, %v2027, 0
      %v2613 = vsel %vm1185, %v2029, 0
      %v2616 = vsel %vm1185, %v2031, 0
      %v2619 = vsel %vm1185, %v2033, 0
      %v2622 = vsel %vm1185, %v2035, 0
      %v2625 = vsel %vm1185, %v2037, 0
      %v2628 = vsel %vm1185, %v2039, 0
      %v2631 = vsel %vm1185, %v2041, 0
      %v2634 = vsel %vm1185, %v2043, 0
      %v2637 = vsel %vm1185, %v2045, 0
      %v2640 = vsel %vm1185, %v2047, 0
      %v2643 = vsel %vm1185, %v2049, 0
      %v2646 = vsel %vm1185, %v2051, 0
      %v2649 = vsel %vm1185, %v2053, 0
      %v2652 = vsel %vm1185, %v2055, 0
      %v2655 = vsel %vm1185, %v2057, 0
      %v2658 = vsel %vm1185, %v2059, 0
      %v2661 = vsel %vm1185, %v2061, 0
      %v2664 = vsel %vm1185, %v2063, 0
      %v2667 = vsel %vm1185, %v2065, 0
      %v2670 = vsel %vm1185, %v2067, 0
      %v2673 = vsel %vm1185, %v2069, 0
      %v2676 = vsel %vm1185, %v2071, 0
      %v2679 = vsel %vm1185, %v2073, 0
      %v2682 = vsel %vm1185, %v2075, 0
      %v2685 = vsel %vm1185, %v2077, 0
      %v2688 = vsel %vm1185, %v2079, 0
      %v2691 = vsel %vm1185, %v2081, 0
      %v2694 = vsel %vm1185, %v2083, 0
      %v2697 = vsel %vm1185, %v2085, 0
      %v2700 = vsel %vm1185, %v2087, 0
      %v2703 = vsel %vm1185, %v2089, 0
      %v2706 = vsel %vm1185, %v2091, 0
      %v2709 = vsel %vm1185, %v2093, 0
      %v2712 = vsel %vm1185, %v2095, 0
      %v2715 = vsel %vm1185, %v2097, 0
      %v2718 = vsel %vm1185, %v2099, 0
      %v2721 = vsel %vm1185, %v2101, 0
      %v2724 = vsel %vm1185, %v2103, 0
      %v2727 = vsel %vm1185, %v2105, 0
      %v2730 = vsel %vm1185, %v2107, 0
      %v2733 = vsel %vm1185, %v2109, 0
      %v2736 = vsel %vm1185, %v2111, 0
      %v2739 = vsel %vm1185, %v2113, 0
      %v2742 = vsel %vm1185, %v2115, 0
      %v2745 = vsel %vm1185, %v2117, 0
      %v2748 = vsel %vm1185, %v2119, 0
      %v2751 = vsel %vm1185, %v2121, 0
      %v2754 = vsel %vm1185, %v2123, 0
      %v2757 = vsel %vm1185, %v2125, 0
      %v2760 = vsel %vm1185, %v2127, 0
      %v2763 = vsel %vm1185, %v2129, 0
      %v2766 = vsel %vm1185, %v2131, 0
      %v2769 = vsel %vm1185, %v2133, 0
      %v2772 = vsel %vm1185, %v2135, 0
      %v2775 = vsel %vm1185, %v2137, 0
      %v2778 = vsel %vm1185, %v2139, 0
      %v2781 = vsel %vm1185, %v2141, 0
      %v2784 = vsel %vm1185, %v2143, 0
      %v2787 = vsel %vm1185, %v2145, 0
      %v2790 = vsel %vm1185, %v2595, 0
      %v2793 = vsel %vm1185, %v2596, 0
      %2795 = vmatprep.subr.mxu0 0.0
      %2796 = vmatpush1.xpose.msra.mxu0 %v2790
      %2797 = vmatprep.subr.mxu0 0.0
      %2798 = vmatpush1.xpose.msra.mxu0 %v2793
      %2799 = vmatprep.subr.mxu0 0.0
      %2800 = vmatpush1.xpose.msra.mxu0 0.0
      %2801 = vmatprep.subr.mxu0 0.0
      %2802 = vmatpush1.xpose.msra.mxu0 0.0
      %2803 = vmatprep.subr.mxu0 0.0
      %2804 = vmatpush1.xpose.msra.mxu0 0.0
      %2805 = vmatprep.subr.mxu0 0.0
      %2806 = vmatpush1.xpose.msra.mxu0 0.0
      %2807 = vmatprep.subr.mxu0 0.0
      %2808 = vmatpush1.xpose.msra.mxu0 0.0
      %2809 = vmatprep.subr.mxu0 0.0
      %2810 = vmatpush1.xpose.msra.mxu0 0.0
      %2811 = vmatprep.subr.mxu0 0.0
      %2812 = vmatpush1.xpose.msra.mxu0 0.0
      %2813 = vmatprep.subr.mxu0 0.0
      %2814 = vmatpush1.xpose.msra.mxu0 0.0
      %2815 = vmatprep.subr.mxu0 0.0
      %2816 = vmatpush1.xpose.msra.mxu0 0.0
      %2817 = vmatprep.subr.mxu0 0.0
      %2818 = vmatpush1.xpose.msra.mxu0 0.0
      %2819 = vmatprep.subr.mxu0 0.0
      %2820 = vmatpush1.xpose.msra.mxu0 0.0
      %2821 = vmatprep.subr.mxu0 0.0
      %2822 = vmatpush1.xpose.msra.mxu0 0.0
      %2823 = vmatprep.subr.mxu0 0.0
      %2824 = vmatpush1.xpose.msra.mxu0 0.0
      %2825 = vmatprep.subr.mxu0 0.0
      %2826 = vmatpush1.xpose.msra.mxu0 0.0
      %2827 = vmatprep.subr.mxu0 0.0
      %2828 = vmatpush1.xpose.msra.mxu0 0.0
      %2829 = vmatprep.subr.mxu0 0.0
      %2830 = vmatpush1.xpose.msra.mxu0 0.0
      %2831 = vmatprep.subr.mxu0 0.0
      %2832 = vmatpush1.xpose.msra.mxu0 0.0
      %2833 = vmatprep.subr.mxu0 0.0
      %2834 = vmatpush1.xpose.msra.mxu0 0.0
      %2835 = vmatprep.subr.mxu0 0.0
      %2836 = vmatpush1.xpose.msra.mxu0 0.0
      %2837 = vmatprep.subr.mxu0 0.0
      %2838 = vmatpush1.xpose.msra.mxu0 0.0
      %2839 = vmatprep.subr.mxu0 0.0
      %2840 = vmatpush1.xpose.msra.mxu0 0.0
      %2841 = vmatprep.subr.mxu0 0.0
      %2842 = vmatpush1.xpose.msra.mxu0 0.0
      %2843 = vmatprep.subr.mxu0 0.0
      %2844 = vmatpush1.xpose.msra.mxu0 0.0
      %2845 = vmatprep.subr.mxu0 0.0
      %2846 = vmatpush1.xpose.msra.mxu0 0.0
      %2847 = vmatprep.subr.mxu0 0.0
      %2848 = vmatpush1.xpose.msra.mxu0 0.0
      %2849 = vmatprep.subr.mxu0 0.0
      %2850 = vmatpush1.xpose.msra.mxu0 0.0
      %2851 = vmatprep.subr.mxu0 0.0
      %2852 = vmatpush1.xpose.msra.mxu0 0.0
      %2853 = vmatprep.subr.mxu0 0.0
      %2854 = vmatpush1.xpose.msra.mxu0 0.0
      %2855 = vmatprep.subr.mxu0 0.0
      %2856 = vmatpush1.xpose.msra.mxu0 0.0
      %2857 = vmatprep.subr.mxu0 0.0
      %2858 = vmatpush1.xpose.msra.mxu0 0.0
      %2859 = vmatprep.mubr.f32.mxu0 0.0
      %2860 = vmatmul.mubr.f32.gmra.mrb[0].mxu0 %v2598
      %v2861 = vpop.f32.mrb[0].mxu0
      %v2862 = vadd.f32 0.0, %v2861
      %v2863 = vpop.f32.mrb[0].mxu0
      %2864 = vmatprep.mubr.f32.mxu0 0.0
      %2865 = vmatmul.mubr.f32.gmra.mrb[0].mxu0 %v2601
      %v2866 = vpop.f32.mrb[0].mxu0
      %v2867 = vadd.f32 0.0, %v2866
      %v2868 = vpop.f32.mrb[0].mxu0
      %2869 = vmatprep.mubr.f32.mxu0 0.0
      %2870 = vmatmul.mubr.f32.gmra.mrb[0].mxu0 %v2604
      %v2871 = vpop.f32.mrb[0].mxu0
      %v2872 = vadd.f32 0.0, %v2871
      %v2873 = vpop.f32.mrb[0].mxu0
      %2874 = vmatprep.mubr.f32.mxu0 0.0
      %2875 = vmatmul.mubr.f32.gmra.mrb[0].mxu0 %v2607
      %v2876 = vpop.f32.mrb[0].mxu0
      %v2877 = vadd.f32 0.0, %v2876
      %v2878 = vpop.f32.mrb[0].mxu0
      %2879 = vmatprep.mubr.f32.mxu0 0.0
      %2880 = vmatmul.mubr.f32.gmra.mrb[0].mxu0 %v2610
      %v2881 = vpop.f32.mrb[0].mxu0
      %v2882 = vadd.f32 0.0, %v2881
      %v2883 = vpop.f32.mrb[0].mxu0
      %2884 = vmatprep.mubr.f32.mxu0 0.0
      %2885 = vmatmul.mubr.f32.gmra.mrb[0].mxu0 %v2613
      %v2886 = vpop.f32.mrb[0].mxu0
      %v2887 = vadd.f32 0.0, %v2886
      %v2888 = vpop.f32.mrb[0].mxu0
      %2889 = vmatprep.mubr.f32.mxu0 0.0
      %2890 = vmatmul.mubr.f32.gmra.mrb[0].mxu0 %v2616
      %v2891 = vpop.f32.mrb[0].mxu0
      %v2892 = vadd.f32 0.0, %v2891
      %v2893 = vpop.f32.mrb[0].mxu0
      %2894 = vmatprep.mubr.f32.mxu0 0.0
      %2895 = vmatmul.mubr.f32.gmra.mrb[0].mxu0 %v2619
      %v2896 = vpop.f32.mrb[0].mxu0
      %v2897 = vadd.f32 0.0, %v2896
      %v2898 = vpop.f32.mrb[0].mxu0
      %2899 = vmatprep.mubr.f32.mxu0 0.0
      %2900 = vmatmul.mubr.f32.gmra.mrb[0].mxu0 %v2622
      %v2901 = vpop.f32.mrb[0].mxu0
      %v2902 = vadd.f32 0.0, %v2901
      %v2903 = vpop.f32.mrb[0].mxu0
      %2904 = vmatprep.mubr.f32.mxu0 0.0
      %2905 = vmatmul.mubr.f32.gmra.mrb[0].mxu0 %v2625
      %v2906 = vpop.f32.mrb[0].mxu0
      %v2907 = vadd.f32 0.0, %v2906
      %v2908 = vpop.f32.mrb[0].mxu0
      %2909 = vmatprep.mubr.f32.mxu0 0.0
      %2910 = vmatmul.mubr.f32.gmra.mrb[0].mxu0 %v2628
      %v2911 = vpop.f32.mrb[0].mxu0
      %v2912 = vadd.f32 0.0, %v2911
      %v2913 = vpop.f32.mrb[0].mxu0
      %2914 = vmatprep.mubr.f32.mxu0 0.0
      %2915 = vmatmul.mubr.f32.gmra.mrb[0].mxu0 %v2631
      %v2916 = vpop.f32.mrb[0].mxu0
      %v2917 = vadd.f32 0.0, %v2916
      %v2918 = vpop.f32.mrb[0].mxu0
      %2919 = vmatprep.mubr.f32.mxu0 0.0
      %2920 = vmatmul.mubr.f32.gmra.mrb[0].mxu0 %v2634
      %v2921 = vpop.f32.mrb[0].mxu0
      %v2922 = vadd.f32 0.0, %v2921
      %v2923 = vpop.f32.mrb[0].mxu0
      %2924 = vmatprep.mubr.f32.mxu0 0.0
      %2925 = vmatmul.mubr.f32.gmra.mrb[0].mxu0 %v2637
      %v2926 = vpop.f32.mrb[0].mxu0
      %v2927 = vadd.f32 0.0, %v2926
      %v2928 = vpop.f32.mrb[0].mxu0
      %2929 = vmatprep.mubr.f32.mxu0 0.0
      %2930 = vmatmul.mubr.f32.gmra.mrb[0].mxu0 %v2640
      %v2931 = vpop.f32.mrb[0].mxu0
      %v2932 = vadd.f32 0.0, %v2931
      %v2933 = vpop.f32.mrb[0].mxu0
      %2934 = vmatprep.mubr.f32.mxu0 0.0
      %2935 = vmatmul.mubr.f32.gmra.mrb[0].mxu0 %v2643
      %v2936 = vpop.f32.mrb[0].mxu0
      %v2937 = vadd.f32 0.0, %v2936
      %v2938 = vpop.f32.mrb[0].mxu0
      %2939 = vmatprep.mubr.f32.mxu0 0.0
      %2940 = vmatmul.mubr.f32.gmra.mrb[0].mxu0 %v2646
      %v2941 = vpop.f32.mrb[0].mxu0
      %v2942 = vadd.f32 0.0, %v2941
      %v2943 = vpop.f32.mrb[0].mxu0
      %2944 = vmatprep.mubr.f32.mxu0 0.0
      %2945 = vmatmul.mubr.f32.gmra.mrb[0].mxu0 %v2649
      %v2946 = vpop.f32.mrb[0].mxu0
      %v2947 = vadd.f32 0.0, %v2946
      %v2948 = vpop.f32.mrb[0].mxu0
      %2949 = vmatprep.mubr.f32.mxu0 0.0
      %2950 = vmatmul.mubr.f32.gmra.mrb[0].mxu0 %v2652
      %v2951 = vpop.f32.mrb[0].mxu0
      %v2952 = vadd.f32 0.0, %v2951
      %v2953 = vpop.f32.mrb[0].mxu0
      %2954 = vmatprep.mubr.f32.mxu0 0.0
      %2955 = vmatmul.mubr.f32.gmra.mrb[0].mxu0 %v2655
      %v2956 = vpop.f32.mrb[0].mxu0
      %v2957 = vadd.f32 0.0, %v2956
      %v2958 = vpop.f32.mrb[0].mxu0
      %2959 = vmatprep.mubr.f32.mxu0 0.0
      %2960 = vmatmul.mubr.f32.gmra.mrb[0].mxu0 %v2658
      %v2961 = vpop.f32.mrb[0].mxu0
      %v2962 = vadd.f32 0.0, %v2961
      %v2963 = vpop.f32.mrb[0].mxu0
      %2964 = vmatprep.mubr.f32.mxu0 0.0
      %2965 = vmatmul.mubr.f32.gmra.mrb[0].mxu0 %v2661
      %v2966 = vpop.f32.mrb[0].mxu0
      %v2967 = vadd.f32 0.0, %v2966
      %v2968 = vpop.f32.mrb[0].mxu0
      %2969 = vmatprep.mubr.f32.mxu0 0.0
      %2970 = vmatmul.mubr.f32.gmra.mrb[0].mxu0 %v2664
      %v2971 = vpop.f32.mrb[0].mxu0
      %v2972 = vadd.f32 0.0, %v2971
      %v2973 = vpop.f32.mrb[0].mxu0
      %2974 = vmatprep.mubr.f32.mxu0 0.0
      %2975 = vmatmul.mubr.f32.gmra.mrb[0].mxu0 %v2667
      %v2976 = vpop.f32.mrb[0].mxu0
      %v2977 = vadd.f32 0.0, %v2976
      %v2978 = vpop.f32.mrb[0].mxu0
      %2979 = vmatprep.mubr.f32.mxu0 0.0
      %2980 = vmatmul.mubr.f32.gmra.mrb[0].mxu0 %v2670
      %v2981 = vpop.f32.mrb[0].mxu0
      %v2982 = vadd.f32 0.0, %v2981
      %v2983 = vpop.f32.mrb[0].mxu0
      %2984 = vmatprep.mubr.f32.mxu0 0.0
      %2985 = vmatmul.mubr.f32.gmra.mrb[0].mxu0 %v2673
      %v2986 = vpop.f32.mrb[0].mxu0
      %v2987 = vadd.f32 0.0, %v2986
      %v2988 = vpop.f32.mrb[0].mxu0
      %2989 = vmatprep.mubr.f32.mxu0 0.0
      %2990 = vmatmul.mubr.f32.gmra.mrb[0].mxu0 %v2676
      %v2991 = vpop.f32.mrb[0].mxu0
      %v2992 = vadd.f32 0.0, %v2991
      %v2993 = vpop.f32.mrb[0].mxu0
      %2994 = vmatprep.mubr.f32.mxu0 0.0
      %2995 = vmatmul.mubr.f32.gmra.mrb[0].mxu0 %v2679
      %v2996 = vpop.f32.mrb[0].mxu0
      %v2997 = vadd.f32 0.0, %v2996
      %v2998 = vpop.f32.mrb[0].mxu0
      %2999 = vmatprep.mubr.f32.mxu0 0.0
      %3000 = vmatmul.mubr.f32.gmra.mrb[0].mxu0 %v2682
      %v3001 = vpop.f32.mrb[0].mxu0
      %v3002 = vadd.f32 0.0, %v3001
      %v3003 = vpop.f32.mrb[0].mxu0
      %3004 = vmatprep.mubr.f32.mxu0 0.0
      %3005 = vmatmul.mubr.f32.gmra.mrb[0].mxu0 %v2685
      %v3006 = vpop.f32.mrb[0].mxu0
      %v3007 = vadd.f32 0.0, %v3006
      %v3008 = vpop.f32.mrb[0].mxu0
      %3009 = vmatprep.mubr.f32.mxu0 0.0
      %3010 = vmatmul.mubr.f32.gmra.mrb[0].mxu0 %v2688
      %v3011 = vpop.f32.mrb[0].mxu0
      %v3012 = vadd.f32 0.0, %v3011
      %v3013 = vpop.f32.mrb[0].mxu0
      %3014 = vmatprep.mubr.f32.mxu0 0.0
      %3015 = vmatmul.mubr.f32.gmra.mrb[0].mxu0 %v2691
      %v3016 = vpop.f32.mrb[0].mxu0
      %v3017 = vadd.f32 0.0, %v3016
      %v3018 = vpop.f32.mrb[0].mxu0
      %3019 = vmatprep.mubr.f32.mxu0 0.0
      %3020 = vmatmul.mubr.f32.gmra.mrb[0].mxu0 %v2694
      %v3021 = vpop.f32.mrb[0].mxu0
      %v3022 = vadd.f32 0.0, %v3021
      %v3023 = vpop.f32.mrb[0].mxu0
      %3024 = vmatprep.mubr.f32.mxu0 0.0
      %3025 = vmatmul.mubr.f32.gmra.mrb[0].mxu0 %v2697
      %v3026 = vpop.f32.mrb[0].mxu0
      %v3027 = vadd.f32 0.0, %v3026
      %v3028 = vpop.f32.mrb[0].mxu0
      %3029 = vmatprep.mubr.f32.mxu0 0.0
      %3030 = vmatmul.mubr.f32.gmra.mrb[0].mxu0 %v2700
      %v3031 = vpop.f32.mrb[0].mxu0
      %v3032 = vadd.f32 0.0, %v3031
      %v3033 = vpop.f32.mrb[0].mxu0
      %3034 = vmatprep.mubr.f32.mxu0 0.0
      %3035 = vmatmul.mubr.f32.gmra.mrb[0].mxu0 %v2703
      %v3036 = vpop.f32.mrb[0].mxu0
      %v3037 = vadd.f32 0.0, %v3036
      %v3038 = vpop.f32.mrb[0].mxu0
      %3039 = vmatprep.mubr.f32.mxu0 0.0
      %3040 = vmatmul.mubr.f32.gmra.mrb[0].mxu0 %v2706
      %v3041 = vpop.f32.mrb[0].mxu0
      %v3042 = vadd.f32 0.0, %v3041
      %v3043 = vpop.f32.mrb[0].mxu0
      %3044 = vmatprep.mubr.f32.mxu0 0.0
      %3045 = vmatmul.mubr.f32.gmra.mrb[0].mxu0 %v2709
      %v3046 = vpop.f32.mrb[0].mxu0
      %v3047 = vadd.f32 0.0, %v3046
      %v3048 = vpop.f32.mrb[0].mxu0
      %3049 = vmatprep.mubr.f32.mxu0 0.0
      %3050 = vmatmul.mubr.f32.gmra.mrb[0].mxu0 %v2712
      %v3051 = vpop.f32.mrb[0].mxu0
      %v3052 = vadd.f32 0.0, %v3051
      %v3053 = vpop.f32.mrb[0].mxu0
      %3054 = vmatprep.mubr.f32.mxu0 0.0
      %3055 = vmatmul.mubr.f32.gmra.mrb[0].mxu0 %v2715
      %v3056 = vpop.f32.mrb[0].mxu0
      %v3057 = vadd.f32 0.0, %v3056
      %v3058 = vpop.f32.mrb[0].mxu0
      %3059 = vmatprep.mubr.f32.mxu0 0.0
      %3060 = vmatmul.mubr.f32.gmra.mrb[0].mxu0 %v2718
      %v3061 = vpop.f32.mrb[0].mxu0
      %v3062 = vadd.f32 0.0, %v3061
      %v3063 = vpop.f32.mrb[0].mxu0
      %3064 = vmatprep.mubr.f32.mxu0 0.0
      %3065 = vmatmul.mubr.f32.gmra.mrb[0].mxu0 %v2721
      %v3066 = vpop.f32.mrb[0].mxu0
      %v3067 = vadd.f32 0.0, %v3066
      %v3068 = vpop.f32.mrb[0].mxu0
      %3069 = vmatprep.mubr.f32.mxu0 0.0
      %3070 = vmatmul.mubr.f32.gmra.mrb[0].mxu0 %v2724
      %v3071 = vpop.f32.mrb[0].mxu0
      %v3072 = vadd.f32 0.0, %v3071
      %v3073 = vpop.f32.mrb[0].mxu0
      %3074 = vmatprep.mubr.f32.mxu0 0.0
      %3075 = vmatmul.mubr.f32.gmra.mrb[0].mxu0 %v2727
      %v3076 = vpop.f32.mrb[0].mxu0
      %v3077 = vadd.f32 0.0, %v3076
      %v3078 = vpop.f32.mrb[0].mxu0
      %3079 = vmatprep.mubr.f32.mxu0 0.0
      %3080 = vmatmul.mubr.f32.gmra.mrb[0].mxu0 %v2730
      %v3081 = vpop.f32.mrb[0].mxu0
      %v3082 = vadd.f32 0.0, %v3081
      %v3083 = vpop.f32.mrb[0].mxu0
      %3084 = vmatprep.mubr.f32.mxu0 0.0
      %3085 = vmatmul.mubr.f32.gmra.mrb[0].mxu0 %v2733
      %v3086 = vpop.f32.mrb[0].mxu0
      %v3087 = vadd.f32 0.0, %v3086
      %v3088 = vpop.f32.mrb[0].mxu0
      %3089 = vmatprep.mubr.f32.mxu0 0.0
      %3090 = vmatmul.mubr.f32.gmra.mrb[0].mxu0 %v2736
      %v3091 = vpop.f32.mrb[0].mxu0
      %v3092 = vadd.f32 0.0, %v3091
      %v3093 = vpop.f32.mrb[0].mxu0
      %3094 = vmatprep.mubr.f32.mxu0 0.0
      %3095 = vmatmul.mubr.f32.gmra.mrb[0].mxu0 %v2739
      %v3096 = vpop.f32.mrb[0].mxu0
      %v3097 = vadd.f32 0.0, %v3096
      %v3098 = vpop.f32.mrb[0].mxu0
      %3099 = vmatprep.mubr.f32.mxu0 0.0
      %3100 = vmatmul.mubr.f32.gmra.mrb[0].mxu0 %v2742
      %v3101 = vpop.f32.mrb[0].mxu0
      %v3102 = vadd.f32 0.0, %v3101
      %v3103 = vpop.f32.mrb[0].mxu0
      %3104 = vmatprep.mubr.f32.mxu0 0.0
      %3105 = vmatmul.mubr.f32.gmra.mrb[0].mxu0 %v2745
      %v3106 = vpop.f32.mrb[0].mxu0
      %v3107 = vadd.f32 0.0, %v3106
      %v3108 = vpop.f32.mrb[0].mxu0
      %3109 = vmatprep.mubr.f32.mxu0 0.0
      %3110 = vmatmul.mubr.f32.gmra.mrb[0].mxu0 %v2748
      %v3111 = vpop.f32.mrb[0].mxu0
      %v3112 = vadd.f32 0.0, %v3111
      %v3113 = vpop.f32.mrb[0].mxu0
      %3114 = vmatprep.mubr.f32.mxu0 0.0
      %3115 = vmatmul.mubr.f32.gmra.mrb[0].mxu0 %v2751
      %v3116 = vpop.f32.mrb[0].mxu0
      %v3117 = vadd.f32 0.0, %v3116
      %v3118 = vpop.f32.mrb[0].mxu0
      %3119 = vmatprep.mubr.f32.mxu0 0.0
      %3120 = vmatmul.mubr.f32.gmra.mrb[0].mxu0 %v2754
      %v3121 = vpop.f32.mrb[0].mxu0
      %v3122 = vadd.f32 0.0, %v3121
      %v3123 = vpop.f32.mrb[0].mxu0
      %3124 = vmatprep.mubr.f32.mxu0 0.0
      %3125 = vmatmul.mubr.f32.gmra.mrb[0].mxu0 %v2757
      %v3126 = vpop.f32.mrb[0].mxu0
      %v3127 = vadd.f32 0.0, %v3126
      %v3128 = vpop.f32.mrb[0].mxu0
      %3129 = vmatprep.mubr.f32.mxu0 0.0
      %3130 = vmatmul.mubr.f32.gmra.mrb[0].mxu0 %v2760
      %v3131 = vpop.f32.mrb[0].mxu0
      %v3132 = vadd.f32 0.0, %v3131
      %v3133 = vpop.f32.mrb[0].mxu0
      %3134 = vmatprep.mubr.f32.mxu0 0.0
      %3135 = vmatmul.mubr.f32.gmra.mrb[0].mxu0 %v2763
      %v3136 = vpop.f32.mrb[0].mxu0
      %v3137 = vadd.f32 0.0, %v3136
      %v3138 = vpop.f32.mrb[0].mxu0
      %3139 = vmatprep.mubr.f32.mxu0 0.0
      %3140 = vmatmul.mubr.f32.gmra.mrb[0].mxu0 %v2766
      %v3141 = vpop.f32.mrb[0].mxu0
      %v3142 = vadd.f32 0.0, %v3141
      %v3143 = vpop.f32.mrb[0].mxu0
      %3144 = vmatprep.mubr.f32.mxu0 0.0
      %3145 = vmatmul.mubr.f32.gmra.mrb[0].mxu0 %v2769
      %v3146 = vpop.f32.mrb[0].mxu0
      %v3147 = vadd.f32 0.0, %v3146
      %v3148 = vpop.f32.mrb[0].mxu0
      %3149 = vmatprep.mubr.f32.mxu0 0.0
      %3150 = vmatmul.mubr.f32.gmra.mrb[0].mxu0 %v2772
      %v3151 = vpop.f32.mrb[0].mxu0
      %v3152 = vadd.f32 0.0, %v3151
      %v3153 = vpop.f32.mrb[0].mxu0
      %3154 = vmatprep.mubr.f32.mxu0 0.0
      %3155 = vmatmul.mubr.f32.gmra.mrb[0].mxu0 %v2775
      %v3156 = vpop.f32.mrb[0].mxu0
      %v3157 = vadd.f32 0.0, %v3156
      %v3158 = vpop.f32.mrb[0].mxu0
      %3159 = vmatprep.mubr.f32.mxu0 0.0
      %3160 = vmatmul.mubr.f32.gmra.mrb[0].mxu0 %v2778
      %v3161 = vpop.f32.mrb[0].mxu0
      %v3162 = vadd.f32 0.0, %v3161
      %v3163 = vpop.f32.mrb[0].mxu0
      %3164 = vmatprep.mubr.f32.mxu0 0.0
      %3165 = vmatmul.mubr.f32.gmra.mrb[0].mxu0 %v2781
      %v3166 = vpop.f32.mrb[0].mxu0
      %v3167 = vadd.f32 0.0, %v3166
      %v3168 = vpop.f32.mrb[0].mxu0
      %3169 = vmatprep.mubr.f32.mxu0 0.0
      %3170 = vmatmul.mubr.f32.gmra.mrb[0].mxu0 %v2784
      %v3171 = vpop.f32.mrb[0].mxu0
      %v3172 = vadd.f32 0.0, %v3171
      %v3173 = vpop.f32.mrb[0].mxu0
      %3174 = vmatprep.mubr.f32.mxu0 0.0
      %3175 = vmatmul.mubr.f32.gmra.mrb[0].mxu0 %v2787
      %v3176 = vpop.f32.mrb[0].mxu0
      %v3177 = vadd.f32 0.0, %v3176
      %v3178 = vpop.f32.mrb[0].mxu0
      %3179 = vdwg.mxu0
      %v3180 = vld [vmem:[#allocation4] sm:$0xff]
      %v3181 = vld [vmem:[#allocation4 + $0x8] sm:$0xff]
      %v3182 = vld [vmem:[#allocation4 + $0x10] sm:$0xff]
      %v3183 = vld [vmem:[#allocation4 + $0x18] sm:$0xff]
      %v3184 = vld [vmem:[#allocation4 + $0x20] sm:$0xff]
      %v3185 = vld [vmem:[#allocation4 + $0x28] sm:$0xff]
      %v3186 = vld [vmem:[#allocation4 + $0x30] sm:$0xff]
      %v3187 = vld [vmem:[#allocation4 + $0x38] sm:$0xff]
      %v3188 = vld [vmem:[#allocation4 + $0x40] sm:$0xff]
      %v3189 = vld [vmem:[#allocation4 + $0x48] sm:$0xff]
      %v3190 = vld [vmem:[#allocation4 + $0x50] sm:$0xff]
      %v3191 = vld [vmem:[#allocation4 + $0x58] sm:$0xff]
      %v3192 = vld [vmem:[#allocation4 + $0x60] sm:$0xff]
      %v3193 = vld [vmem:[#allocation4 + $0x68] sm:$0xff]
      %v3194 = vld [vmem:[#allocation4 + $0x70] sm:$0xff]
      %v3195 = vld [vmem:[#allocation4 + $0x78] sm:$0xff]
      %v3196 = vld [vmem:[#allocation4 + $0x80] sm:$0xff]
      %v3197 = vld [vmem:[#allocation4 + $0x88] sm:$0xff]
      %v3198 = vld [vmem:[#allocation4 + $0x90] sm:$0xff]
      %v3199 = vld [vmem:[#allocation4 + $0x98] sm:$0xff]
      %v3200 = vld [vmem:[#allocation4 + $0xa0] sm:$0xff]
      %v3201 = vld [vmem:[#allocation4 + $0xa8] sm:$0xff]
      %v3202 = vld [vmem:[#allocation4 + $0xb0] sm:$0xff]
      %v3203 = vld [vmem:[#allocation4 + $0xb8] sm:$0xff]
      %v3204 = vld [vmem:[#allocation4 + $0xc0] sm:$0xff]
      %v3205 = vld [vmem:[#allocation4 + $0xc8] sm:$0xff]
      %v3206 = vld [vmem:[#allocation4 + $0xd0] sm:$0xff]
      %v3207 = vld [vmem:[#allocation4 + $0xd8] sm:$0xff]
      %v3208 = vld [vmem:[#allocation4 + $0xe0] sm:$0xff]
      %v3209 = vld [vmem:[#allocation4 + $0xe8] sm:$0xff]
      %v3210 = vld [vmem:[#allocation4 + $0xf0] sm:$0xff]
      %v3211 = vld [vmem:[#allocation4 + $0xf8] sm:$0xff]
      %v3212 = vld [vmem:[#allocation4 + $0x100] sm:$0xff]
      %v3213 = vld [vmem:[#allocation4 + $0x108] sm:$0xff]
      %v3214 = vld [vmem:[#allocation4 + $0x110] sm:$0xff]
      %v3215 = vld [vmem:[#allocation4 + $0x118] sm:$0xff]
      %v3216 = vld [vmem:[#allocation4 + $0x120] sm:$0xff]
      %v3217 = vld [vmem:[#allocation4 + $0x128] sm:$0xff]
      %v3218 = vld [vmem:[#allocation4 + $0x130] sm:$0xff]
      %v3219 = vld [vmem:[#allocation4 + $0x138] sm:$0xff]
      %v3220 = vld [vmem:[#allocation4 + $0x140] sm:$0xff]
      %v3221 = vld [vmem:[#allocation4 + $0x148] sm:$0xff]
      %v3222 = vld [vmem:[#allocation4 + $0x150] sm:$0xff]
      %v3223 = vld [vmem:[#allocation4 + $0x158] sm:$0xff]
      %v3224 = vld [vmem:[#allocation4 + $0x160] sm:$0xff]
      %v3225 = vld [vmem:[#allocation4 + $0x168] sm:$0xff]
      %v3226 = vld [vmem:[#allocation4 + $0x170] sm:$0xff]
      %v3227 = vld [vmem:[#allocation4 + $0x178] sm:$0xff]
      %v3228 = vld [vmem:[#allocation4 + $0x180] sm:$0xff]
      %v3229 = vld [vmem:[#allocation4 + $0x188] sm:$0xff]
      %v3230 = vld [vmem:[#allocation4 + $0x190] sm:$0xff]
      %v3231 = vld [vmem:[#allocation4 + $0x198] sm:$0xff]
      %v3232 = vld [vmem:[#allocation4 + $0x1a0] sm:$0xff]
      %v3233 = vld [vmem:[#allocation4 + $0x1a8] sm:$0xff]
      %v3234 = vld [vmem:[#allocation4 + $0x1b0] sm:$0xff]
      %v3235 = vld [vmem:[#allocation4 + $0x1b8] sm:$0xff]
      %v3236 = vld [vmem:[#allocation4 + $0x1c0] sm:$0xff]
      %v3237 = vld [vmem:[#allocation4 + $0x1c8] sm:$0xff]
      %v3238 = vld [vmem:[#allocation4 + $0x1d0] sm:$0xff]
      %v3239 = vld [vmem:[#allocation4 + $0x1d8] sm:$0xff]
      %v3240 = vld [vmem:[#allocation4 + $0x1e0] sm:$0xff]
      %v3241 = vld [vmem:[#allocation4 + $0x1e8] sm:$0xff]
      %v3242 = vld [vmem:[#allocation4 + $0x1f0] sm:$0xff]
      %v3243 = vld [vmem:[#allocation4 + $0x1f8] sm:$0xff]
      %3245 = vset.pattern.permute.xlu0 0
      %3246 = vperm.xlu0 %3245, %v1507
      %v3247 = vpop.permute.xlu0 %3246
      %3250 = vset.pattern.permute.xlu0 0
      %3251 = vperm.xlu0 %3250, %v1509
      %v3252 = vpop.permute.xlu0 %3251
      %3255 = vset.pattern.permute.xlu0 0
      %3256 = vperm.xlu0 %3255, %v1511
      %v3257 = vpop.permute.xlu0 %3256
      %3260 = vset.pattern.permute.xlu0 0
      %3261 = vperm.xlu0 %3260, %v1513
      %v3262 = vpop.permute.xlu0 %3261
      %3265 = vset.pattern.permute.xlu0 0
      %3266 = vperm.xlu0 %3265, %v1515
      %v3267 = vpop.permute.xlu0 %3266
      %3270 = vset.pattern.permute.xlu0 0
      %3271 = vperm.xlu0 %3270, %v1517
      %v3272 = vpop.permute.xlu0 %3271
      %3275 = vset.pattern.permute.xlu0 0
      %3276 = vperm.xlu0 %3275, %v1519
      %v3277 = vpop.permute.xlu0 %3276
      %3280 = vset.pattern.permute.xlu0 0
      %3281 = vperm.xlu0 %3280, %v1521
      %v3282 = vpop.permute.xlu0 %3281
      %3285 = vset.pattern.permute.xlu0 0
      %3286 = vperm.xlu0 %3285, %v1523
      %v3287 = vpop.permute.xlu0 %3286
      %3290 = vset.pattern.permute.xlu0 0
      %3291 = vperm.xlu0 %3290, %v1525
      %v3292 = vpop.permute.xlu0 %3291
      %3295 = vset.pattern.permute.xlu0 0
      %3296 = vperm.xlu0 %3295, %v1527
      %v3297 = vpop.permute.xlu0 %3296
      %3300 = vset.pattern.permute.xlu0 0
      %3301 = vperm.xlu0 %3300, %v1529
      %v3302 = vpop.permute.xlu0 %3301
      %3305 = vset.pattern.permute.xlu0 0
      %3306 = vperm.xlu0 %3305, %v1531
      %v3307 = vpop.permute.xlu0 %3306
      %3310 = vset.pattern.permute.xlu0 0
      %3311 = vperm.xlu0 %3310, %v1533
      %v3312 = vpop.permute.xlu0 %3311
      %3315 = vset.pattern.permute.xlu0 0
      %3316 = vperm.xlu0 %3315, %v1535
      %v3317 = vpop.permute.xlu0 %3316
      %3320 = vset.pattern.permute.xlu0 0
      %3321 = vperm.xlu0 %3320, %v1537
      %v3322 = vpop.permute.xlu0 %3321
      %3325 = vset.pattern.permute.xlu0 0
      %3326 = vperm.xlu0 %3325, %v1539
      %v3327 = vpop.permute.xlu0 %3326
      %3330 = vset.pattern.permute.xlu0 0
      %3331 = vperm.xlu0 %3330, %v1541
      %v3332 = vpop.permute.xlu0 %3331
      %3335 = vset.pattern.permute.xlu0 0
      %3336 = vperm.xlu0 %3335, %v1543
      %v3337 = vpop.permute.xlu0 %3336
      %3340 = vset.pattern.permute.xlu0 0
      %3341 = vperm.xlu0 %3340, %v1545
      %v3342 = vpop.permute.xlu0 %3341
      %3345 = vset.pattern.permute.xlu0 0
      %3346 = vperm.xlu0 %3345, %v1547
      %v3347 = vpop.permute.xlu0 %3346
      %3350 = vset.pattern.permute.xlu0 0
      %3351 = vperm.xlu0 %3350, %v1549
      %v3352 = vpop.permute.xlu0 %3351
      %3355 = vset.pattern.permute.xlu0 0
      %3356 = vperm.xlu0 %3355, %v1551
      %v3357 = vpop.permute.xlu0 %3356
      %3360 = vset.pattern.permute.xlu0 0
      %3361 = vperm.xlu0 %3360, %v1553
      %v3362 = vpop.permute.xlu0 %3361
      %3365 = vset.pattern.permute.xlu0 0
      %3366 = vperm.xlu0 %3365, %v1555
      %v3367 = vpop.permute.xlu0 %3366
      %3370 = vset.pattern.permute.xlu0 0
      %3371 = vperm.xlu0 %3370, %v1557
      %v3372 = vpop.permute.xlu0 %3371
      %3375 = vset.pattern.permute.xlu0 0
      %3376 = vperm.xlu0 %3375, %v1559
      %v3377 = vpop.permute.xlu0 %3376
      %3380 = vset.pattern.permute.xlu0 0
      %3381 = vperm.xlu0 %3380, %v1561
      %v3382 = vpop.permute.xlu0 %3381
      %3385 = vset.pattern.permute.xlu0 0
      %3386 = vperm.xlu0 %3385, %v1563
      %v3387 = vpop.permute.xlu0 %3386
      %3390 = vset.pattern.permute.xlu0 0
      %3391 = vperm.xlu0 %3390, %v1565
      %v3392 = vpop.permute.xlu0 %3391
      %3395 = vset.pattern.permute.xlu0 0
      %3396 = vperm.xlu0 %3395, %v1567
      %v3397 = vpop.permute.xlu0 %3396
      %3400 = vset.pattern.permute.xlu0 0
      %3401 = vperm.xlu0 %3400, %v1569
      %v3402 = vpop.permute.xlu0 %3401
      %3405 = vset.pattern.permute.xlu0 0
      %3406 = vperm.xlu0 %3405, %v1571
      %v3407 = vpop.permute.xlu0 %3406
      %3410 = vset.pattern.permute.xlu0 0
      %3411 = vperm.xlu0 %3410, %v1573
      %v3412 = vpop.permute.xlu0 %3411
      %3415 = vset.pattern.permute.xlu0 0
      %3416 = vperm.xlu0 %3415, %v1575
      %v3417 = vpop.permute.xlu0 %3416
      %3420 = vset.pattern.permute.xlu0 0
      %3421 = vperm.xlu0 %3420, %v1577
      %v3422 = vpop.permute.xlu0 %3421
      %3425 = vset.pattern.permute.xlu0 0
      %3426 = vperm.xlu0 %3425, %v1579
      %v3427 = vpop.permute.xlu0 %3426
      %3430 = vset.pattern.permute.xlu0 0
      %3431 = vperm.xlu0 %3430, %v1581
      %v3432 = vpop.permute.xlu0 %3431
      %3435 = vset.pattern.permute.xlu0 0
      %3436 = vperm.xlu0 %3435, %v1583
      %v3437 = vpop.permute.xlu0 %3436
      %3440 = vset.pattern.permute.xlu0 0
      %3441 = vperm.xlu0 %3440, %v1585
      %v3442 = vpop.permute.xlu0 %3441
      %3445 = vset.pattern.permute.xlu0 0
      %3446 = vperm.xlu0 %3445, %v1587
      %v3447 = vpop.permute.xlu0 %3446
      %3450 = vset.pattern.permute.xlu0 0
      %3451 = vperm.xlu0 %3450, %v1589
      %v3452 = vpop.permute.xlu0 %3451
      %3455 = vset.pattern.permute.xlu0 0
      %3456 = vperm.xlu0 %3455, %v1591
      %v3457 = vpop.permute.xlu0 %3456
      %3460 = vset.pattern.permute.xlu0 0
      %3461 = vperm.xlu0 %3460, %v1593
      %v3462 = vpop.permute.xlu0 %3461
      %3465 = vset.pattern.permute.xlu0 0
      %3466 = vperm.xlu0 %3465, %v1595
      %v3467 = vpop.permute.xlu0 %3466
      %3470 = vset.pattern.permute.xlu0 0
      %3471 = vperm.xlu0 %3470, %v1597
      %v3472 = vpop.permute.xlu0 %3471
      %3475 = vset.pattern.permute.xlu0 0
      %3476 = vperm.xlu0 %3475, %v1599
      %v3477 = vpop.permute.xlu0 %3476
      %3480 = vset.pattern.permute.xlu0 0
      %3481 = vperm.xlu0 %3480, %v1601
      %v3482 = vpop.permute.xlu0 %3481
      %3485 = vset.pattern.permute.xlu0 0
      %3486 = vperm.xlu0 %3485, %v1603
      %v3487 = vpop.permute.xlu0 %3486
      %3490 = vset.pattern.permute.xlu0 0
      %3491 = vperm.xlu0 %3490, %v1605
      %v3492 = vpop.permute.xlu0 %3491
      %3495 = vset.pattern.permute.xlu0 0
      %3496 = vperm.xlu0 %3495, %v1607
      %v3497 = vpop.permute.xlu0 %3496
      %3500 = vset.pattern.permute.xlu0 0
      %3501 = vperm.xlu0 %3500, %v1609
      %v3502 = vpop.permute.xlu0 %3501
      %3505 = vset.pattern.permute.xlu0 0
      %3506 = vperm.xlu0 %3505, %v1611
      %v3507 = vpop.permute.xlu0 %3506
      %3510 = vset.pattern.permute.xlu0 0
      %3511 = vperm.xlu0 %3510, %v1613
      %v3512 = vpop.permute.xlu0 %3511
      %3515 = vset.pattern.permute.xlu0 0
      %3516 = vperm.xlu0 %3515, %v1615
      %v3517 = vpop.permute.xlu0 %3516
      %3520 = vset.pattern.permute.xlu0 0
      %3521 = vperm.xlu0 %3520, %v1617
      %v3522 = vpop.permute.xlu0 %3521
      %3525 = vset.pattern.permute.xlu0 0
      %3526 = vperm.xlu0 %3525, %v1619
      %v3527 = vpop.permute.xlu0 %3526
      %3530 = vset.pattern.permute.xlu0 0
      %3531 = vperm.xlu0 %3530, %v1621
      %v3532 = vpop.permute.xlu0 %3531
      %3535 = vset.pattern.permute.xlu0 0
      %3536 = vperm.xlu0 %3535, %v1623
      %v3537 = vpop.permute.xlu0 %3536
      %3540 = vset.pattern.permute.xlu0 0
      %3541 = vperm.xlu0 %3540, %v1625
      %v3542 = vpop.permute.xlu0 %3541
      %3545 = vset.pattern.permute.xlu0 0
      %3546 = vperm.xlu0 %3545, %v1627
      %v3547 = vpop.permute.xlu0 %3546
      %3550 = vset.pattern.permute.xlu0 0
      %3551 = vperm.xlu0 %3550, %v1629
      %v3552 = vpop.permute.xlu0 %3551
      %3555 = vset.pattern.permute.xlu0 0
      %3556 = vperm.xlu0 %3555, %v1631
      %v3557 = vpop.permute.xlu0 %3556
      %3560 = vset.pattern.permute.xlu0 0
      %3561 = vperm.xlu0 %3560, %v1633
      %v3562 = vpop.permute.xlu0 %3561
      %v3564 = vmul.f32 %v3247, %v3180
      %v3565 = vmul.f32 %v3252, %v3181
      %v3566 = vmul.f32 %v3257, %v3182
      %v3567 = vmul.f32 %v3262, %v3183
      %v3568 = vmul.f32 %v3267, %v3184
      %v3569 = vmul.f32 %v3272, %v3185
      %v3570 = vmul.f32 %v3277, %v3186
      %v3571 = vmul.f32 %v3282, %v3187
      %v3572 = vmul.f32 %v3287, %v3188
      %v3573 = vmul.f32 %v3292, %v3189
      %v3574 = vmul.f32 %v3297, %v3190
      %v3575 = vmul.f32 %v3302, %v3191
      %v3576 = vmul.f32 %v3307, %v3192
      %v3577 = vmul.f32 %v3312, %v3193
      %v3578 = vmul.f32 %v3317, %v3194
      %v3579 = vmul.f32 %v3322, %v3195
      %v3580 = vmul.f32 %v3327, %v3196
      %v3581 = vmul.f32 %v3332, %v3197
      %v3582 = vmul.f32 %v3337, %v3198
      %v3583 = vmul.f32 %v3342, %v3199
      %v3584 = vmul.f32 %v3347, %v3200
      %v3585 = vmul.f32 %v3352, %v3201
      %v3586 = vmul.f32 %v3357, %v3202
      %v3587 = vmul.f32 %v3362, %v3203
      %v3588 = vmul.f32 %v3367, %v3204
      %v3589 = vmul.f32 %v3372, %v3205
      %v3590 = vmul.f32 %v3377, %v3206
      %v3591 = vmul.f32 %v3382, %v3207
      %v3592 = vmul.f32 %v3387, %v3208
      %v3593 = vmul.f32 %v3392, %v3209
      %v3594 = vmul.f32 %v3397, %v3210
      %v3595 = vmul.f32 %v3402, %v3211
      %v3596 = vmul.f32 %v3407, %v3212
      %v3597 = vmul.f32 %v3412, %v3213
      %v3598 = vmul.f32 %v3417, %v3214
      %v3599 = vmul.f32 %v3422, %v3215
      %v3600 = vmul.f32 %v3427, %v3216
      %v3601 = vmul.f32 %v3432, %v3217
      %v3602 = vmul.f32 %v3437, %v3218
      %v3603 = vmul.f32 %v3442, %v3219
      %v3604 = vmul.f32 %v3447, %v3220
      %v3605 = vmul.f32 %v3452, %v3221
      %v3606 = vmul.f32 %v3457, %v3222
      %v3607 = vmul.f32 %v3462, %v3223
      %v3608 = vmul.f32 %v3467, %v3224
      %v3609 = vmul.f32 %v3472, %v3225
      %v3610 = vmul.f32 %v3477, %v3226
      %v3611 = vmul.f32 %v3482, %v3227
      %v3612 = vmul.f32 %v3487, %v3228
      %v3613 = vmul.f32 %v3492, %v3229
      %v3614 = vmul.f32 %v3497, %v3230
      %v3615 = vmul.f32 %v3502, %v3231
      %v3616 = vmul.f32 %v3507, %v3232
      %v3617 = vmul.f32 %v3512, %v3233
      %v3618 = vmul.f32 %v3517, %v3234
      %v3619 = vmul.f32 %v3522, %v3235
      %v3620 = vmul.f32 %v3527, %v3236
      %v3621 = vmul.f32 %v3532, %v3237
      %v3622 = vmul.f32 %v3537, %v3238
      %v3623 = vmul.f32 %v3542, %v3239
      %v3624 = vmul.f32 %v3547, %v3240
      %v3625 = vmul.f32 %v3552, %v3241
      %v3626 = vmul.f32 %v3557, %v3242
      %v3627 = vmul.f32 %v3562, %v3243
      %v3628 = vadd.f32 %v3564, %v2862
      %v3629 = vadd.f32 %v3565, %v2867
      %v3630 = vadd.f32 %v3566, %v2872
      %v3631 = vadd.f32 %v3567, %v2877
      %v3632 = vadd.f32 %v3568, %v2882
      %v3633 = vadd.f32 %v3569, %v2887
      %v3634 = vadd.f32 %v3570, %v2892
      %v3635 = vadd.f32 %v3571, %v2897
      %v3636 = vadd.f32 %v3572, %v2902
      %v3637 = vadd.f32 %v3573, %v2907
      %v3638 = vadd.f32 %v3574, %v2912
      %v3639 = vadd.f32 %v3575, %v2917
      %v3640 = vadd.f32 %v3576, %v2922
      %v3641 = vadd.f32 %v3577, %v2927
      %v3642 = vadd.f32 %v3578, %v2932
      %v3643 = vadd.f32 %v3579, %v2937
      %v3644 = vadd.f32 %v3580, %v2942
      %v3645 = vadd.f32 %v3581, %v2947
      %v3646 = vadd.f32 %v3582, %v2952
      %v3647 = vadd.f32 %v3583, %v2957
      %v3648 = vadd.f32 %v3584, %v2962
      %v3649 = vadd.f32 %v3585, %v2967
      %v3650 = vadd.f32 %v3586, %v2972
      %v3651 = vadd.f32 %v3587, %v2977
      %v3652 = vadd.f32 %v3588, %v2982
      %v3653 = vadd.f32 %v3589, %v2987
      %v3654 = vadd.f32 %v3590, %v2992
      %v3655 = vadd.f32 %v3591, %v2997
      %v3656 = vadd.f32 %v3592, %v3002
      %v3657 = vadd.f32 %v3593, %v3007
      %v3658 = vadd.f32 %v3594, %v3012
      %v3659 = vadd.f32 %v3595, %v3017
      %v3660 = vadd.f32 %v3596, %v3022
      %v3661 = vadd.f32 %v3597, %v3027
      %v3662 = vadd.f32 %v3598, %v3032
      %v3663 = vadd.f32 %v3599, %v3037
      %v3664 = vadd.f32 %v3600, %v3042
      %v3665 = vadd.f32 %v3601, %v3047
      %v3666 = vadd.f32 %v3602, %v3052
      %v3667 = vadd.f32 %v3603, %v3057
      %v3668 = vadd.f32 %v3604, %v3062
      %v3669 = vadd.f32 %v3605, %v3067
      %v3670 = vadd.f32 %v3606, %v3072
      %v3671 = vadd.f32 %v3607, %v3077
      %v3672 = vadd.f32 %v3608, %v3082
      %v3673 = vadd.f32 %v3609, %v3087
      %v3674 = vadd.f32 %v3610, %v3092
      %v3675 = vadd.f32 %v3611, %v3097
      %v3676 = vadd.f32 %v3612, %v3102
      %v3677 = vadd.f32 %v3613, %v3107
      %v3678 = vadd.f32 %v3614, %v3112
      %v3679 = vadd.f32 %v3615, %v3117
      %v3680 = vadd.f32 %v3616, %v3122
      %v3681 = vadd.f32 %v3617, %v3127
      %v3682 = vadd.f32 %v3618, %v3132
      %v3683 = vadd.f32 %v3619, %v3137
      %v3684 = vadd.f32 %v3620, %v3142
      %v3685 = vadd.f32 %v3621, %v3147
      %v3686 = vadd.f32 %v3622, %v3152
      %v3687 = vadd.f32 %v3623, %v3157
      %v3688 = vadd.f32 %v3624, %v3162
      %v3689 = vadd.f32 %v3625, %v3167
      %v3690 = vadd.f32 %v3626, %v3172
      %v3691 = vadd.f32 %v3627, %v3177
      %vm3692 = vcmask 130048
      %3693 = vst.msk [vmem:[#allocation4] sm:$0xff] %vm3692, %v3628
      %3694 = vst.msk [vmem:[#allocation4 + $0x8] sm:$0xff] %vm3692, %v3629
      %3695 = vst.msk [vmem:[#allocation4 + $0x10] sm:$0xff] %vm3692, %v3630
      %3696 = vst.msk [vmem:[#allocation4 + $0x18] sm:$0xff] %vm3692, %v3631
      %3697 = vst.msk [vmem:[#allocation4 + $0x20] sm:$0xff] %vm3692, %v3632
      %3698 = vst.msk [vmem:[#allocation4 + $0x28] sm:$0xff] %vm3692, %v3633
      %3699 = vst.msk [vmem:[#allocation4 + $0x30] sm:$0xff] %vm3692, %v3634
      %3700 = vst.msk [vmem:[#allocation4 + $0x38] sm:$0xff] %vm3692, %v3635
      %3701 = vst.msk [vmem:[#allocation4 + $0x40] sm:$0xff] %vm3692, %v3636
      %3702 = vst.msk [vmem:[#allocation4 + $0x48] sm:$0xff] %vm3692, %v3637
      %3703 = vst.msk [vmem:[#allocation4 + $0x50] sm:$0xff] %vm3692, %v3638
      %3704 = vst.msk [vmem:[#allocation4 + $0x58] sm:$0xff] %vm3692, %v3639
      %3705 = vst.msk [vmem:[#allocation4 + $0x60] sm:$0xff] %vm3692, %v3640
      %3706 = vst.msk [vmem:[#allocation4 + $0x68] sm:$0xff] %vm3692, %v3641
      %3707 = vst.msk [vmem:[#allocation4 + $0x70] sm:$0xff] %vm3692, %v3642
      %3708 = vst.msk [vmem:[#allocation4 + $0x78] sm:$0xff] %vm3692, %v3643
      %3709 = vst.msk [vmem:[#allocation4 + $0x80] sm:$0xff] %vm3692, %v3644
      %3710 = vst.msk [vmem:[#allocation4 + $0x88] sm:$0xff] %vm3692, %v3645
      %3711 = vst.msk [vmem:[#allocation4 + $0x90] sm:$0xff] %vm3692, %v3646
      %3712 = vst.msk [vmem:[#allocation4 + $0x98] sm:$0xff] %vm3692, %v3647
      %3713 = vst.msk [vmem:[#allocation4 + $0xa0] sm:$0xff] %vm3692, %v3648
      %3714 = vst.msk [vmem:[#allocation4 + $0xa8] sm:$0xff] %vm3692, %v3649
      %3715 = vst.msk [vmem:[#allocation4 + $0xb0] sm:$0xff] %vm3692, %v3650
      %3716 = vst.msk [vmem:[#allocation4 + $0xb8] sm:$0xff] %vm3692, %v3651
      %3717 = vst.msk [vmem:[#allocation4 + $0xc0] sm:$0xff] %vm3692, %v3652
      %3718 = vst.msk [vmem:[#allocation4 + $0xc8] sm:$0xff] %vm3692, %v3653
      %3719 = vst.msk [vmem:[#allocation4 + $0xd0] sm:$0xff] %vm3692, %v3654
      %3720 = vst.msk [vmem:[#allocation4 + $0xd8] sm:$0xff] %vm3692, %v3655
      %3721 = vst.msk [vmem:[#allocation4 + $0xe0] sm:$0xff] %vm3692, %v3656
      %3722 = vst.msk [vmem:[#allocation4 + $0xe8] sm:$0xff] %vm3692, %v3657
      %3723 = vst.msk [vmem:[#allocation4 + $0xf0] sm:$0xff] %vm3692, %v3658
      %3724 = vst.msk [vmem:[#allocation4 + $0xf8] sm:$0xff] %vm3692, %v3659
      %3725 = vst.msk [vmem:[#allocation4 + $0x100] sm:$0xff] %vm3692, %v3660
      %3726 = vst.msk [vmem:[#allocation4 + $0x108] sm:$0xff] %vm3692, %v3661
      %3727 = vst.msk [vmem:[#allocation4 + $0x110] sm:$0xff] %vm3692, %v3662
      %3728 = vst.msk [vmem:[#allocation4 + $0x118] sm:$0xff] %vm3692, %v3663
      %3729 = vst.msk [vmem:[#allocation4 + $0x120] sm:$0xff] %vm3692, %v3664
      %3730 = vst.msk [vmem:[#allocation4 + $0x128] sm:$0xff] %vm3692, %v3665
      %3731 = vst.msk [vmem:[#allocation4 + $0x130] sm:$0xff] %vm3692, %v3666
      %3732 = vst.msk [vmem:[#allocation4 + $0x138] sm:$0xff] %vm3692, %v3667
      %3733 = vst.msk [vmem:[#allocation4 + $0x140] sm:$0xff] %vm3692, %v3668
      %3734 = vst.msk [vmem:[#allocation4 + $0x148] sm:$0xff] %vm3692, %v3669
      %3735 = vst.msk [vmem:[#allocation4 + $0x150] sm:$0xff] %vm3692, %v3670
      %3736 = vst.msk [vmem:[#allocation4 + $0x158] sm:$0xff] %vm3692, %v3671
      %3737 = vst.msk [vmem:[#allocation4 + $0x160] sm:$0xff] %vm3692, %v3672
      %3738 = vst.msk [vmem:[#allocation4 + $0x168] sm:$0xff] %vm3692, %v3673
      %3739 = vst.msk [vmem:[#allocation4 + $0x170] sm:$0xff] %vm3692, %v3674
      %3740 = vst.msk [vmem:[#allocation4 + $0x178] sm:$0xff] %vm3692, %v3675
      %3741 = vst.msk [vmem:[#allocation4 + $0x180] sm:$0xff] %vm3692, %v3676
      %3742 = vst.msk [vmem:[#allocation4 + $0x188] sm:$0xff] %vm3692, %v3677
      %3743 = vst.msk [vmem:[#allocation4 + $0x190] sm:$0xff] %vm3692, %v3678
      %3744 = vst.msk [vmem:[#allocation4 + $0x198] sm:$0xff] %vm3692, %v3679
      %3745 = vst.msk [vmem:[#allocation4 + $0x1a0] sm:$0xff] %vm3692, %v3680
      %3746 = vst.msk [vmem:[#allocation4 + $0x1a8] sm:$0xff] %vm3692, %v3681
      %3747 = vst.msk [vmem:[#allocation4 + $0x1b0] sm:$0xff] %vm3692, %v3682
      %3748 = vst.msk [vmem:[#allocation4 + $0x1b8] sm:$0xff] %vm3692, %v3683
      %3749 = vst.msk [vmem:[#allocation4 + $0x1c0] sm:$0xff] %vm3692, %v3684
      %3750 = vst.msk [vmem:[#allocation4 + $0x1c8] sm:$0xff] %vm3692, %v3685
      %3751 = vst.msk [vmem:[#allocation4 + $0x1d0] sm:$0xff] %vm3692, %v3686
      %3752 = vst.msk [vmem:[#allocation4 + $0x1d8] sm:$0xff] %vm3692, %v3687
      %3753 = vst.msk [vmem:[#allocation4 + $0x1e0] sm:$0xff] %vm3692, %v3688
      %3754 = vst.msk [vmem:[#allocation4 + $0x1e8] sm:$0xff] %vm3692, %v3689
      %3755 = vst.msk [vmem:[#allocation4 + $0x1f0] sm:$0xff] %vm3692, %v3690
      %3756 = vst.msk [vmem:[#allocation4 + $0x1f8] sm:$0xff] %vm3692, %v3691
      %3757 = vst.msk [vmem:[#allocation2] sm:$0xff] %vm2530, %v1378
      %3758 = vst.msk [vmem:[#allocation2 + $0x8] sm:$0xff] %vm2530, %v1379
      %3759 = vst.msk [vmem:[#allocation2 + $0x10] sm:$0xff] %vm2530, %v1380
      %3760 = vst.msk [vmem:[#allocation2 + $0x18] sm:$0xff] %vm2530, %v1381
      %3761 = vst.msk [vmem:[#allocation2 + $0x20] sm:$0xff] %vm2530, %v1382
      %3762 = vst.msk [vmem:[#allocation2 + $0x28] sm:$0xff] %vm2530, %v1383
      %3763 = vst.msk [vmem:[#allocation2 + $0x30] sm:$0xff] %vm2530, %v1384
      %3764 = vst.msk [vmem:[#allocation2 + $0x38] sm:$0xff] %vm2530, %v1385
      %3765 = vst.msk [vmem:[#allocation2 + $0x40] sm:$0xff] %vm2530, %v1386
      %3766 = vst.msk [vmem:[#allocation2 + $0x48] sm:$0xff] %vm2530, %v1387
      %3767 = vst.msk [vmem:[#allocation2 + $0x50] sm:$0xff] %vm2530, %v1388
      %3768 = vst.msk [vmem:[#allocation2 + $0x58] sm:$0xff] %vm2530, %v1389
      %3769 = vst.msk [vmem:[#allocation2 + $0x60] sm:$0xff] %vm2530, %v1390
      %3770 = vst.msk [vmem:[#allocation2 + $0x68] sm:$0xff] %vm2530, %v1391
      %3771 = vst.msk [vmem:[#allocation2 + $0x70] sm:$0xff] %vm2530, %v1392
      %3772 = vst.msk [vmem:[#allocation2 + $0x78] sm:$0xff] %vm2530, %v1393
      %3773 = vst.msk [vmem:[#allocation2 + $0x80] sm:$0xff] %vm2530, %v1394
      %3774 = vst.msk [vmem:[#allocation2 + $0x88] sm:$0xff] %vm2530, %v1395
      %3775 = vst.msk [vmem:[#allocation2 + $0x90] sm:$0xff] %vm2530, %v1396
      %3776 = vst.msk [vmem:[#allocation2 + $0x98] sm:$0xff] %vm2530, %v1397
      %3777 = vst.msk [vmem:[#allocation2 + $0xa0] sm:$0xff] %vm2530, %v1398
      %3778 = vst.msk [vmem:[#allocation2 + $0xa8] sm:$0xff] %vm2530, %v1399
      %3779 = vst.msk [vmem:[#allocation2 + $0xb0] sm:$0xff] %vm2530, %v1400
      %3780 = vst.msk [vmem:[#allocation2 + $0xb8] sm:$0xff] %vm2530, %v1401
      %3781 = vst.msk [vmem:[#allocation2 + $0xc0] sm:$0xff] %vm2530, %v1402
      %3782 = vst.msk [vmem:[#allocation2 + $0xc8] sm:$0xff] %vm2530, %v1403
      %3783 = vst.msk [vmem:[#allocation2 + $0xd0] sm:$0xff] %vm2530, %v1404
      %3784 = vst.msk [vmem:[#allocation2 + $0xd8] sm:$0xff] %vm2530, %v1405
      %3785 = vst.msk [vmem:[#allocation2 + $0xe0] sm:$0xff] %vm2530, %v1406
      %3786 = vst.msk [vmem:[#allocation2 + $0xe8] sm:$0xff] %vm2530, %v1407
      %3787 = vst.msk [vmem:[#allocation2 + $0xf0] sm:$0xff] %vm2530, %v1408
      %3788 = vst.msk [vmem:[#allocation2 + $0xf8] sm:$0xff] %vm2530, %v1409
      %3789 = vst.msk [vmem:[#allocation2 + $0x100] sm:$0xff] %vm2530, %v1410
      %3790 = vst.msk [vmem:[#allocation2 + $0x108] sm:$0xff] %vm2530, %v1411
      %3791 = vst.msk [vmem:[#allocation2 + $0x110] sm:$0xff] %vm2530, %v1412
      %3792 = vst.msk [vmem:[#allocation2 + $0x118] sm:$0xff] %vm2530, %v1413
      %3793 = vst.msk [vmem:[#allocation2 + $0x120] sm:$0xff] %vm2530, %v1414
      %3794 = vst.msk [vmem:[#allocation2 + $0x128] sm:$0xff] %vm2530, %v1415
      %3795 = vst.msk [vmem:[#allocation2 + $0x130] sm:$0xff] %vm2530, %v1416
      %3796 = vst.msk [vmem:[#allocation2 + $0x138] sm:$0xff] %vm2530, %v1417
      %3797 = vst.msk [vmem:[#allocation2 + $0x140] sm:$0xff] %vm2530, %v1418
      %3798 = vst.msk [vmem:[#allocation2 + $0x148] sm:$0xff] %vm2530, %v1419
      %3799 = vst.msk [vmem:[#allocation2 + $0x150] sm:$0xff] %vm2530, %v1420
      %3800 = vst.msk [vmem:[#allocation2 + $0x158] sm:$0xff] %vm2530, %v1421
      %3801 = vst.msk [vmem:[#allocation2 + $0x160] sm:$0xff] %vm2530, %v1422
      %3802 = vst.msk [vmem:[#allocation2 + $0x168] sm:$0xff] %vm2530, %v1423
      %3803 = vst.msk [vmem:[#allocation2 + $0x170] sm:$0xff] %vm2530, %v1424
      %3804 = vst.msk [vmem:[#allocation2 + $0x178] sm:$0xff] %vm2530, %v1425
      %3805 = vst.msk [vmem:[#allocation2 + $0x180] sm:$0xff] %vm2530, %v1426
      %3806 = vst.msk [vmem:[#allocation2 + $0x188] sm:$0xff] %vm2530, %v1427
      %3807 = vst.msk [vmem:[#allocation2 + $0x190] sm:$0xff] %vm2530, %v1428
      %3808 = vst.msk [vmem:[#allocation2 + $0x198] sm:$0xff] %vm2530, %v1429
      %3809 = vst.msk [vmem:[#allocation2 + $0x1a0] sm:$0xff] %vm2530, %v1430
      %3810 = vst.msk [vmem:[#allocation2 + $0x1a8] sm:$0xff] %vm2530, %v1431
      %3811 = vst.msk [vmem:[#allocation2 + $0x1b0] sm:$0xff] %vm2530, %v1432
      %3812 = vst.msk [vmem:[#allocation2 + $0x1b8] sm:$0xff] %vm2530, %v1433
      %3813 = vst.msk [vmem:[#allocation2 + $0x1c0] sm:$0xff] %vm2530, %v1434
      %3814 = vst.msk [vmem:[#allocation2 + $0x1c8] sm:$0xff] %vm2530, %v1435
      %3815 = vst.msk [vmem:[#allocation2 + $0x1d0] sm:$0xff] %vm2530, %v1436
      %3816 = vst.msk [vmem:[#allocation2 + $0x1d8] sm:$0xff] %vm2530, %v1437
      %3817 = vst.msk [vmem:[#allocation2 + $0x1e0] sm:$0xff] %vm2530, %v1438
      %3818 = vst.msk [vmem:[#allocation2 + $0x1e8] sm:$0xff] %vm2530, %v1439
      %3819 = vst.msk [vmem:[#allocation2 + $0x1f0] sm:$0xff] %vm2530, %v1440
      %3820 = vst.msk [vmem:[#allocation2 + $0x1f8] sm:$0xff] %vm2530, %v1441
      // Predicated region
      $region37: #{_lambda_.4} parent=31 // pred_check
        %p3821 = pneg %p276
      $region38: #{_lambda_.4} parent=31 // pred_check_branch
        %3823 = sbr.rel (%p3821) target = $region40
      $region39: #{_lambda_.4} parent=31 // pred_region
        %v3824 = vld [vmem:[#allocation3] sm:$0xff]
        %v3825 = vld [vmem:[#allocation3 + $0x8] sm:$0xff]
        %v3826 = vld [vmem:[#allocation3 + $0x10] sm:$0xff]
        %v3827 = vld [vmem:[#allocation3 + $0x18] sm:$0xff]
        %v3828 = vld [vmem:[#allocation3 + $0x20] sm:$0xff]
        %v3829 = vld [vmem:[#allocation3 + $0x28] sm:$0xff]
        %v3830 = vld [vmem:[#allocation3 + $0x30] sm:$0xff]
        %v3831 = vld [vmem:[#allocation3 + $0x38] sm:$0xff]
        %v3832 = vld [vmem:[#allocation3 + $0x40] sm:$0xff]
        %v3833 = vld [vmem:[#allocation3 + $0x48] sm:$0xff]
        %v3834 = vld [vmem:[#allocation3 + $0x50] sm:$0xff]
        %v3835 = vld [vmem:[#allocation3 + $0x58] sm:$0xff]
        %v3836 = vld [vmem:[#allocation3 + $0x60] sm:$0xff]
        %v3837 = vld [vmem:[#allocation3 + $0x68] sm:$0xff]
        %v3838 = vld [vmem:[#allocation3 + $0x70] sm:$0xff]
        %v3839 = vld [vmem:[#allocation3 + $0x78] sm:$0xff]
        %v3840 = vld [vmem:[#allocation3 + $0x80] sm:$0xff]
        %v3841 = vld [vmem:[#allocation3 + $0x88] sm:$0xff]
        %v3842 = vld [vmem:[#allocation3 + $0x90] sm:$0xff]
        %v3843 = vld [vmem:[#allocation3 + $0x98] sm:$0xff]
        %v3844 = vld [vmem:[#allocation3 + $0xa0] sm:$0xff]
        %v3845 = vld [vmem:[#allocation3 + $0xa8] sm:$0xff]
        %v3846 = vld [vmem:[#allocation3 + $0xb0] sm:$0xff]
        %v3847 = vld [vmem:[#allocation3 + $0xb8] sm:$0xff]
        %v3848 = vld [vmem:[#allocation3 + $0xc0] sm:$0xff]
        %v3849 = vld [vmem:[#allocation3 + $0xc8] sm:$0xff]
        %v3850 = vld [vmem:[#allocation3 + $0xd0] sm:$0xff]
        %v3851 = vld [vmem:[#allocation3 + $0xd8] sm:$0xff]
        %v3852 = vld [vmem:[#allocation3 + $0xe0] sm:$0xff]
        %v3853 = vld [vmem:[#allocation3 + $0xe8] sm:$0xff]
        %v3854 = vld [vmem:[#allocation3 + $0xf0] sm:$0xff]
        %v3855 = vld [vmem:[#allocation3 + $0xf8] sm:$0xff]
        %v3856 = vld [vmem:[#allocation3 + $0x100] sm:$0xff]
        %v3857 = vld [vmem:[#allocation3 + $0x108] sm:$0xff]
        %v3858 = vld [vmem:[#allocation3 + $0x110] sm:$0xff]
        %v3859 = vld [vmem:[#allocation3 + $0x118] sm:$0xff]
        %v3860 = vld [vmem:[#allocation3 + $0x120] sm:$0xff]
        %v3861 = vld [vmem:[#allocation3 + $0x128] sm:$0xff]
        %v3862 = vld [vmem:[#allocation3 + $0x130] sm:$0xff]
        %v3863 = vld [vmem:[#allocation3 + $0x138] sm:$0xff]
        %v3864 = vld [vmem:[#allocation3 + $0x140] sm:$0xff]
        %v3865 = vld [vmem:[#allocation3 + $0x148] sm:$0xff]
        %v3866 = vld [vmem:[#allocation3 + $0x150] sm:$0xff]
        %v3867 = vld [vmem:[#allocation3 + $0x158] sm:$0xff]
        %v3868 = vld [vmem:[#allocation3 + $0x160] sm:$0xff]
        %v3869 = vld [vmem:[#allocation3 + $0x168] sm:$0xff]
        %v3870 = vld [vmem:[#allocation3 + $0x170] sm:$0xff]
        %v3871 = vld [vmem:[#allocation3 + $0x178] sm:$0xff]
        %v3872 = vld [vmem:[#allocation3 + $0x180] sm:$0xff]
        %v3873 = vld [vmem:[#allocation3 + $0x188] sm:$0xff]
        %v3874 = vld [vmem:[#allocation3 + $0x190] sm:$0xff]
        %v3875 = vld [vmem:[#allocation3 + $0x198] sm:$0xff]
        %v3876 = vld [vmem:[#allocation3 + $0x1a0] sm:$0xff]
        %v3877 = vld [vmem:[#allocation3 + $0x1a8] sm:$0xff]
        %v3878 = vld [vmem:[#allocation3 + $0x1b0] sm:$0xff]
        %v3879 = vld [vmem:[#allocation3 + $0x1b8] sm:$0xff]
        %v3880 = vld [vmem:[#allocation3 + $0x1c0] sm:$0xff]
        %v3881 = vld [vmem:[#allocation3 + $0x1c8] sm:$0xff]
        %v3882 = vld [vmem:[#allocation3 + $0x1d0] sm:$0xff]
        %v3883 = vld [vmem:[#allocation3 + $0x1d8] sm:$0xff]
        %v3884 = vld [vmem:[#allocation3 + $0x1e0] sm:$0xff]
        %v3885 = vld [vmem:[#allocation3 + $0x1e8] sm:$0xff]
        %v3886 = vld [vmem:[#allocation3 + $0x1f0] sm:$0xff]
        %v3887 = vld [vmem:[#allocation3 + $0x1f8] sm:$0xff]
        %v3888 = vrcp.pop %v3824
        %v3889 = vrcp.pop %v3825
        %v3890 = vrcp.pop %v3826
        %v3891 = vrcp.pop %v3827
        %v3892 = vrcp.pop %v3828
        %v3893 = vrcp.pop %v3829
        %v3894 = vrcp.pop %v3830
        %v3895 = vrcp.pop %v3831
        %v3896 = vrcp.pop %v3832
        %v3897 = vrcp.pop %v3833
        %v3898 = vrcp.pop %v3834
        %v3899 = vrcp.pop %v3835
        %v3900 = vrcp.pop %v3836
        %v3901 = vrcp.pop %v3837
        %v3902 = vrcp.pop %v3838
        %v3903 = vrcp.pop %v3839
        %v3904 = vrcp.pop %v3840
        %v3905 = vrcp.pop %v3841
        %v3906 = vrcp.pop %v3842
        %v3907 = vrcp.pop %v3843
        %v3908 = vrcp.pop %v3844
        %v3909 = vrcp.pop %v3845
        %v3910 = vrcp.pop %v3846
        %v3911 = vrcp.pop %v3847
        %v3912 = vrcp.pop %v3848
        %v3913 = vrcp.pop %v3849
        %v3914 = vrcp.pop %v3850
        %v3915 = vrcp.pop %v3851
        %v3916 = vrcp.pop %v3852
        %v3917 = vrcp.pop %v3853
        %v3918 = vrcp.pop %v3854
        %v3919 = vrcp.pop %v3855
        %v3920 = vrcp.pop %v3856
        %v3921 = vrcp.pop %v3857
        %v3922 = vrcp.pop %v3858
        %v3923 = vrcp.pop %v3859
        %v3924 = vrcp.pop %v3860
        %v3925 = vrcp.pop %v3861
        %v3926 = vrcp.pop %v3862
        %v3927 = vrcp.pop %v3863
        %v3928 = vrcp.pop %v3864
        %v3929 = vrcp.pop %v3865
        %v3930 = vrcp.pop %v3866
        %v3931 = vrcp.pop %v3867
        %v3932 = vrcp.pop %v3868
        %v3933 = vrcp.pop %v3869
        %v3934 = vrcp.pop %v3870
        %v3935 = vrcp.pop %v3871
        %v3936 = vrcp.pop %v3872
        %v3937 = vrcp.pop %v3873
        %v3938 = vrcp.pop %v3874
        %v3939 = vrcp.pop %v3875
        %v3940 = vrcp.pop %v3876
        %v3941 = vrcp.pop %v3877
        %v3942 = vrcp.pop %v3878
        %v3943 = vrcp.pop %v3879
        %v3944 = vrcp.pop %v3880
        %v3945 = vrcp.pop %v3881
        %v3946 = vrcp.pop %v3882
        %v3947 = vrcp.pop %v3883
        %v3948 = vrcp.pop %v3884
        %v3949 = vrcp.pop %v3885
        %v3950 = vrcp.pop %v3886
        %v3951 = vrcp.pop %v3887
        %v3952 = vmul.f32 %v3824, %v3888
        %v3953 = vmul.f32 %v3825, %v3889
        %v3954 = vmul.f32 %v3826, %v3890
        %v3955 = vmul.f32 %v3827, %v3891
        %v3956 = vmul.f32 %v3828, %v3892
        %v3957 = vmul.f32 %v3829, %v3893
        %v3958 = vmul.f32 %v3830, %v3894
        %v3959 = vmul.f32 %v3831, %v3895
        %v3960 = vmul.f32 %v3832, %v3896
        %v3961 = vmul.f32 %v3833, %v3897
        %v3962 = vmul.f32 %v3834, %v3898
        %v3963 = vmul.f32 %v3835, %v3899
        %v3964 = vmul.f32 %v3836, %v3900
        %v3965 = vmul.f32 %v3837, %v3901
        %v3966 = vmul.f32 %v3838, %v3902
        %v3967 = vmul.f32 %v3839, %v3903
        %v3968 = vmul.f32 %v3840, %v3904
        %v3969 = vmul.f32 %v3841, %v3905
        %v3970 = vmul.f32 %v3842, %v3906
        %v3971 = vmul.f32 %v3843, %v3907
        %v3972 = vmul.f32 %v3844, %v3908
        %v3973 = vmul.f32 %v3845, %v3909
        %v3974 = vmul.f32 %v3846, %v3910
        %v3975 = vmul.f32 %v3847, %v3911
        %v3976 = vmul.f32 %v3848, %v3912
        %v3977 = vmul.f32 %v3849, %v3913
        %v3978 = vmul.f32 %v3850, %v3914
        %v3979 = vmul.f32 %v3851, %v3915
        %v3980 = vmul.f32 %v3852, %v3916
        %v3981 = vmul.f32 %v3853, %v3917
        %v3982 = vmul.f32 %v3854, %v3918
        %v3983 = vmul.f32 %v3855, %v3919
        %v3984 = vmul.f32 %v3856, %v3920
        %v3985 = vmul.f32 %v3857, %v3921
        %v3986 = vmul.f32 %v3858, %v3922
        %v3987 = vmul.f32 %v3859, %v3923
        %v3988 = vmul.f32 %v3860, %v3924
        %v3989 = vmul.f32 %v3861, %v3925
        %v3990 = vmul.f32 %v3862, %v3926
        %v3991 = vmul.f32 %v3863, %v3927
        %v3992 = vmul.f32 %v3864, %v3928
        %v3993 = vmul.f32 %v3865, %v3929
        %v3994 = vmul.f32 %v3866, %v3930
        %v3995 = vmul.f32 %v3867, %v3931
        %v3996 = vmul.f32 %v3868, %v3932
        %v3997 = vmul.f32 %v3869, %v3933
        %v3998 = vmul.f32 %v3870, %v3934
        %v3999 = vmul.f32 %v3871, %v3935
        %v4000 = vmul.f32 %v3872, %v3936
        %v4001 = vmul.f32 %v3873, %v3937
        %v4002 = vmul.f32 %v3874, %v3938
        %v4003 = vmul.f32 %v3875, %v3939
        %v4004 = vmul.f32 %v3876, %v3940
        %v4005 = vmul.f32 %v3877, %v3941
        %v4006 = vmul.f32 %v3878, %v3942
        %v4007 = vmul.f32 %v3879, %v3943
        %v4008 = vmul.f32 %v3880, %v3944
        %v4009 = vmul.f32 %v3881, %v3945
        %v4010 = vmul.f32 %v3882, %v3946
        %v4011 = vmul.f32 %v3883, %v3947
        %v4012 = vmul.f32 %v3884, %v3948
        %v4013 = vmul.f32 %v3885, %v3949
        %v4014 = vmul.f32 %v3886, %v3950
        %v4015 = vmul.f32 %v3887, %v3951
        %v4016 = vsub.f32 2.0, %v3952
        %v4017 = vsub.f32 2.0, %v3953
        %v4018 = vsub.f32 2.0, %v3954
        %v4019 = vsub.f32 2.0, %v3955
        %v4020 = vsub.f32 2.0, %v3956
        %v4021 = vsub.f32 2.0, %v3957
        %v4022 = vsub.f32 2.0, %v3958
        %v4023 = vsub.f32 2.0, %v3959
        %v4024 = vsub.f32 2.0, %v3960
        %v4025 = vsub.f32 2.0, %v3961
        %v4026 = vsub.f32 2.0, %v3962
        %v4027 = vsub.f32 2.0, %v3963
        %v4028 = vsub.f32 2.0, %v3964
        %v4029 = vsub.f32 2.0, %v3965
        %v4030 = vsub.f32 2.0, %v3966
        %v4031 = vsub.f32 2.0, %v3967
        %v4032 = vsub.f32 2.0, %v3968
        %v4033 = vsub.f32 2.0, %v3969
        %v4034 = vsub.f32 2.0, %v3970
        %v4035 = vsub.f32 2.0, %v3971
        %v4036 = vsub.f32 2.0, %v3972
        %v4037 = vsub.f32 2.0, %v3973
        %v4038 = vsub.f32 2.0, %v3974
        %v4039 = vsub.f32 2.0, %v3975
        %v4040 = vsub.f32 2.0, %v3976
        %v4041 = vsub.f32 2.0, %v3977
        %v4042 = vsub.f32 2.0, %v3978
        %v4043 = vsub.f32 2.0, %v3979
        %v4044 = vsub.f32 2.0, %v3980
        %v4045 = vsub.f32 2.0, %v3981
        %v4046 = vsub.f32 2.0, %v3982
        %v4047 = vsub.f32 2.0, %v3983
        %v4048 = vsub.f32 2.0, %v3984
        %v4049 = vsub.f32 2.0, %v3985
        %v4050 = vsub.f32 2.0, %v3986
        %v4051 = vsub.f32 2.0, %v3987
        %v4052 = vsub.f32 2.0, %v3988
        %v4053 = vsub.f32 2.0, %v3989
        %v4054 = vsub.f32 2.0, %v3990
        %v4055 = vsub.f32 2.0, %v3991
        %v4056 = vsub.f32 2.0, %v3992
        %v4057 = vsub.f32 2.0, %v3993
        %v4058 = vsub.f32 2.0, %v3994
        %v4059 = vsub.f32 2.0, %v3995
        %v4060 = vsub.f32 2.0, %v3996
        %v4061 = vsub.f32 2.0, %v3997
        %v4062 = vsub.f32 2.0, %v3998
        %v4063 = vsub.f32 2.0, %v3999
        %v4064 = vsub.f32 2.0, %v4000
        %v4065 = vsub.f32 2.0, %v4001
        %v4066 = vsub.f32 2.0, %v4002
        %v4067 = vsub.f32 2.0, %v4003
        %v4068 = vsub.f32 2.0, %v4004
        %v4069 = vsub.f32 2.0, %v4005
        %v4070 = vsub.f32 2.0, %v4006
        %v4071 = vsub.f32 2.0, %v4007
        %v4072 = vsub.f32 2.0, %v4008
        %v4073 = vsub.f32 2.0, %v4009
        %v4074 = vsub.f32 2.0, %v4010
        %v4075 = vsub.f32 2.0, %v4011
        %v4076 = vsub.f32 2.0, %v4012
        %v4077 = vsub.f32 2.0, %v4013
        %v4078 = vsub.f32 2.0, %v4014
        %v4079 = vsub.f32 2.0, %v4015
        %v4080 = vmul.f32 %v3888, %v4016
        %v4081 = vmul.f32 %v3889, %v4017
        %v4082 = vmul.f32 %v3890, %v4018
        %v4083 = vmul.f32 %v3891, %v4019
        %v4084 = vmul.f32 %v3892, %v4020
        %v4085 = vmul.f32 %v3893, %v4021
        %v4086 = vmul.f32 %v3894, %v4022
        %v4087 = vmul.f32 %v3895, %v4023
        %v4088 = vmul.f32 %v3896, %v4024
        %v4089 = vmul.f32 %v3897, %v4025
        %v4090 = vmul.f32 %v3898, %v4026
        %v4091 = vmul.f32 %v3899, %v4027
        %v4092 = vmul.f32 %v3900, %v4028
        %v4093 = vmul.f32 %v3901, %v4029
        %v4094 = vmul.f32 %v3902, %v4030
        %v4095 = vmul.f32 %v3903, %v4031
        %v4096 = vmul.f32 %v3904, %v4032
        %v4097 = vmul.f32 %v3905, %v4033
        %v4098 = vmul.f32 %v3906, %v4034
        %v4099 = vmul.f32 %v3907, %v4035
        %v4100 = vmul.f32 %v3908, %v4036
        %v4101 = vmul.f32 %v3909, %v4037
        %v4102 = vmul.f32 %v3910, %v4038
        %v4103 = vmul.f32 %v3911, %v4039
        %v4104 = vmul.f32 %v3912, %v4040
        %v4105 = vmul.f32 %v3913, %v4041
        %v4106 = vmul.f32 %v3914, %v4042
        %v4107 = vmul.f32 %v3915, %v4043
        %v4108 = vmul.f32 %v3916, %v4044
        %v4109 = vmul.f32 %v3917, %v4045
        %v4110 = vmul.f32 %v3918, %v4046
        %v4111 = vmul.f32 %v3919, %v4047
        %v4112 = vmul.f32 %v3920, %v4048
        %v4113 = vmul.f32 %v3921, %v4049
        %v4114 = vmul.f32 %v3922, %v4050
        %v4115 = vmul.f32 %v3923, %v4051
        %v4116 = vmul.f32 %v3924, %v4052
        %v4117 = vmul.f32 %v3925, %v4053
        %v4118 = vmul.f32 %v3926, %v4054
        %v4119 = vmul.f32 %v3927, %v4055
        %v4120 = vmul.f32 %v3928, %v4056
        %v4121 = vmul.f32 %v3929, %v4057
        %v4122 = vmul.f32 %v3930, %v4058
        %v4123 = vmul.f32 %v3931, %v4059
        %v4124 = vmul.f32 %v3932, %v4060
        %v4125 = vmul.f32 %v3933, %v4061
        %v4126 = vmul.f32 %v3934, %v4062
        %v4127 = vmul.f32 %v3935, %v4063
        %v4128 = vmul.f32 %v3936, %v4064
        %v4129 = vmul.f32 %v3937, %v4065
        %v4130 = vmul.f32 %v3938, %v4066
        %v4131 = vmul.f32 %v3939, %v4067
        %v4132 = vmul.f32 %v3940, %v4068
        %v4133 = vmul.f32 %v3941, %v4069
        %v4134 = vmul.f32 %v3942, %v4070
        %v4135 = vmul.f32 %v3943, %v4071
        %v4136 = vmul.f32 %v3944, %v4072
        %v4137 = vmul.f32 %v3945, %v4073
        %v4138 = vmul.f32 %v3946, %v4074
        %v4139 = vmul.f32 %v3947, %v4075
        %v4140 = vmul.f32 %v3948, %v4076
        %v4141 = vmul.f32 %v3949, %v4077
        %v4142 = vmul.f32 %v3950, %v4078
        %v4143 = vmul.f32 %v3951, %v4079
        %v4144 = vld [vmem:[#allocation4] sm:$0xff]
        %v4145 = vld [vmem:[#allocation4 + $0x8] sm:$0xff]
        %v4146 = vld [vmem:[#allocation4 + $0x10] sm:$0xff]
        %v4147 = vld [vmem:[#allocation4 + $0x18] sm:$0xff]
        %v4148 = vld [vmem:[#allocation4 + $0x20] sm:$0xff]
        %v4149 = vld [vmem:[#allocation4 + $0x28] sm:$0xff]
        %v4150 = vld [vmem:[#allocation4 + $0x30] sm:$0xff]
        %v4151 = vld [vmem:[#allocation4 + $0x38] sm:$0xff]
        %v4152 = vld [vmem:[#allocation4 + $0x40] sm:$0xff]
        %v4153 = vld [vmem:[#allocation4 + $0x48] sm:$0xff]
        %v4154 = vld [vmem:[#allocation4 + $0x50] sm:$0xff]
        %v4155 = vld [vmem:[#allocation4 + $0x58] sm:$0xff]
        %v4156 = vld [vmem:[#allocation4 + $0x60] sm:$0xff]
        %v4157 = vld [vmem:[#allocation4 + $0x68] sm:$0xff]
        %v4158 = vld [vmem:[#allocation4 + $0x70] sm:$0xff]
        %v4159 = vld [vmem:[#allocation4 + $0x78] sm:$0xff]
        %v4160 = vld [vmem:[#allocation4 + $0x80] sm:$0xff]
        %v4161 = vld [vmem:[#allocation4 + $0x88] sm:$0xff]
        %v4162 = vld [vmem:[#allocation4 + $0x90] sm:$0xff]
        %v4163 = vld [vmem:[#allocation4 + $0x98] sm:$0xff]
        %v4164 = vld [vmem:[#allocation4 + $0xa0] sm:$0xff]
        %v4165 = vld [vmem:[#allocation4 + $0xa8] sm:$0xff]
        %v4166 = vld [vmem:[#allocation4 + $0xb0] sm:$0xff]
        %v4167 = vld [vmem:[#allocation4 + $0xb8] sm:$0xff]
        %v4168 = vld [vmem:[#allocation4 + $0xc0] sm:$0xff]
        %v4169 = vld [vmem:[#allocation4 + $0xc8] sm:$0xff]
        %v4170 = vld [vmem:[#allocation4 + $0xd0] sm:$0xff]
        %v4171 = vld [vmem:[#allocation4 + $0xd8] sm:$0xff]
        %v4172 = vld [vmem:[#allocation4 + $0xe0] sm:$0xff]
        %v4173 = vld [vmem:[#allocation4 + $0xe8] sm:$0xff]
        %v4174 = vld [vmem:[#allocation4 + $0xf0] sm:$0xff]
        %v4175 = vld [vmem:[#allocation4 + $0xf8] sm:$0xff]
        %v4176 = vld [vmem:[#allocation4 + $0x100] sm:$0xff]
        %v4177 = vld [vmem:[#allocation4 + $0x108] sm:$0xff]
        %v4178 = vld [vmem:[#allocation4 + $0x110] sm:$0xff]
        %v4179 = vld [vmem:[#allocation4 + $0x118] sm:$0xff]
        %v4180 = vld [vmem:[#allocation4 + $0x120] sm:$0xff]
        %v4181 = vld [vmem:[#allocation4 + $0x128] sm:$0xff]
        %v4182 = vld [vmem:[#allocation4 + $0x130] sm:$0xff]
        %v4183 = vld [vmem:[#allocation4 + $0x138] sm:$0xff]
        %v4184 = vld [vmem:[#allocation4 + $0x140] sm:$0xff]
        %v4185 = vld [vmem:[#allocation4 + $0x148] sm:$0xff]
        %v4186 = vld [vmem:[#allocation4 + $0x150] sm:$0xff]
        %v4187 = vld [vmem:[#allocation4 + $0x158] sm:$0xff]
        %v4188 = vld [vmem:[#allocation4 + $0x160] sm:$0xff]
        %v4189 = vld [vmem:[#allocation4 + $0x168] sm:$0xff]
        %v4190 = vld [vmem:[#allocation4 + $0x170] sm:$0xff]
        %v4191 = vld [vmem:[#allocation4 + $0x178] sm:$0xff]
        %v4192 = vld [vmem:[#allocation4 + $0x180] sm:$0xff]
        %v4193 = vld [vmem:[#allocation4 + $0x188] sm:$0xff]
        %v4194 = vld [vmem:[#allocation4 + $0x190] sm:$0xff]
        %v4195 = vld [vmem:[#allocation4 + $0x198] sm:$0xff]
        %v4196 = vld [vmem:[#allocation4 + $0x1a0] sm:$0xff]
        %v4197 = vld [vmem:[#allocation4 + $0x1a8] sm:$0xff]
        %v4198 = vld [vmem:[#allocation4 + $0x1b0] sm:$0xff]
        %v4199 = vld [vmem:[#allocation4 + $0x1b8] sm:$0xff]
        %v4200 = vld [vmem:[#allocation4 + $0x1c0] sm:$0xff]
        %v4201 = vld [vmem:[#allocation4 + $0x1c8] sm:$0xff]
        %v4202 = vld [vmem:[#allocation4 + $0x1d0] sm:$0xff]
        %v4203 = vld [vmem:[#allocation4 + $0x1d8] sm:$0xff]
        %v4204 = vld [vmem:[#allocation4 + $0x1e0] sm:$0xff]
        %v4205 = vld [vmem:[#allocation4 + $0x1e8] sm:$0xff]
        %v4206 = vld [vmem:[#allocation4 + $0x1f0] sm:$0xff]
        %v4207 = vld [vmem:[#allocation4 + $0x1f8] sm:$0xff]
        %4209 = vset.pattern.permute.xlu0 0
        %4210 = vperm.xlu0 %4209, %v4080
        %v4211 = vpop.permute.xlu0 %4210
        %4214 = vset.pattern.permute.xlu0 0
        %4215 = vperm.xlu0 %4214, %v4081
        %v4216 = vpop.permute.xlu0 %4215
        %4219 = vset.pattern.permute.xlu0 0
        %4220 = vperm.xlu0 %4219, %v4082
        %v4221 = vpop.permute.xlu0 %4220
        %4224 = vset.pattern.permute.xlu0 0
        %4225 = vperm.xlu0 %4224, %v4083
        %v4226 = vpop.permute.xlu0 %4225
        %4229 = vset.pattern.permute.xlu0 0
        %4230 = vperm.xlu0 %4229, %v4084
        %v4231 = vpop.permute.xlu0 %4230
        %4234 = vset.pattern.permute.xlu0 0
        %4235 = vperm.xlu0 %4234, %v4085
        %v4236 = vpop.permute.xlu0 %4235
        %4239 = vset.pattern.permute.xlu0 0
        %4240 = vperm.xlu0 %4239, %v4086
        %v4241 = vpop.permute.xlu0 %4240
        %4244 = vset.pattern.permute.xlu0 0
        %4245 = vperm.xlu0 %4244, %v4087
        %v4246 = vpop.permute.xlu0 %4245
        %4249 = vset.pattern.permute.xlu0 0
        %4250 = vperm.xlu0 %4249, %v4088
        %v4251 = vpop.permute.xlu0 %4250
        %4254 = vset.pattern.permute.xlu0 0
        %4255 = vperm.xlu0 %4254, %v4089
        %v4256 = vpop.permute.xlu0 %4255
        %4259 = vset.pattern.permute.xlu0 0
        %4260 = vperm.xlu0 %4259, %v4090
        %v4261 = vpop.permute.xlu0 %4260
        %4264 = vset.pattern.permute.xlu0 0
        %4265 = vperm.xlu0 %4264, %v4091
        %v4266 = vpop.permute.xlu0 %4265
        %4269 = vset.pattern.permute.xlu0 0
        %4270 = vperm.xlu0 %4269, %v4092
        %v4271 = vpop.permute.xlu0 %4270
        %4274 = vset.pattern.permute.xlu0 0
        %4275 = vperm.xlu0 %4274, %v4093
        %v4276 = vpop.permute.xlu0 %4275
        %4279 = vset.pattern.permute.xlu0 0
        %4280 = vperm.xlu0 %4279, %v4094
        %v4281 = vpop.permute.xlu0 %4280
        %4284 = vset.pattern.permute.xlu0 0
        %4285 = vperm.xlu0 %4284, %v4095
        %v4286 = vpop.permute.xlu0 %4285
        %4289 = vset.pattern.permute.xlu0 0
        %4290 = vperm.xlu0 %4289, %v4096
        %v4291 = vpop.permute.xlu0 %4290
        %4294 = vset.pattern.permute.xlu0 0
        %4295 = vperm.xlu0 %4294, %v4097
        %v4296 = vpop.permute.xlu0 %4295
        %4299 = vset.pattern.permute.xlu0 0
        %4300 = vperm.xlu0 %4299, %v4098
        %v4301 = vpop.permute.xlu0 %4300
        %4304 = vset.pattern.permute.xlu0 0
        %4305 = vperm.xlu0 %4304, %v4099
        %v4306 = vpop.permute.xlu0 %4305
        %4309 = vset.pattern.permute.xlu0 0
        %4310 = vperm.xlu0 %4309, %v4100
        %v4311 = vpop.permute.xlu0 %4310
        %4314 = vset.pattern.permute.xlu0 0
        %4315 = vperm.xlu0 %4314, %v4101
        %v4316 = vpop.permute.xlu0 %4315
        %4319 = vset.pattern.permute.xlu0 0
        %4320 = vperm.xlu0 %4319, %v4102
        %v4321 = vpop.permute.xlu0 %4320
        %4324 = vset.pattern.permute.xlu0 0
        %4325 = vperm.xlu0 %4324, %v4103
        %v4326 = vpop.permute.xlu0 %4325
        %4329 = vset.pattern.permute.xlu0 0
        %4330 = vperm.xlu0 %4329, %v4104
        %v4331 = vpop.permute.xlu0 %4330
        %4334 = vset.pattern.permute.xlu0 0
        %4335 = vperm.xlu0 %4334, %v4105
        %v4336 = vpop.permute.xlu0 %4335
        %4339 = vset.pattern.permute.xlu0 0
        %4340 = vperm.xlu0 %4339, %v4106
        %v4341 = vpop.permute.xlu0 %4340
        %4344 = vset.pattern.permute.xlu0 0
        %4345 = vperm.xlu0 %4344, %v4107
        %v4346 = vpop.permute.xlu0 %4345
        %4349 = vset.pattern.permute.xlu0 0
        %4350 = vperm.xlu0 %4349, %v4108
        %v4351 = vpop.permute.xlu0 %4350
        %4354 = vset.pattern.permute.xlu0 0
        %4355 = vperm.xlu0 %4354, %v4109
        %v4356 = vpop.permute.xlu0 %4355
        %4359 = vset.pattern.permute.xlu0 0
        %4360 = vperm.xlu0 %4359, %v4110
        %v4361 = vpop.permute.xlu0 %4360
        %4364 = vset.pattern.permute.xlu0 0
        %4365 = vperm.xlu0 %4364, %v4111
        %v4366 = vpop.permute.xlu0 %4365
        %4369 = vset.pattern.permute.xlu0 0
        %4370 = vperm.xlu0 %4369, %v4112
        %v4371 = vpop.permute.xlu0 %4370
        %4374 = vset.pattern.permute.xlu0 0
        %4375 = vperm.xlu0 %4374, %v4113
        %v4376 = vpop.permute.xlu0 %4375
        %4379 = vset.pattern.permute.xlu0 0
        %4380 = vperm.xlu0 %4379, %v4114
        %v4381 = vpop.permute.xlu0 %4380
        %4384 = vset.pattern.permute.xlu0 0
        %4385 = vperm.xlu0 %4384, %v4115
        %v4386 = vpop.permute.xlu0 %4385
        %4389 = vset.pattern.permute.xlu0 0
        %4390 = vperm.xlu0 %4389, %v4116
        %v4391 = vpop.permute.xlu0 %4390
        %4394 = vset.pattern.permute.xlu0 0
        %4395 = vperm.xlu0 %4394, %v4117
        %v4396 = vpop.permute.xlu0 %4395
        %4399 = vset.pattern.permute.xlu0 0
        %4400 = vperm.xlu0 %4399, %v4118
        %v4401 = vpop.permute.xlu0 %4400
        %4404 = vset.pattern.permute.xlu0 0
        %4405 = vperm.xlu0 %4404, %v4119
        %v4406 = vpop.permute.xlu0 %4405
        %4409 = vset.pattern.permute.xlu0 0
        %4410 = vperm.xlu0 %4409, %v4120
        %v4411 = vpop.permute.xlu0 %4410
        %4414 = vset.pattern.permute.xlu0 0
        %4415 = vperm.xlu0 %4414, %v4121
        %v4416 = vpop.permute.xlu0 %4415
        %4419 = vset.pattern.permute.xlu0 0
        %4420 = vperm.xlu0 %4419, %v4122
        %v4421 = vpop.permute.xlu0 %4420
        %4424 = vset.pattern.permute.xlu0 0
        %4425 = vperm.xlu0 %4424, %v4123
        %v4426 = vpop.permute.xlu0 %4425
        %4429 = vset.pattern.permute.xlu0 0
        %4430 = vperm.xlu0 %4429, %v4124
        %v4431 = vpop.permute.xlu0 %4430
        %4434 = vset.pattern.permute.xlu0 0
        %4435 = vperm.xlu0 %4434, %v4125
        %v4436 = vpop.permute.xlu0 %4435
        %4439 = vset.pattern.permute.xlu0 0
        %4440 = vperm.xlu0 %4439, %v4126
        %v4441 = vpop.permute.xlu0 %4440
        %4444 = vset.pattern.permute.xlu0 0
        %4445 = vperm.xlu0 %4444, %v4127
        %v4446 = vpop.permute.xlu0 %4445
        %4449 = vset.pattern.permute.xlu0 0
        %4450 = vperm.xlu0 %4449, %v4128
        %v4451 = vpop.permute.xlu0 %4450
        %4454 = vset.pattern.permute.xlu0 0
        %4455 = vperm.xlu0 %4454, %v4129
        %v4456 = vpop.permute.xlu0 %4455
        %4459 = vset.pattern.permute.xlu0 0
        %4460 = vperm.xlu0 %4459, %v4130
        %v4461 = vpop.permute.xlu0 %4460
        %4464 = vset.pattern.permute.xlu0 0
        %4465 = vperm.xlu0 %4464, %v4131
        %v4466 = vpop.permute.xlu0 %4465
        %4469 = vset.pattern.permute.xlu0 0
        %4470 = vperm.xlu0 %4469, %v4132
        %v4471 = vpop.permute.xlu0 %4470
        %4474 = vset.pattern.permute.xlu0 0
        %4475 = vperm.xlu0 %4474, %v4133
        %v4476 = vpop.permute.xlu0 %4475
        %4479 = vset.pattern.permute.xlu0 0
        %4480 = vperm.xlu0 %4479, %v4134
        %v4481 = vpop.permute.xlu0 %4480
        %4484 = vset.pattern.permute.xlu0 0
        %4485 = vperm.xlu0 %4484, %v4135
        %v4486 = vpop.permute.xlu0 %4485
        %4489 = vset.pattern.permute.xlu0 0
        %4490 = vperm.xlu0 %4489, %v4136
        %v4491 = vpop.permute.xlu0 %4490
        %4494 = vset.pattern.permute.xlu0 0
        %4495 = vperm.xlu0 %4494, %v4137
        %v4496 = vpop.permute.xlu0 %4495
        %4499 = vset.pattern.permute.xlu0 0
        %4500 = vperm.xlu0 %4499, %v4138
        %v4501 = vpop.permute.xlu0 %4500
        %4504 = vset.pattern.permute.xlu0 0
        %4505 = vperm.xlu0 %4504, %v4139
        %v4506 = vpop.permute.xlu0 %4505
        %4509 = vset.pattern.permute.xlu0 0
        %4510 = vperm.xlu0 %4509, %v4140
        %v4511 = vpop.permute.xlu0 %4510
        %4514 = vset.pattern.permute.xlu0 0
        %4515 = vperm.xlu0 %4514, %v4141
        %v4516 = vpop.permute.xlu0 %4515
        %4519 = vset.pattern.permute.xlu0 0
        %4520 = vperm.xlu0 %4519, %v4142
        %v4521 = vpop.permute.xlu0 %4520
        %4524 = vset.pattern.permute.xlu0 0
        %4525 = vperm.xlu0 %4524, %v4143
        %v4526 = vpop.permute.xlu0 %4525
        %v4528 = vmul.f32 %v4144, %v4211
        %v4529 = vmul.f32 %v4145, %v4216
        %v4530 = vmul.f32 %v4146, %v4221
        %v4531 = vmul.f32 %v4147, %v4226
        %v4532 = vmul.f32 %v4148, %v4231
        %v4533 = vmul.f32 %v4149, %v4236
        %v4534 = vmul.f32 %v4150, %v4241
        %v4535 = vmul.f32 %v4151, %v4246
        %v4536 = vmul.f32 %v4152, %v4251
        %v4537 = vmul.f32 %v4153, %v4256
        %v4538 = vmul.f32 %v4154, %v4261
        %v4539 = vmul.f32 %v4155, %v4266
        %v4540 = vmul.f32 %v4156, %v4271
        %v4541 = vmul.f32 %v4157, %v4276
        %v4542 = vmul.f32 %v4158, %v4281
        %v4543 = vmul.f32 %v4159, %v4286
        %v4544 = vmul.f32 %v4160, %v4291
        %v4545 = vmul.f32 %v4161, %v4296
        %v4546 = vmul.f32 %v4162, %v4301
        %v4547 = vmul.f32 %v4163, %v4306
        %v4548 = vmul.f32 %v4164, %v4311
        %v4549 = vmul.f32 %v4165, %v4316
        %v4550 = vmul.f32 %v4166, %v4321
        %v4551 = vmul.f32 %v4167, %v4326
        %v4552 = vmul.f32 %v4168, %v4331
        %v4553 = vmul.f32 %v4169, %v4336
        %v4554 = vmul.f32 %v4170, %v4341
        %v4555 = vmul.f32 %v4171, %v4346
        %v4556 = vmul.f32 %v4172, %v4351
        %v4557 = vmul.f32 %v4173, %v4356
        %v4558 = vmul.f32 %v4174, %v4361
        %v4559 = vmul.f32 %v4175, %v4366
        %v4560 = vmul.f32 %v4176, %v4371
        %v4561 = vmul.f32 %v4177, %v4376
        %v4562 = vmul.f32 %v4178, %v4381
        %v4563 = vmul.f32 %v4179, %v4386
        %v4564 = vmul.f32 %v4180, %v4391
        %v4565 = vmul.f32 %v4181, %v4396
        %v4566 = vmul.f32 %v4182, %v4401
        %v4567 = vmul.f32 %v4183, %v4406
        %v4568 = vmul.f32 %v4184, %v4411
        %v4569 = vmul.f32 %v4185, %v4416
        %v4570 = vmul.f32 %v4186, %v4421
        %v4571 = vmul.f32 %v4187, %v4426
        %v4572 = vmul.f32 %v4188, %v4431
        %v4573 = vmul.f32 %v4189, %v4436
        %v4574 = vmul.f32 %v4190, %v4441
        %v4575 = vmul.f32 %v4191, %v4446
        %v4576 = vmul.f32 %v4192, %v4451
        %v4577 = vmul.f32 %v4193, %v4456
        %v4578 = vmul.f32 %v4194, %v4461
        %v4579 = vmul.f32 %v4195, %v4466
        %v4580 = vmul.f32 %v4196, %v4471
        %v4581 = vmul.f32 %v4197, %v4476
        %v4582 = vmul.f32 %v4198, %v4481
        %v4583 = vmul.f32 %v4199, %v4486
        %v4584 = vmul.f32 %v4200, %v4491
        %v4585 = vmul.f32 %v4201, %v4496
        %v4586 = vmul.f32 %v4202, %v4501
        %v4587 = vmul.f32 %v4203, %v4506
        %v4588 = vmul.f32 %v4204, %v4511
        %v4589 = vmul.f32 %v4205, %v4516
        %v4590 = vmul.f32 %v4206, %v4521
        %v4591 = vmul.f32 %v4207, %v4526
        %4592 = vst.msk [vmem:[%s274] sm:$0xff] %vm3692, %v4528
        %4593 = vst.msk [vmem:[%s274 + $0x8] sm:$0xff] %vm3692, %v4529
        %4594 = vst.msk [vmem:[%s274 + $0x10] sm:$0xff] %vm3692, %v4530
        %4595 = vst.msk [vmem:[%s274 + $0x18] sm:$0xff] %vm3692, %v4531
        %4596 = vst.msk [vmem:[%s274 + $0x20] sm:$0xff] %vm3692, %v4532
        %4597 = vst.msk [vmem:[%s274 + $0x28] sm:$0xff] %vm3692, %v4533
        %4598 = vst.msk [vmem:[%s274 + $0x30] sm:$0xff] %vm3692, %v4534
        %4599 = vst.msk [vmem:[%s274 + $0x38] sm:$0xff] %vm3692, %v4535
        %4600 = vst.msk [vmem:[%s274 + $0x40] sm:$0xff] %vm3692, %v4536
        %4601 = vst.msk [vmem:[%s274 + $0x48] sm:$0xff] %vm3692, %v4537
        %4602 = vst.msk [vmem:[%s274 + $0x50] sm:$0xff] %vm3692, %v4538
        %4603 = vst.msk [vmem:[%s274 + $0x58] sm:$0xff] %vm3692, %v4539
        %4604 = vst.msk [vmem:[%s274 + $0x60] sm:$0xff] %vm3692, %v4540
        %4605 = vst.msk [vmem:[%s274 + $0x68] sm:$0xff] %vm3692, %v4541
        %4606 = vst.msk [vmem:[%s274 + $0x70] sm:$0xff] %vm3692, %v4542
        %4607 = vst.msk [vmem:[%s274 + $0x78] sm:$0xff] %vm3692, %v4543
        %4608 = vst.msk [vmem:[%s274 + $0x80] sm:$0xff] %vm3692, %v4544
        %4609 = vst.msk [vmem:[%s274 + $0x88] sm:$0xff] %vm3692, %v4545
        %4610 = vst.msk [vmem:[%s274 + $0x90] sm:$0xff] %vm3692, %v4546
        %4611 = vst.msk [vmem:[%s274 + $0x98] sm:$0xff] %vm3692, %v4547
        %4612 = vst.msk [vmem:[%s274 + $0xa0] sm:$0xff] %vm3692, %v4548
        %4613 = vst.msk [vmem:[%s274 + $0xa8] sm:$0xff] %vm3692, %v4549
        %4614 = vst.msk [vmem:[%s274 + $0xb0] sm:$0xff] %vm3692, %v4550
        %4615 = vst.msk [vmem:[%s274 + $0xb8] sm:$0xff] %vm3692, %v4551
        %4616 = vst.msk [vmem:[%s274 + $0xc0] sm:$0xff] %vm3692, %v4552
        %4617 = vst.msk [vmem:[%s274 + $0xc8] sm:$0xff] %vm3692, %v4553
        %4618 = vst.msk [vmem:[%s274 + $0xd0] sm:$0xff] %vm3692, %v4554
        %4619 = vst.msk [vmem:[%s274 + $0xd8] sm:$0xff] %vm3692, %v4555
        %4620 = vst.msk [vmem:[%s274 + $0xe0] sm:$0xff] %vm3692, %v4556
        %4621 = vst.msk [vmem:[%s274 + $0xe8] sm:$0xff] %vm3692, %v4557
        %4622 = vst.msk [vmem:[%s274 + $0xf0] sm:$0xff] %vm3692, %v4558
        %4623 = vst.msk [vmem:[%s274 + $0xf8] sm:$0xff] %vm3692, %v4559
        %4624 = vst.msk [vmem:[%s274 + $0x100] sm:$0xff] %vm3692, %v4560
        %4625 = vst.msk [vmem:[%s274 + $0x108] sm:$0xff] %vm3692, %v4561
        %4626 = vst.msk [vmem:[%s274 + $0x110] sm:$0xff] %vm3692, %v4562
        %4627 = vst.msk [vmem:[%s274 + $0x118] sm:$0xff] %vm3692, %v4563
        %4628 = vst.msk [vmem:[%s274 + $0x120] sm:$0xff] %vm3692, %v4564
        %4629 = vst.msk [vmem:[%s274 + $0x128] sm:$0xff] %vm3692, %v4565
        %4630 = vst.msk [vmem:[%s274 + $0x130] sm:$0xff] %vm3692, %v4566
        %4631 = vst.msk [vmem:[%s274 + $0x138] sm:$0xff] %vm3692, %v4567
        %4632 = vst.msk [vmem:[%s274 + $0x140] sm:$0xff] %vm3692, %v4568
        %4633 = vst.msk [vmem:[%s274 + $0x148] sm:$0xff] %vm3692, %v4569
        %4634 = vst.msk [vmem:[%s274 + $0x150] sm:$0xff] %vm3692, %v4570
        %4635 = vst.msk [vmem:[%s274 + $0x158] sm:$0xff] %vm3692, %v4571
        %4636 = vst.msk [vmem:[%s274 + $0x160] sm:$0xff] %vm3692, %v4572
        %4637 = vst.msk [vmem:[%s274 + $0x168] sm:$0xff] %vm3692, %v4573
        %4638 = vst.msk [vmem:[%s274 + $0x170] sm:$0xff] %vm3692, %v4574
        %4639 = vst.msk [vmem:[%s274 + $0x178] sm:$0xff] %vm3692, %v4575
        %4640 = vst.msk [vmem:[%s274 + $0x180] sm:$0xff] %vm3692, %v4576
        %4641 = vst.msk [vmem:[%s274 + $0x188] sm:$0xff] %vm3692, %v4577
        %4642 = vst.msk [vmem:[%s274 + $0x190] sm:$0xff] %vm3692, %v4578
        %4643 = vst.msk [vmem:[%s274 + $0x198] sm:$0xff] %vm3692, %v4579
        %4644 = vst.msk [vmem:[%s274 + $0x1a0] sm:$0xff] %vm3692, %v4580
        %4645 = vst.msk [vmem:[%s274 + $0x1a8] sm:$0xff] %vm3692, %v4581
        %4646 = vst.msk [vmem:[%s274 + $0x1b0] sm:$0xff] %vm3692, %v4582
        %4647 = vst.msk [vmem:[%s274 + $0x1b8] sm:$0xff] %vm3692, %v4583
        %4648 = vst.msk [vmem:[%s274 + $0x1c0] sm:$0xff] %vm3692, %v4584
        %4649 = vst.msk [vmem:[%s274 + $0x1c8] sm:$0xff] %vm3692, %v4585
        %4650 = vst.msk [vmem:[%s274 + $0x1d0] sm:$0xff] %vm3692, %v4586
        %4651 = vst.msk [vmem:[%s274 + $0x1d8] sm:$0xff] %vm3692, %v4587
        %4652 = vst.msk [vmem:[%s274 + $0x1e0] sm:$0xff] %vm3692, %v4588
        %4653 = vst.msk [vmem:[%s274 + $0x1e8] sm:$0xff] %vm3692, %v4589
        %4654 = vst.msk [vmem:[%s274 + $0x1f0] sm:$0xff] %vm3692, %v4590
        %4655 = vst.msk [vmem:[%s274 + $0x1f8] sm:$0xff] %vm3692, %v4591
      $region40: #{_lambda_.4} parent=31 // pred_fallthru
        _
      %s4656 = smul.u32 64, %s20
      %p4657 = scmp.lt.s32.totalorder %s19, 1
      %s4658 = scalar_select %p4657, %s19, 1
      %p4659 = scmp.lt.s32.totalorder %s4656, 63
      %s4660 = scalar_select %p4659, %s4656, 63
      %s4661 = smul.addr %s4658, 64
      %s4662 = sadd.s32 %s4660, %s4661
      %s4663 = smul.addr %s4662, 8
      %s4664 = scalar_lea.vmem %s3, %s4663
      // Predicated region
      $region41: #{_lambda_.4} parent=31 // pred_check
        %p4665 = pneg %p137
      $region42: #{_lambda_.4} parent=31 // pred_check_branch
        %4667 = sbr.rel (%p4665) target = $region44
      $region43: #{_lambda_.4} parent=31 // pred_region
        %s4668 = smul.u32 64, %s20
      $region44: #{_lambda_.4} parent=31 // pred_fallthru
        _
    $region32: #{_lambda_.4} parent=5 // pred_fallthru
      _
    %p4669 = scmp.le.s32.totalorder 2, %s9
    // Predicated region
    $region45: #{_lambda_.4} parent=5 // pred_check
      %p4670 = pneg %p4669
    $region46: #{_lambda_.4} parent=5 // pred_check_branch
      %4672 = sbr.rel (%p4670) target = $region48
    $region47: #{_lambda_.4} parent=5 // pred_region
      %s4673 = ssub.s32 %s9, 2
      // Predicated region
      $region49: #{_lambda_.4} parent=47 // pred_check
        %p4674 = pneg %p143
      $region50: #{_lambda_.4} parent=47 // pred_check_branch
        %4676 = sbr.rel (%p4674) target = $region52
      $region51: #{_lambda_.4} parent=47 // pred_region
        %s4677 = smul.u32 64, %s23
        %p4678 = scmp.lt.s32.totalorder %s22, 1
        %s4679 = scalar_select %p4678, %s22, 1
        %p4680 = scmp.lt.s32.totalorder %s4677, 63
        %s4681 = scalar_select %p4680, %s4677, 63
        %s4682 = smul.addr %s4679, 64
        %s4683 = sadd.s32 %s4681, %s4682
        %s4684 = smul.addr %s4683, 8
        %s4685 = scalar_lea.vmem %s3, %s4684
      $region52: #{_lambda_.4} parent=47 // pred_fallthru
        _
    $region48: #{_lambda_.4} parent=5 // pred_fallthru
      _
  $region6: #{_lambda_.4} parent=0 // loop_footer
    %s13 = sadd.s32 1, %s9
  $region7: #{_lambda_.4} parent=0 // loop_footer_branch
    %8 = sbr.rel target = $region3
  $region8: #{_lambda_.4} parent=0 // loop_exit
    _

</llo_original>
